<compile_context>
chip_gen: v7x
topology: tpu7x:2x2x1
jax: 0.10.0
libtpu: 0.0.40
codegen_flags: <defaults>
</compile_context>

<pallas_src>
import jax
import jax.numpy as jnp
from jax.experimental import pallas as pl
from jax.experimental.pallas import tpu as pltpu


def _fused_encoder_kernel(xcol_ref, w1_ref, b1_ref, w2_ref, b2_ref, out_ref,
                          h1buf_ref, xcol2_ref):
    """Both encoder branches + both convs + ReLU + MaxPool2d(2), fused.

    xcol_ref : [4M, 8*Cin]  conv1 im2col, rows ordered (gy, gx, b, y2, x2)
    w1_ref   : [8*Cin, 32]  conv1 weight, block-diagonal over branches
    b1_ref   : [1, 32]      conv1 bias (freq ++ welch)
    w2_ref   : [4*32, 32]   conv2 weight, rows (tap, channel), block-diag branches
    b2_ref   : [1, 32]      conv2 bias
    out_ref  : [M, 32]      pooled output, rows ordered (b, y2, x2)
    h1buf_ref: VMEM [4, B, H2+1, W2+1, 32]  parity-split, 'same'-padded conv1 act
    xcol2_ref: VMEM [4M, 4*32]              conv2 im2col slab
    """
    G, B, H2p, W2p, C = h1buf_ref.shape
    H2, W2 = H2p - 1, W2p - 1
    M = B * H2 * W2

    # ---- Conv1 (both branches, 4 taps, all 4 parity groups): one matmul ----
    h1 = jnp.dot(xcol_ref[...], w1_ref[...], preferred_element_type=jnp.float32)
    h1 = jnp.maximum(h1 + b1_ref[...], 0.0)            # [4M, 32]

    # Scatter the 4 parity groups into the 'same'-padded scratch.
    # k=2 'same' pads bottom/right only -> zero ONLY the pad row / pad column.
    h1buf_ref[:, :, H2:H2p, :, :] = jnp.zeros((G, B, 1, W2p, C), jnp.float32)
    h1buf_ref[:, :, :H2, W2:W2p, :] = jnp.zeros((G, B, H2, 1, C), jnp.float32)
    for g in range(4):
        h1buf_ref[g, :, :H2, :W2, :] = h1[g * M:(g + 1) * M].reshape(B, H2, W2, C)

    # ---- Conv2 im2col: every tap is a static unit-stride slice of a
    #      neighbouring parity buffer (no strided access anywhere). ----
    for gy in range(2):
        for gx in range(2):
            g = gy * 2 + gx
            for ky in range(2):
                for kx in range(2):
                    t = ky * 2 + kx
                    src = ((gy + ky) % 2) * 2 + ((gx + kx) % 2)
                    oy, ox = gy & ky, gx & kx
                    tap = h1buf_ref[src, :, oy:oy + H2, ox:ox + W2, :]
                    xcol2_ref[g * M:(g + 1) * M,
                              t * C:(t + 1) * C] = tap.reshape(M, C)

    # ---- Conv2 (both branches, 4 taps, 4 groups): one matmul, K = 128 ----
    h2 = jnp.dot(xcol2_ref[...], w2_ref[...], preferred_element_type=jnp.float32)
    h2 = jnp.maximum(h2 + b2_ref[...], 0.0)             # [4M, 32]

    # ---- MaxPool2d(2): the 2x2 window == the 4 parity groups -> pure max ----
    out_ref[...] = jnp.maximum(
        jnp.maximum(h2[0 * M:1 * M], h2[1 * M:2 * M]),
        jnp.maximum(h2[2 * M:3 * M], h2[3 * M:4 * M]))


def _conv1_im2col_grouped(x):
    """x: [B, 2, Cin, H, W] -> [4*B*(H//2)*(W//2), 2*4*Cin].

    Rows are grouped by the pixel's parity inside the 2x2 pool window
    (gy, gx) = (y%2, x%2), then ordered (b, y//2, x//2).
    Features are ordered (branch, tap, cin).  'same' pad for k=2 = bottom/right."""
    B, S, Cin, H, W = x.shape
    xp = jnp.pad(x, ((0, 0), (0, 0), (0, 0), (0, 1), (0, 1)))
    taps = [xp[:, :, :, ky:ky + H, kx:kx + W]
            for ky in range(2) for kx in range(2)]
    t = jnp.stack(taps, axis=2)                      # [B, 2, 4, Cin, H, W]
    t = jnp.transpose(t, (0, 4, 5, 1, 2, 3))         # [B, H, W, 2, 4, Cin]
    t = t.reshape(B, H // 2, 2, W // 2, 2, S * 4 * Cin)
    t = jnp.transpose(t, (2, 4, 0, 1, 3, 5))         # [gy, gx, B, H2, W2, K1]
    return t.reshape(4 * B * (H // 2) * (W // 2), S * 4 * Cin)


def multi_channel_cnn_har(x, packed):
    """x: [B, 2, Cin, H, W] float32; packed = pack_params(freq_p, welch_p).
    Returns [B, 32, H//2, W//2] (== torch.cat([freq_out, welch_out], dim=1))."""
    w1p, b1p, w2p, b2p = packed
    B, S, Cin, H, W = x.shape
    assert S == 2 and H % 2 == 0 and W % 2 == 0
    C = w1p.shape[-1]                                # 32 = 2 branches * 16
    H2, W2 = H // 2, W // 2
    M = B * H2 * W2
    K1 = S * 4 * Cin

    xcol = _conv1_im2col_grouped(x)                  # [4M, K1]

    grid_spec = pltpu.PrefetchScalarGridSpec(
        num_scalar_prefetch=0,
        grid=(1,),
        in_specs=[
            pl.BlockSpec((4 * M, K1), lambda i: (0, 0)),
            pl.BlockSpec((K1, C), lambda i: (0, 0)),
            pl.BlockSpec((1, C), lambda i: (0, 0)),
            pl.BlockSpec((4 * C, C), lambda i: (0, 0)),
            pl.BlockSpec((1, C), lambda i: (0, 0)),
        ],
        out_specs=pl.BlockSpec((M, C), lambda i: (0, 0)),
        scratch_shapes=[
            pltpu.VMEM((4, B, H2 + 1, W2 + 1, C), jnp.float32),   # padded conv1
            pltpu.VMEM((4 * M, 4 * C), jnp.float32),              # conv2 im2col
        ],
    )

    y = pl.pallas_call(
        _fused_encoder_kernel,
        out_shape=jax.ShapeDtypeStruct((M, C), jnp.float32),
        grid_spec=grid_spec,
        compiler_params=pltpu.CompilerParams(
            dimension_semantics=("arbitrary",)),
    )(xcol, w1p, b1p, w2p, b2p)

    # Rows are already (b, y2, x2); channels already in torch.cat order
    # (0:16 = freq, 16:32 = welch).  Layout plumbing to NCHW in the wrapper.
    return y.reshape(B, H2, W2, C).transpose(0, 3, 1, 2)


multi_channel_cnn_har = jax.jit(multi_channel_cnn_har)


# ------------- parameter packing (branch fusion, block-diagonal) -------------
def pack_params(freq_p, welch_p):
    """freq_p/welch_p: (w1, b1, w2, b2) in PyTorch Conv2d layout
    (w: [16, IC, 2, 2], b: [16]). Returns kernel-ready fused params."""
    oc = freq_p[0].shape[0]                          # 16
    cin = freq_p[0].shape[1]
    C = 2 * oc                                       # 32 fused channels

    w1p = jnp.zeros((2 * 4 * cin, C), jnp.float32)
    w2p = jnp.zeros((4 * C, C), jnp.float32)
    for br, (w1, _, w2, _) in enumerate((freq_p, welch_p)):
        # conv1: rows ordered (branch, ky, kx, ic) -> this branch's 16 columns.
        w1t = jnp.transpose(w1, (2, 3, 1, 0)).reshape(4 * cin, oc)
        w1p = w1p.at[br * 4 * cin:(br + 1) * 4 * cin,
                     br * oc:(br + 1) * oc].set(w1t)
        # conv2: rows ordered (tap, fused_channel), block-diagonal over branches.
        w2t = jnp.transpose(w2, (2, 3, 1, 0))        # [2, 2, 16, 16] (ky,kx,ic,oc)
        for ky in range(2):
            for kx in range(2):
                t = ky * 2 + kx
                w2p = w2p.at[t * C + br * oc:t * C + (br + 1) * oc,
                             br * oc:(br + 1) * oc].set(w2t[ky, kx])
    b1p = jnp.concatenate([freq_p[1], welch_p[1]]).reshape(1, C)
    b2p = jnp.concatenate([freq_p[3], welch_p[3]]).reshape(1, C)
    return w1p, b1p, w2p, b2p


# --------- deterministic parameter init (PyTorch-style shapes/ranges) ---------
def make_branch_params(key, cin, oc=16):
    """(w1, b1, w2, b2) with PyTorch Conv2d layouts: w [OC, IC, 2, 2], b [OC]."""
    ks = jax.random.split(key, 4)

    def wconv(k, ic):
        bound = 1.0 / jnp.sqrt(ic * 4.0)
        return jax.random.uniform(k, (oc, ic, 2, 2), jnp.float32, -bound, bound)

    def bconv(k, ic):
        bound = 1.0 / jnp.sqrt(ic * 4.0)
        return jax.random.uniform(k, (oc,), jnp.float32, -bound, bound)

    return wconv(ks[0], cin), bconv(ks[1], cin), wconv(ks[2], oc), bconv(ks[3], oc)


# --------------- pure-JAX reference (mirrors PyTorch exactly) ---------------
def reference(x, freq_p, welch_p):
    def conv_same(v, w, b):
        o = jax.lax.conv_general_dilated(
            v, w, window_strides=(1, 1), padding=((0, 1), (0, 1)),
            dimension_numbers=('NCHW', 'OIHW', 'NCHW'),
            precision=jax.lax.Precision.HIGHEST)
        return o + b[None, :, None, None]

    def enc(v, p):
        w1, b1, w2, b2 = p
        h = jnp.maximum(conv_same(v, w1, b1), 0.0)
        h = jnp.maximum(conv_same(h, w2, b2), 0.0)
        Bb, Cc, Hh, Ww = h.shape
        return h.reshape(Bb, Cc, Hh // 2, 2, Ww // 2, 2).max(axis=(3, 5))

    return jnp.concatenate([enc(x[:, 0], freq_p), enc(x[:, 1], welch_p)], axis=1)


if __name__ == "__main__":
    B, Cin, H, W = 2, 4, 16, 16          # input_channels=4, small spatial shapes
    key = jax.random.PRNGKey(0)
    kx_, kf, kw = jax.random.split(key, 3)

    x = jax.random.normal(kx_, (B, 2, Cin, H, W), jnp.float32)
    freq_p = make_branch_params(kf, Cin)
    welch_p = make_branch_params(kw, Cin)

    packed = pack_params(freq_p, welch_p)
    out = multi_channel_cnn_har(x, packed)
    out = jax.block_until_ready(out)

    ref = reference(x, freq_p, welch_p)
    assert out.shape == (B, 32, H // 2, W // 2), out.shape
    max_err = float(jnp.max(jnp.abs(out - ref)))
    # Kernel matmuls use default (single-pass bf16) MXU precision; the reference
    # is f32 HIGHEST, so allow a few e-3 of rounding noise.
    assert max_err < 3e-2, f"max abs error too large: {max_err}"

    print("KERNEL_OK")
</pallas_src>

<mosaic_0001>
module attributes {stable_mosaic.version = 11 : i64} {
  func.func @_fused_encoder_kernel(%arg0: i32, %arg1: memref<512x32xf32, #tpu.memory_space<vmem>>, %arg2: memref<32x32xf32, #tpu.memory_space<vmem>>, %arg3: memref<1x32xf32, #tpu.memory_space<vmem>>, %arg4: memref<128x32xf32, #tpu.memory_space<vmem>>, %arg5: memref<1x32xf32, #tpu.memory_space<vmem>>, %arg6: memref<128x32xf32, #tpu.memory_space<vmem>>, %arg7: memref<4x2x9x9x32xf32, #tpu.memory_space<vmem>>, %arg8: memref<512x128xf32, #tpu.memory_space<vmem>>) attributes {dimension_semantics = [#tpu.dimension_semantics<arbitrary>], iteration_bounds = array<i64: 1>, scalar_prefetch = 0 : i64, scratch_operands = 2 : i64, tpu.core_type = #tpu.core_type<tc>, window_params = [{pipeline_mode = #tpu.pipeline_mode<synchronous>, transform_indices = @transform_0, window_bounds = array<i64: 512, 32>}, {pipeline_mode = #tpu.pipeline_mode<synchronous>, transform_indices = @transform_1, window_bounds = array<i64: 32, 32>}, {pipeline_mode = #tpu.pipeline_mode<synchronous>, transform_indices = @transform_2, window_bounds = array<i64: 1, 32>}, {pipeline_mode = #tpu.pipeline_mode<synchronous>, transform_indices = @transform_3, window_bounds = array<i64: 128, 32>}, {pipeline_mode = #tpu.pipeline_mode<synchronous>, transform_indices = @transform_4, window_bounds = array<i64: 1, 32>}, {pipeline_mode = #tpu.pipeline_mode<synchronous>, transform_indices = @transform_5, window_bounds = array<i64: 128, 32>}]} {
    %c0 = arith.constant 0 : index
    %c0_0 = arith.constant 0 : index
    %0 = vector.load %arg1[%c0, %c0_0] : memref<512x32xf32, #tpu.memory_space<vmem>>, vector<512x32xf32>
    %c0_1 = arith.constant 0 : index
    %c0_2 = arith.constant 0 : index
    %1 = vector.load %arg2[%c0_1, %c0_2] : memref<32x32xf32, #tpu.memory_space<vmem>>, vector<32x32xf32>
    %cst = arith.constant dense<0.000000e+00> : vector<512x32xf32>
    %2 = tpu.matmul %0, %1, %cst {dimension_numbers = #tpu.dot_dimension_numbers<[1], [0], [0], [1], [0, 0, 1, 1], [], []>} : vector<512x32xf32>, vector<32x32xf32>, vector<512x32xf32> -> vector<512x32xf32>
    %c0_3 = arith.constant 0 : index
    %c0_4 = arith.constant 0 : index
    %3 = vector.load %arg3[%c0_3, %c0_4] : memref<1x32xf32, #tpu.memory_space<vmem>>, vector<1x32xf32>
    %4 = vector.broadcast %3 : vector<1x32xf32> to vector<512x32xf32>
    %5 = arith.addf %2, %4 : vector<512x32xf32>
    %cst_5 = arith.constant 0.000000e+00 : f32
    %6 = vector.broadcast %cst_5 : f32 to vector<512x32xf32>
    %7 = arith.maximumf %5, %6 : vector<512x32xf32>
    %cst_6 = arith.constant 0.000000e+00 : f32
    %8 = vector.broadcast %cst_6 : f32 to vector<4x2x1x9x32xf32>
    %c0_7 = arith.constant 0 : index
    %c0_8 = arith.constant 0 : index
    %c8 = arith.constant 8 : index
    %c0_9 = arith.constant 0 : index
    %c0_10 = arith.constant 0 : index
    %9 = vector.load %arg7[%c0_7, %c0_8, %c8, %c0_9, %c0_10] : memref<4x2x9x9x32xf32, #tpu.memory_space<vmem>>, vector<4x2x1x9x32xf32>
    tpu.vector_store %arg7[%c0_7, %c0_8, %c8, %c0_9, %c0_10], %8 {strides = array<i32>} : memref<4x2x9x9x32xf32, #tpu.memory_space<vmem>>, vector<4x2x1x9x32xf32>,
    %cst_11 = arith.constant 0.000000e+00 : f32
    %10 = vector.broadcast %cst_11 : f32 to vector<4x2x8x1x32xf32>
    %c0_12 = arith.constant 0 : index
    %c0_13 = arith.constant 0 : index
    %c0_14 = arith.constant 0 : index
    %c8_15 = arith.constant 8 : index
    %c0_16 = arith.constant 0 : index
    %11 = vector.load %arg7[%c0_12, %c0_13, %c0_14, %c8_15, %c0_16] : memref<4x2x9x9x32xf32, #tpu.memory_space<vmem>>, vector<4x2x8x1x32xf32>
    tpu.vector_store %arg7[%c0_12, %c0_13, %c0_14, %c8_15, %c0_16], %10 {strides = array<i32>} : memref<4x2x9x9x32xf32, #tpu.memory_space<vmem>>, vector<4x2x8x1x32xf32>,
    %12 = vector.extract_strided_slice %7 {offsets = [0, 0], sizes = [128, 32], strides = [1, 1]} : vector<512x32xf32> to vector<128x32xf32>
    %13 = vector.shape_cast %12 : vector<128x32xf32> to vector<2x8x8x32xf32>
    %c0_17 = arith.constant 0 : index
    %c0_18 = arith.constant 0 : index
    %c0_19 = arith.constant 0 : index
    %c0_20 = arith.constant 0 : index
    %c0_21 = arith.constant 0 : index
    %14 = vector.load %arg7[%c0_17, %c0_18, %c0_19, %c0_20, %c0_21] : memref<4x2x9x9x32xf32, #tpu.memory_space<vmem>>, vector<1x2x8x8x32xf32>
    %15 = vector.shape_cast %14 : vector<1x2x8x8x32xf32> to vector<2x8x8x32xf32>
    %16 = vector.shape_cast %13 : vector<2x8x8x32xf32> to vector<1x2x8x8x32xf32>
    tpu.vector_store %arg7[%c0_17, %c0_18, %c0_19, %c0_20, %c0_21], %16 {strides = array<i32>} : memref<4x2x9x9x32xf32, #tpu.memory_space<vmem>>, vector<1x2x8x8x32xf32>,
    %17 = vector.extract_strided_slice %7 {offsets = [128, 0], sizes = [128, 32], strides = [1, 1]} : vector<512x32xf32> to vector<128x32xf32>
    %18 = vector.shape_cast %17 : vector<128x32xf32> to vector<2x8x8x32xf32>
    %c1 = arith.constant 1 : index
    %c0_22 = arith.constant 0 : index
    %c0_23 = arith.constant 0 : index
    %c0_24 = arith.constant 0 : index
    %c0_25 = arith.constant 0 : index
    %19 = vector.load %arg7[%c1, %c0_22, %c0_23, %c0_24, %c0_25] : memref<4x2x9x9x32xf32, #tpu.memory_space<vmem>>, vector<1x2x8x8x32xf32>
    %20 = vector.shape_cast %19 : vector<1x2x8x8x32xf32> to vector<2x8x8x32xf32>
    %21 = vector.shape_cast %18 : vector<2x8x8x32xf32> to vector<1x2x8x8x32xf32>
    tpu.vector_store %arg7[%c1, %c0_22, %c0_23, %c0_24, %c0_25], %21 {strides = array<i32>} : memref<4x2x9x9x32xf32, #tpu.memory_space<vmem>>, vector<1x2x8x8x32xf32>,
    %22 = vector.extract_strided_slice %7 {offsets = [256, 0], sizes = [128, 32], strides = [1, 1]} : vector<512x32xf32> to vector<128x32xf32>
    %23 = vector.shape_cast %22 : vector<128x32xf32> to vector<2x8x8x32xf32>
    %c2 = arith.constant 2 : index
    %c0_26 = arith.constant 0 : index
    %c0_27 = arith.constant 0 : index
    %c0_28 = arith.constant 0 : index
    %c0_29 = arith.constant 0 : index
    %24 = vector.load %arg7[%c2, %c0_26, %c0_27, %c0_28, %c0_29] : memref<4x2x9x9x32xf32, #tpu.memory_space<vmem>>, vector<1x2x8x8x32xf32>
    %25 = vector.shape_cast %24 : vector<1x2x8x8x32xf32> to vector<2x8x8x32xf32>
    %26 = vector.shape_cast %23 : vector<2x8x8x32xf32> to vector<1x2x8x8x32xf32>
    tpu.vector_store %arg7[%c2, %c0_26, %c0_27, %c0_28, %c0_29], %26 {strides = array<i32>} : memref<4x2x9x9x32xf32, #tpu.memory_space<vmem>>, vector<1x2x8x8x32xf32>,
    %27 = vector.extract_strided_slice %7 {offsets = [384, 0], sizes = [128, 32], strides = [1, 1]} : vector<512x32xf32> to vector<128x32xf32>
    %28 = vector.shape_cast %27 : vector<128x32xf32> to vector<2x8x8x32xf32>
    %c3 = arith.constant 3 : index
    %c0_30 = arith.constant 0 : index
    %c0_31 = arith.constant 0 : index
    %c0_32 = arith.constant 0 : index
    %c0_33 = arith.constant 0 : index
    %29 = vector.load %arg7[%c3, %c0_30, %c0_31, %c0_32, %c0_33] : memref<4x2x9x9x32xf32, #tpu.memory_space<vmem>>, vector<1x2x8x8x32xf32>
    %30 = vector.shape_cast %29 : vector<1x2x8x8x32xf32> to vector<2x8x8x32xf32>
    %31 = vector.shape_cast %28 : vector<2x8x8x32xf32> to vector<1x2x8x8x32xf32>
    tpu.vector_store %arg7[%c3, %c0_30, %c0_31, %c0_32, %c0_33], %31 {strides = array<i32>} : memref<4x2x9x9x32xf32, #tpu.memory_space<vmem>>, vector<1x2x8x8x32xf32>,
    %c0_34 = arith.constant 0 : index
    %c0_35 = arith.constant 0 : index
    %c0_36 = arith.constant 0 : index
    %c0_37 = arith.constant 0 : index
    %c0_38 = arith.constant 0 : index
    %32 = vector.load %arg7[%c0_34, %c0_35, %c0_36, %c0_37, %c0_38] : memref<4x2x9x9x32xf32, #tpu.memory_space<vmem>>, vector<1x2x8x8x32xf32>
    %33 = vector.shape_cast %32 : vector<1x2x8x8x32xf32> to vector<2x8x8x32xf32>
    %34 = vector.shape_cast %33 : vector<2x8x8x32xf32> to vector<128x32xf32>
    %c0_39 = arith.constant 0 : index
    %c0_40 = arith.constant 0 : index
    %35 = vector.load %arg8[%c0_39, %c0_40] : memref<512x128xf32, #tpu.memory_space<vmem>>, vector<128x32xf32>
    tpu.vector_store %arg8[%c0_39, %c0_40], %34 {strides = array<i32>} : memref<512x128xf32, #tpu.memory_space<vmem>>, vector<128x32xf32>,
    %c1_41 = arith.constant 1 : index
    %c0_42 = arith.constant 0 : index
    %c0_43 = arith.constant 0 : index
    %c0_44 = arith.constant 0 : index
    %c0_45 = arith.constant 0 : index
    %36 = vector.load %arg7[%c1_41, %c0_42, %c0_43, %c0_44, %c0_45] : memref<4x2x9x9x32xf32, #tpu.memory_space<vmem>>, vector<1x2x8x8x32xf32>
    %37 = vector.shape_cast %36 : vector<1x2x8x8x32xf32> to vector<2x8x8x32xf32>
    %38 = vector.shape_cast %37 : vector<2x8x8x32xf32> to vector<128x32xf32>
    %c0_46 = arith.constant 0 : index
    %c32 = arith.constant 32 : index
    %39 = vector.load %arg8[%c0_46, %c32] : memref<512x128xf32, #tpu.memory_space<vmem>>, vector<128x32xf32>
    tpu.vector_store %arg8[%c0_46, %c32], %38 {strides = array<i32>} : memref<512x128xf32, #tpu.memory_space<vmem>>, vector<128x32xf32>,
    %c2_47 = arith.constant 2 : index
    %c0_48 = arith.constant 0 : index
    %c0_49 = arith.constant 0 : index
    %c0_50 = arith.constant 0 : index
    %c0_51 = arith.constant 0 : index
    %40 = vector.load %arg7[%c2_47, %c0_48, %c0_49, %c0_50, %c0_51] : memref<4x2x9x9x32xf32, #tpu.memory_space<vmem>>, vector<1x2x8x8x32xf32>
    %41 = vector.shape_cast %40 : vector<1x2x8x8x32xf32> to vector<2x8x8x32xf32>
    %42 = vector.shape_cast %41 : vector<2x8x8x32xf32> to vector<128x32xf32>
    %c0_52 = arith.constant 0 : index
    %c64 = arith.constant 64 : index
    %43 = vector.load %arg8[%c0_52, %c64] : memref<512x128xf32, #tpu.memory_space<vmem>>, vector<128x32xf32>
    tpu.vector_store %arg8[%c0_52, %c64], %42 {strides = array<i32>} : memref<512x128xf32, #tpu.memory_space<vmem>>, vector<128x32xf32>,
    %c3_53 = arith.constant 3 : index
    %c0_54 = arith.constant 0 : index
    %c0_55 = arith.constant 0 : index
    %c0_56 = arith.constant 0 : index
    %c0_57 = arith.constant 0 : index
    %44 = vector.load %arg7[%c3_53, %c0_54, %c0_55, %c0_56, %c0_57] : memref<4x2x9x9x32xf32, #tpu.memory_space<vmem>>, vector<1x2x8x8x32xf32>
    %45 = vector.shape_cast %44 : vector<1x2x8x8x32xf32> to vector<2x8x8x32xf32>
    %46 = vector.shape_cast %45 : vector<2x8x8x32xf32> to vector<128x32xf32>
    %c0_58 = arith.constant 0 : index
    %c96 = arith.constant 96 : index
    %47 = vector.load %arg8[%c0_58, %c96] : memref<512x128xf32, #tpu.memory_space<vmem>>, vector<128x32xf32>
    tpu.vector_store %arg8[%c0_58, %c96], %46 {strides = array<i32>} : memref<512x128xf32, #tpu.memory_space<vmem>>, vector<128x32xf32>,
    %c1_59 = arith.constant 1 : index
    %c0_60 = arith.constant 0 : index
    %c0_61 = arith.constant 0 : index
    %c0_62 = arith.constant 0 : index
    %c0_63 = arith.constant 0 : index
    %48 = vector.load %arg7[%c1_59, %c0_60, %c0_61, %c0_62, %c0_63] : memref<4x2x9x9x32xf32, #tpu.memory_space<vmem>>, vector<1x2x8x8x32xf32>
    %49 = vector.shape_cast %48 : vector<1x2x8x8x32xf32> to vector<2x8x8x32xf32>
    %50 = vector.shape_cast %49 : vector<2x8x8x32xf32> to vector<128x32xf32>
    %c128 = arith.constant 128 : index
    %c0_64 = arith.constant 0 : index
    %51 = vector.load %arg8[%c128, %c0_64] : memref<512x128xf32, #tpu.memory_space<vmem>>, vector<128x32xf32>
    tpu.vector_store %arg8[%c128, %c0_64], %50 {strides = array<i32>} : memref<512x128xf32, #tpu.memory_space<vmem>>, vector<128x32xf32>,
    %c0_65 = arith.constant 0 : index
    %c0_66 = arith.constant 0 : index
    %c0_67 = arith.constant 0 : index
    %c1_68 = arith.constant 1 : index
    %c0_69 = arith.constant 0 : index
    %52 = vector.load %arg7[%c0_65, %c0_66, %c0_67, %c1_68, %c0_69] : memref<4x2x9x9x32xf32, #tpu.memory_space<vmem>>, vector<1x2x8x8x32xf32>
    %53 = vector.shape_cast %52 : vector<1x2x8x8x32xf32> to vector<2x8x8x32xf32>
    %54 = vector.shape_cast %53 : vector<2x8x8x32xf32> to vector<128x32xf32>
    %c128_70 = arith.constant 128 : index
    %c32_71 = arith.constant 32 : index
    %55 = vector.load %arg8[%c128_70, %c32_71] : memref<512x128xf32, #tpu.memory_space<vmem>>, vector<128x32xf32>
    tpu.vector_store %arg8[%c128_70, %c32_71], %54 {strides = array<i32>} : memref<512x128xf32, #tpu.memory_space<vmem>>, vector<128x32xf32>,
    %c3_72 = arith.constant 3 : index
    %c0_73 = arith.constant 0 : index
    %c0_74 = arith.constant 0 : index
    %c0_75 = arith.constant 0 : index
    %c0_76 = arith.constant 0 : index
    %56 = vector.load %arg7[%c3_72, %c0_73, %c0_74, %c0_75, %c0_76] : memref<4x2x9x9x32xf32, #tpu.memory_space<vmem>>, vector<1x2x8x8x32xf32>
    %57 = vector.shape_cast %56 : vector<1x2x8x8x32xf32> to vector<2x8x8x32xf32>
    %58 = vector.shape_cast %57 : vector<2x8x8x32xf32> to vector<128x32xf32>
    %c128_77 = arith.constant 128 : index
    %c64_78 = arith.constant 64 : index
    %59 = vector.load %arg8[%c128_77, %c64_78] : memref<512x128xf32, #tpu.memory_space<vmem>>, vector<128x32xf32>
    tpu.vector_store %arg8[%c128_77, %c64_78], %58 {strides = array<i32>} : memref<512x128xf32, #tpu.memory_space<vmem>>, vector<128x32xf32>,
    %c2_79 = arith.constant 2 : index
    %c0_80 = arith.constant 0 : index
    %c0_81 = arith.constant 0 : index
    %c1_82 = arith.constant 1 : index
    %c0_83 = arith.constant 0 : index
    %60 = vector.load %arg7[%c2_79, %c0_80, %c0_81, %c1_82, %c0_83] : memref<4x2x9x9x32xf32, #tpu.memory_space<vmem>>, vector<1x2x8x8x32xf32>
    %61 = vector.shape_cast %60 : vector<1x2x8x8x32xf32> to vector<2x8x8x32xf32>
    %62 = vector.shape_cast %61 : vector<2x8x8x32xf32> to vector<128x32xf32>
    %c128_84 = arith.constant 128 : index
    %c96_85 = arith.constant 96 : index
    %63 = vector.load %arg8[%c128_84, %c96_85] : memref<512x128xf32, #tpu.memory_space<vmem>>, vector<128x32xf32>
    tpu.vector_store %arg8[%c128_84, %c96_85], %62 {strides = array<i32>} : memref<512x128xf32, #tpu.memory_space<vmem>>, vector<128x32xf32>,
    %c2_86 = arith.constant 2 : index
    %c0_87 = arith.constant 0 : index
    %c0_88 = arith.constant 0 : index
    %c0_89 = arith.constant 0 : index
    %c0_90 = arith.constant 0 : index
    %64 = vector.load %arg7[%c2_86, %c0_87, %c0_88, %c0_89, %c0_90] : memref<4x2x9x9x32xf32, #tpu.memory_space<vmem>>, vector<1x2x8x8x32xf32>
    %65 = vector.shape_cast %64 : vector<1x2x8x8x32xf32> to vector<2x8x8x32xf32>
    %66 = vector.shape_cast %65 : vector<2x8x8x32xf32> to vector<128x32xf32>
    %c256 = arith.constant 256 : index
    %c0_91 = arith.constant 0 : index
    %67 = vector.load %arg8[%c256, %c0_91] : memref<512x128xf32, #tpu.memory_space<vmem>>, vector<128x32xf32>
    tpu.vector_store %arg8[%c256, %c0_91], %66 {strides = array<i32>} : memref<512x128xf32, #tpu.memory_space<vmem>>, vector<128x32xf32>,
    %c3_92 = arith.constant 3 : index
    %c0_93 = arith.constant 0 : index
    %c0_94 = arith.constant 0 : index
    %c0_95 = arith.constant 0 : index
    %c0_96 = arith.constant 0 : index
    %68 = vector.load %arg7[%c3_92, %c0_93, %c0_94, %c0_95, %c0_96] : memref<4x2x9x9x32xf32, #tpu.memory_space<vmem>>, vector<1x2x8x8x32xf32>
    %69 = vector.shape_cast %68 : vector<1x2x8x8x32xf32> to vector<2x8x8x32xf32>
    %70 = vector.shape_cast %69 : vector<2x8x8x32xf32> to vector<128x32xf32>
    %c256_97 = arith.constant 256 : index
    %c32_98 = arith.constant 32 : index
    %71 = vector.load %arg8[%c256_97, %c32_98] : memref<512x128xf32, #tpu.memory_space<vmem>>, vector<128x32xf32>
    tpu.vector_store %arg8[%c256_97, %c32_98], %70 {strides = array<i32>} : memref<512x128xf32, #tpu.memory_space<vmem>>, vector<128x32xf32>,
    %c0_99 = arith.constant 0 : index
    %c0_100 = arith.constant 0 : index
    %c1_101 = arith.constant 1 : index
    %c0_102 = arith.constant 0 : index
    %c0_103 = arith.constant 0 : index
    %72 = vector.load %arg7[%c0_99, %c0_100, %c1_101, %c0_102, %c0_103] : memref<4x2x9x9x32xf32, #tpu.memory_space<vmem>>, vector<1x2x8x8x32xf32>
    %73 = vector.shape_cast %72 : vector<1x2x8x8x32xf32> to vector<2x8x8x32xf32>
    %74 = vector.shape_cast %73 : vector<2x8x8x32xf32> to vector<128x32xf32>
    %c256_104 = arith.constant 256 : index
    %c64_105 = arith.constant 64 : index
    %75 = vector.load %arg8[%c256_104, %c64_105] : memref<512x128xf32, #tpu.memory_space<vmem>>, vector<128x32xf32>
    tpu.vector_store %arg8[%c256_104, %c64_105], %74 {strides = array<i32>} : memref<512x128xf32, #tpu.memory_space<vmem>>, vector<128x32xf32>,
    %c1_106 = arith.constant 1 : index
    %c0_107 = arith.constant 0 : index
    %c1_108 = arith.constant 1 : index
    %c0_109 = arith.constant 0 : index
    %c0_110 = arith.constant 0 : index
    %76 = vector.load %arg7[%c1_106, %c0_107, %c1_108, %c0_109, %c0_110] : memref<4x2x9x9x32xf32, #tpu.memory_space<vmem>>, vector<1x2x8x8x32xf32>
    %77 = vector.shape_cast %76 : vector<1x2x8x8x32xf32> to vector<2x8x8x32xf32>
    %78 = vector.shape_cast %77 : vector<2x8x8x32xf32> to vector<128x32xf32>
    %c256_111 = arith.constant 256 : index
    %c96_112 = arith.constant 96 : index
    %79 = vector.load %arg8[%c256_111, %c96_112] : memref<512x128xf32, #tpu.memory_space<vmem>>, vector<128x32xf32>
    tpu.vector_store %arg8[%c256_111, %c96_112], %78 {strides = array<i32>} : memref<512x128xf32, #tpu.memory_space<vmem>>, vector<128x32xf32>,
    %c3_113 = arith.constant 3 : index
    %c0_114 = arith.constant 0 : index
    %c0_115 = arith.constant 0 : index
    %c0_116 = arith.constant 0 : index
    %c0_117 = arith.constant 0 : index
    %80 = vector.load %arg7[%c3_113, %c0_114, %c0_115, %c0_116, %c0_117] : memref<4x2x9x9x32xf32, #tpu.memory_space<vmem>>, vector<1x2x8x8x32xf32>
    %81 = vector.shape_cast %80 : vector<1x2x8x8x32xf32> to vector<2x8x8x32xf32>
    %82 = vector.shape_cast %81 : vector<2x8x8x32xf32> to vector<128x32xf32>
    %c384 = arith.constant 384 : index
    %c0_118 = arith.constant 0 : index
    %83 = vector.load %arg8[%c384, %c0_118] : memref<512x128xf32, #tpu.memory_space<vmem>>, vector<128x32xf32>
    tpu.vector_store %arg8[%c384, %c0_118], %82 {strides = array<i32>} : memref<512x128xf32, #tpu.memory_space<vmem>>, vector<128x32xf32>,
    %c2_119 = arith.constant 2 : index
    %c0_120 = arith.constant 0 : index
    %c0_121 = arith.constant 0 : index
    %c1_122 = arith.constant 1 : index
    %c0_123 = arith.constant 0 : index
    %84 = vector.load %arg7[%c2_119, %c0_120, %c0_121, %c1_122, %c0_123] : memref<4x2x9x9x32xf32, #tpu.memory_space<vmem>>, vector<1x2x8x8x32xf32>
    %85 = vector.shape_cast %84 : vector<1x2x8x8x32xf32> to vector<2x8x8x32xf32>
    %86 = vector.shape_cast %85 : vector<2x8x8x32xf32> to vector<128x32xf32>
    %c384_124 = arith.constant 384 : index
    %c32_125 = arith.constant 32 : index
    %87 = vector.load %arg8[%c384_124, %c32_125] : memref<512x128xf32, #tpu.memory_space<vmem>>, vector<128x32xf32>
    tpu.vector_store %arg8[%c384_124, %c32_125], %86 {strides = array<i32>} : memref<512x128xf32, #tpu.memory_space<vmem>>, vector<128x32xf32>,
    %c1_126 = arith.constant 1 : index
    %c0_127 = arith.constant 0 : index
    %c1_128 = arith.constant 1 : index
    %c0_129 = arith.constant 0 : index
    %c0_130 = arith.constant 0 : index
    %88 = vector.load %arg7[%c1_126, %c0_127, %c1_128, %c0_129, %c0_130] : memref<4x2x9x9x32xf32, #tpu.memory_space<vmem>>, vector<1x2x8x8x32xf32>
    %89 = vector.shape_cast %88 : vector<1x2x8x8x32xf32> to vector<2x8x8x32xf32>
    %90 = vector.shape_cast %89 : vector<2x8x8x32xf32> to vector<128x32xf32>
    %c384_131 = arith.constant 384 : index
    %c64_132 = arith.constant 64 : index
    %91 = vector.load %arg8[%c384_131, %c64_132] : memref<512x128xf32, #tpu.memory_space<vmem>>, vector<128x32xf32>
    tpu.vector_store %arg8[%c384_131, %c64_132], %90 {strides = array<i32>} : memref<512x128xf32, #tpu.memory_space<vmem>>, vector<128x32xf32>,
    %c0_133 = arith.constant 0 : index
    %c0_134 = arith.constant 0 : index
    %c1_135 = arith.constant 1 : index
    %c1_136 = arith.constant 1 : index
    %c0_137 = arith.constant 0 : index
    %92 = vector.load %arg7[%c0_133, %c0_134, %c1_135, %c1_136, %c0_137] : memref<4x2x9x9x32xf32, #tpu.memory_space<vmem>>, vector<1x2x8x8x32xf32>
    %93 = vector.shape_cast %92 : vector<1x2x8x8x32xf32> to vector<2x8x8x32xf32>
    %94 = vector.shape_cast %93 : vector<2x8x8x32xf32> to vector<128x32xf32>
    %c384_138 = arith.constant 384 : index
    %c96_139 = arith.constant 96 : index
    %95 = vector.load %arg8[%c384_138, %c96_139] : memref<512x128xf32, #tpu.memory_space<vmem>>, vector<128x32xf32>
    tpu.vector_store %arg8[%c384_138, %c96_139], %94 {strides = array<i32>} : memref<512x128xf32, #tpu.memory_space<vmem>>, vector<128x32xf32>,
    %c0_140 = arith.constant 0 : index
    %c0_141 = arith.constant 0 : index
    %96 = vector.load %arg8[%c0_140, %c0_141] : memref<512x128xf32, #tpu.memory_space<vmem>>, vector<512x128xf32>
    %c0_142 = arith.constant 0 : index
    %c0_143 = arith.constant 0 : index
    %97 = vector.load %arg4[%c0_142, %c0_143] : memref<128x32xf32, #tpu.memory_space<vmem>>, vector<128x32xf32>
    %cst_144 = arith.constant dense<0.000000e+00> : vector<512x32xf32>
    %98 = tpu.matmul %96, %97, %cst_144 {dimension_numbers = #tpu.dot_dimension_numbers<[1], [0], [0], [1], [0, 0, 1, 1], [], []>} : vector<512x128xf32>, vector<128x32xf32>, vector<512x32xf32> -> vector<512x32xf32>
    %c0_145 = arith.constant 0 : index
    %c0_146 = arith.constant 0 : index
    %99 = vector.load %arg5[%c0_145, %c0_146] : memref<1x32xf32, #tpu.memory_space<vmem>>, vector<1x32xf32>
    %100 = vector.broadcast %99 : vector<1x32xf32> to vector<512x32xf32>
    %101 = arith.addf %98, %100 : vector<512x32xf32>
    %cst_147 = arith.constant 0.000000e+00 : f32
    %102 = vector.broadcast %cst_147 : f32 to vector<512x32xf32>
    %103 = arith.maximumf %101, %102 : vector<512x32xf32>
    %104 = vector.extract_strided_slice %103 {offsets = [0, 0], sizes = [128, 32], strides = [1, 1]} : vector<512x32xf32> to vector<128x32xf32>
    %105 = vector.extract_strided_slice %103 {offsets = [128, 0], sizes = [128, 32], strides = [1, 1]} : vector<512x32xf32> to vector<128x32xf32>
    %106 = arith.maximumf %104, %105 : vector<128x32xf32>
    %107 = vector.extract_strided_slice %103 {offsets = [256, 0], sizes = [128, 32], strides = [1, 1]} : vector<512x32xf32> to vector<128x32xf32>
    %108 = vector.extract_strided_slice %103 {offsets = [384, 0], sizes = [128, 32], strides = [1, 1]} : vector<512x32xf32> to vector<128x32xf32>
    %109 = arith.maximumf %107, %108 : vector<128x32xf32>
    %110 = arith.maximumf %106, %109 : vector<128x32xf32>
    %c0_148 = arith.constant 0 : index
    %c0_149 = arith.constant 0 : index
    %111 = vector.load %arg6[%c0_148, %c0_149] : memref<128x32xf32, #tpu.memory_space<vmem>>, vector<128x32xf32>
    tpu.vector_store %arg6[%c0_148, %c0_149], %110 {strides = array<i32>} : memref<128x32xf32, #tpu.memory_space<vmem>>, vector<128x32xf32>,
    return
  }
  func.func @transform_0(%arg0: i32) -> (i32, i32) {
    %c0_i32 = arith.constant 0 : i32
    %c0_i32_0 = arith.constant 0 : i32
    %c0_i32_1 = arith.constant 0 : i32
    return %c0_i32, %c0_i32_0 : i32, i32
  }
  func.func @transform_1(%arg0: i32) -> (i32, i32) {
    %c0_i32 = arith.constant 0 : i32
    %c0_i32_0 = arith.constant 0 : i32
    %c0_i32_1 = arith.constant 0 : i32
    return %c0_i32, %c0_i32_0 : i32, i32
  }
  func.func @transform_2(%arg0: i32) -> (i32, i32) {
    %c0_i32 = arith.constant 0 : i32
    %c0_i32_0 = arith.constant 0 : i32
    %c0_i32_1 = arith.constant 0 : i32
    return %c0_i32, %c0_i32_0 : i32, i32
  }
  func.func @transform_3(%arg0: i32) -> (i32, i32) {
    %c0_i32 = arith.constant 0 : i32
    %c0_i32_0 = arith.constant 0 : i32
    %c0_i32_1 = arith.constant 0 : i32
    return %c0_i32, %c0_i32_0 : i32, i32
  }
  func.func @transform_4(%arg0: i32) -> (i32, i32) {
    %c0_i32 = arith.constant 0 : i32
    %c0_i32_0 = arith.constant 0 : i32
    %c0_i32_1 = arith.constant 0 : i32
    return %c0_i32, %c0_i32_0 : i32, i32
  }
  func.func @transform_5(%arg0: i32) -> (i32, i32) {
    %c0_i32 = arith.constant 0 : i32
    %c0_i32_0 = arith.constant 0 : i32
    %c0_i32_1 = arith.constant 0 : i32
    return %c0_i32, %c0_i32_0 : i32, i32
  }
}

</mosaic_0001>

<llo_original>
// kernel: multi_channel_cnn_har.1
$region0: #{multi_channel_cnn_har.1}
  #allocation0 [shape = 'u32[]', space=smem, size = 0x4, offset = 0x4, fixed_abs, tag = 'smem constant byte address 0x4 - core index']
  #allocation1 [shape = 'u32[144,128]{1,0:T(1,128)}', space=vmem, size = 0x12000, scoped, tag = 'internal scratch']
  #allocation2 [shape = 'f32[4,2,9,9,32]{4,3,2,1,0:T(8,128)}', space=vmem, size = 0x90000, scoped, tag = 'scratch operand']
  #allocation3 [shape = 'f32[512,128]{1,0:T(8,128)}', space=vmem, size = 0x40000, scoped, tag = 'scratch operand']
  %s0 = inlined_call_operand.vmem [shape: f32[512,32], index: 0, kind: input, shape index: {}]
  %s1 = inlined_call_operand.vmem [shape: f32[32,32], index: 1, kind: input, shape index: {}]
  %s2 = inlined_call_operand.vmem [shape: f32[1,32], index: 2, kind: input, shape index: {}]
  %s3 = inlined_call_operand.vmem [shape: f32[128,32], index: 3, kind: input, shape index: {}]
  %s4 = inlined_call_operand.vmem [shape: f32[1,32], index: 4, kind: input, shape index: {}]
  %s5 = inlined_call_operand.hbm [shape: f32[128,32], index: 5, kind: output, shape index: {}]
  %s6 = sld [smem:[#allocation0]]
  $region30: #{multi_channel_cnn_har.1} parent=0
    _
  %s8 = ssub.s32 1, %s6
  %s9 = scalar_select 0, %s8, %s6
  $region1: #{multi_channel_cnn_har.1} parent=0
    #allocation4 [shape = 'u8[65536]{0}', space=vmem, size = 0x10000, scoped, tag = 'output window, operand 0, single buffered']
    #allocation5 [shape = 's32[1]{0}', space=sflag, size = 0x4, scoped, tag = 'scoped memory for multi_channel_cnn_har.1']
    %10 = vsyncpa [#allocation5], 0
    // Predicated region
    $region2: #{multi_channel_cnn_har.1} parent=1 // pred_check
      _
    $region3: #{multi_channel_cnn_har.1} parent=1 // pred_check_branch
      %12 = sbr.rel (0) target = $region5
    $region4: #{multi_channel_cnn_har.1} parent=1 // pred_region
      _
    $region5: #{multi_channel_cnn_har.1} parent=1 // pred_fallthru
      _
    // Predicated region
    $region6: #{multi_channel_cnn_har.1} parent=1 // pred_check
      _
    $region7: #{multi_channel_cnn_har.1} parent=1 // pred_check_branch
      %14 = sbr.rel (0) target = $region9
    $region8: #{multi_channel_cnn_har.1} parent=1 // pred_region
      _
    $region9: #{multi_channel_cnn_har.1} parent=1 // pred_fallthru
      _
    // Predicated region
    $region10: #{multi_channel_cnn_har.1} parent=1 // pred_check
      _
    $region11: #{multi_channel_cnn_har.1} parent=1 // pred_check_branch
      %16 = sbr.rel (0) target = $region13
    $region12: #{multi_channel_cnn_har.1} parent=1 // pred_region
      _
    $region13: #{multi_channel_cnn_har.1} parent=1 // pred_fallthru
      _
    // Predicated region
    $region14: #{multi_channel_cnn_har.1} parent=1 // pred_check
      _
    $region15: #{multi_channel_cnn_har.1} parent=1 // pred_check_branch
      %18 = sbr.rel (0) target = $region17
    $region16: #{multi_channel_cnn_har.1} parent=1 // pred_region
      _
    $region17: #{multi_channel_cnn_har.1} parent=1 // pred_fallthru
      _
    // Predicated region
    $region18: #{multi_channel_cnn_har.1} parent=1 // pred_check
      _
    $region19: #{multi_channel_cnn_har.1} parent=1 // pred_check_branch
      %20 = sbr.rel (0) target = $region21
    $region20: #{multi_channel_cnn_har.1} parent=1 // pred_region
      _
    $region21: #{multi_channel_cnn_har.1} parent=1 // pred_fallthru
      _
    %v21 = vld [vmem:[%s0] sm:$0xff]
    %v22 = vld [vmem:[%s0 + $0x8] sm:$0xff]
    %v23 = vld [vmem:[%s0 + $0x10] sm:$0xff]
    %v24 = vld [vmem:[%s0 + $0x18] sm:$0xff]
    %v25 = vld [vmem:[%s0 + $0x20] sm:$0xff]
    %v26 = vld [vmem:[%s0 + $0x28] sm:$0xff]
    %v27 = vld [vmem:[%s0 + $0x30] sm:$0xff]
    %v28 = vld [vmem:[%s0 + $0x38] sm:$0xff]
    %v29 = vld [vmem:[%s0 + $0x40] sm:$0xff]
    %v30 = vld [vmem:[%s0 + $0x48] sm:$0xff]
    %v31 = vld [vmem:[%s0 + $0x50] sm:$0xff]
    %v32 = vld [vmem:[%s0 + $0x58] sm:$0xff]
    %v33 = vld [vmem:[%s0 + $0x60] sm:$0xff]
    %v34 = vld [vmem:[%s0 + $0x68] sm:$0xff]
    %v35 = vld [vmem:[%s0 + $0x70] sm:$0xff]
    %v36 = vld [vmem:[%s0 + $0x78] sm:$0xff]
    %v37 = vld [vmem:[%s0 + $0x80] sm:$0xff]
    %v38 = vld [vmem:[%s0 + $0x88] sm:$0xff]
    %v39 = vld [vmem:[%s0 + $0x90] sm:$0xff]
    %v40 = vld [vmem:[%s0 + $0x98] sm:$0xff]
    %v41 = vld [vmem:[%s0 + $0xa0] sm:$0xff]
    %v42 = vld [vmem:[%s0 + $0xa8] sm:$0xff]
    %v43 = vld [vmem:[%s0 + $0xb0] sm:$0xff]
    %v44 = vld [vmem:[%s0 + $0xb8] sm:$0xff]
    %v45 = vld [vmem:[%s0 + $0xc0] sm:$0xff]
    %v46 = vld [vmem:[%s0 + $0xc8] sm:$0xff]
    %v47 = vld [vmem:[%s0 + $0xd0] sm:$0xff]
    %v48 = vld [vmem:[%s0 + $0xd8] sm:$0xff]
    %v49 = vld [vmem:[%s0 + $0xe0] sm:$0xff]
    %v50 = vld [vmem:[%s0 + $0xe8] sm:$0xff]
    %v51 = vld [vmem:[%s0 + $0xf0] sm:$0xff]
    %v52 = vld [vmem:[%s0 + $0xf8] sm:$0xff]
    %v53 = vld [vmem:[%s0 + $0x100] sm:$0xff]
    %v54 = vld [vmem:[%s0 + $0x108] sm:$0xff]
    %v55 = vld [vmem:[%s0 + $0x110] sm:$0xff]
    %v56 = vld [vmem:[%s0 + $0x118] sm:$0xff]
    %v57 = vld [vmem:[%s0 + $0x120] sm:$0xff]
    %v58 = vld [vmem:[%s0 + $0x128] sm:$0xff]
    %v59 = vld [vmem:[%s0 + $0x130] sm:$0xff]
    %v60 = vld [vmem:[%s0 + $0x138] sm:$0xff]
    %v61 = vld [vmem:[%s0 + $0x140] sm:$0xff]
    %v62 = vld [vmem:[%s0 + $0x148] sm:$0xff]
    %v63 = vld [vmem:[%s0 + $0x150] sm:$0xff]
    %v64 = vld [vmem:[%s0 + $0x158] sm:$0xff]
    %v65 = vld [vmem:[%s0 + $0x160] sm:$0xff]
    %v66 = vld [vmem:[%s0 + $0x168] sm:$0xff]
    %v67 = vld [vmem:[%s0 + $0x170] sm:$0xff]
    %v68 = vld [vmem:[%s0 + $0x178] sm:$0xff]
    %v69 = vld [vmem:[%s0 + $0x180] sm:$0xff]
    %v70 = vld [vmem:[%s0 + $0x188] sm:$0xff]
    %v71 = vld [vmem:[%s0 + $0x190] sm:$0xff]
    %v72 = vld [vmem:[%s0 + $0x198] sm:$0xff]
    %v73 = vld [vmem:[%s0 + $0x1a0] sm:$0xff]
    %v74 = vld [vmem:[%s0 + $0x1a8] sm:$0xff]
    %v75 = vld [vmem:[%s0 + $0x1b0] sm:$0xff]
    %v76 = vld [vmem:[%s0 + $0x1b8] sm:$0xff]
    %v77 = vld [vmem:[%s0 + $0x1c0] sm:$0xff]
    %v78 = vld [vmem:[%s0 + $0x1c8] sm:$0xff]
    %v79 = vld [vmem:[%s0 + $0x1d0] sm:$0xff]
    %v80 = vld [vmem:[%s0 + $0x1d8] sm:$0xff]
    %v81 = vld [vmem:[%s0 + $0x1e0] sm:$0xff]
    %v82 = vld [vmem:[%s0 + $0x1e8] sm:$0xff]
    %v83 = vld [vmem:[%s0 + $0x1f0] sm:$0xff]
    %v84 = vld [vmem:[%s0 + $0x1f8] sm:$0xff]
    %v85 = vld [vmem:[%s1] sm:$0xff]
    %v86 = vld [vmem:[%s1 + $0x8] sm:$0xff]
    %v87 = vld [vmem:[%s1 + $0x10] sm:$0xff]
    %v88 = vld [vmem:[%s1 + $0x18] sm:$0xff]
    %v89 = vld [vmem:[%s2] sm:$0x1]
    %v91 = vlaneseq
    %v92 = vshrl.u32 %v91, 7
    %v93 = vsub.s32 0, %v92
    %v94 = vrot.slane %v89, %v93
    %vm96 = vcmask 261120
    %v98 = vsel %vm96, %v21, 0
    %v101 = vsel %vm96, %v22, 0
    %v104 = vsel %vm96, %v23, 0
    %v107 = vsel %vm96, %v24, 0
    %v110 = vsel %vm96, %v25, 0
    %v113 = vsel %vm96, %v26, 0
    %v116 = vsel %vm96, %v27, 0
    %v119 = vsel %vm96, %v28, 0
    %v122 = vsel %vm96, %v29, 0
    %v125 = vsel %vm96, %v30, 0
    %v128 = vsel %vm96, %v31, 0
    %v131 = vsel %vm96, %v32, 0
    %v134 = vsel %vm96, %v33, 0
    %v137 = vsel %vm96, %v34, 0
    %v140 = vsel %vm96, %v35, 0
    %v143 = vsel %vm96, %v36, 0
    %v146 = vsel %vm96, %v37, 0
    %v149 = vsel %vm96, %v38, 0
    %v152 = vsel %vm96, %v39, 0
    %v155 = vsel %vm96, %v40, 0
    %v158 = vsel %vm96, %v41, 0
    %v161 = vsel %vm96, %v42, 0
    %v164 = vsel %vm96, %v43, 0
    %v167 = vsel %vm96, %v44, 0
    %v170 = vsel %vm96, %v45, 0
    %v173 = vsel %vm96, %v46, 0
    %v176 = vsel %vm96, %v47, 0
    %v179 = vsel %vm96, %v48, 0
    %v182 = vsel %vm96, %v49, 0
    %v185 = vsel %vm96, %v50, 0
    %v188 = vsel %vm96, %v51, 0
    %v191 = vsel %vm96, %v52, 0
    %v194 = vsel %vm96, %v53, 0
    %v197 = vsel %vm96, %v54, 0
    %v200 = vsel %vm96, %v55, 0
    %v203 = vsel %vm96, %v56, 0
    %v206 = vsel %vm96, %v57, 0
    %v209 = vsel %vm96, %v58, 0
    %v212 = vsel %vm96, %v59, 0
    %v215 = vsel %vm96, %v60, 0
    %v218 = vsel %vm96, %v61, 0
    %v221 = vsel %vm96, %v62, 0
    %v224 = vsel %vm96, %v63, 0
    %v227 = vsel %vm96, %v64, 0
    %v230 = vsel %vm96, %v65, 0
    %v233 = vsel %vm96, %v66, 0
    %v236 = vsel %vm96, %v67, 0
    %v239 = vsel %vm96, %v68, 0
    %v242 = vsel %vm96, %v69, 0
    %v245 = vsel %vm96, %v70, 0
    %v248 = vsel %vm96, %v71, 0
    %v251 = vsel %vm96, %v72, 0
    %v254 = vsel %vm96, %v73, 0
    %v257 = vsel %vm96, %v74, 0
    %v260 = vsel %vm96, %v75, 0
    %v263 = vsel %vm96, %v76, 0
    %v266 = vsel %vm96, %v77, 0
    %v269 = vsel %vm96, %v78, 0
    %v272 = vsel %vm96, %v79, 0
    %v275 = vsel %vm96, %v80, 0
    %v278 = vsel %vm96, %v81, 0
    %v281 = vsel %vm96, %v82, 0
    %v284 = vsel %vm96, %v83, 0
    %v287 = vsel %vm96, %v84, 0
    %289 = vmatprep.subr.mxu0 0.0
    %290 = vmatpush1.msra.mxu0 %v85
    %291 = vmatprep.subr.mxu0 0.0
    %292 = vmatpush1.msra.mxu0 %v86
    %293 = vmatprep.subr.mxu0 0.0
    %294 = vmatpush1.msra.mxu0 %v87
    %295 = vmatprep.subr.mxu0 0.0
    %296 = vmatpush1.msra.mxu0 %v88
    %297 = vmatprep.subr.mxu0 0.0
    %298 = vmatpush1.msra.mxu0 0.0
    %299 = vmatprep.subr.mxu0 0.0
    %300 = vmatpush1.msra.mxu0 0.0
    %301 = vmatprep.subr.mxu0 0.0
    %302 = vmatpush1.msra.mxu0 0.0
    %303 = vmatprep.subr.mxu0 0.0
    %304 = vmatpush1.msra.mxu0 0.0
    %305 = vmatprep.subr.mxu0 0.0
    %306 = vmatpush1.msra.mxu0 0.0
    %307 = vmatprep.subr.mxu0 0.0
    %308 = vmatpush1.msra.mxu0 0.0
    %309 = vmatprep.subr.mxu0 0.0
    %310 = vmatpush1.msra.mxu0 0.0
    %311 = vmatprep.subr.mxu0 0.0
    %312 = vmatpush1.msra.mxu0 0.0
    %313 = vmatprep.subr.mxu0 0.0
    %314 = vmatpush1.msra.mxu0 0.0
    %315 = vmatprep.subr.mxu0 0.0
    %316 = vmatpush1.msra.mxu0 0.0
    %317 = vmatprep.subr.mxu0 0.0
    %318 = vmatpush1.msra.mxu0 0.0
    %319 = vmatprep.subr.mxu0 0.0
    %320 = vmatpush1.msra.mxu0 0.0
    %321 = vmatprep.subr.mxu0 0.0
    %322 = vmatpush1.msra.mxu0 0.0
    %323 = vmatprep.subr.mxu0 0.0
    %324 = vmatpush1.msra.mxu0 0.0
    %325 = vmatprep.subr.mxu0 0.0
    %326 = vmatpush1.msra.mxu0 0.0
    %327 = vmatprep.subr.mxu0 0.0
    %328 = vmatpush1.msra.mxu0 0.0
    %329 = vmatprep.subr.mxu0 0.0
    %330 = vmatpush1.msra.mxu0 0.0
    %331 = vmatprep.subr.mxu0 0.0
    %332 = vmatpush1.msra.mxu0 0.0
    %333 = vmatprep.subr.mxu0 0.0
    %334 = vmatpush1.msra.mxu0 0.0
    %335 = vmatprep.subr.mxu0 0.0
    %336 = vmatpush1.msra.mxu0 0.0
    %337 = vmatprep.subr.mxu0 0.0
    %338 = vmatpush1.msra.mxu0 0.0
    %339 = vmatprep.subr.mxu0 0.0
    %340 = vmatpush1.msra.mxu0 0.0
    %341 = vmatprep.subr.mxu0 0.0
    %342 = vmatpush1.msra.mxu0 0.0
    %343 = vmatprep.subr.mxu0 0.0
    %344 = vmatpush1.msra.mxu0 0.0
    %345 = vmatprep.subr.mxu0 0.0
    %346 = vmatpush1.msra.mxu0 0.0
    %347 = vmatprep.subr.mxu0 0.0
    %348 = vmatpush1.msra.mxu0 0.0
    %349 = vmatprep.subr.mxu0 0.0
    %350 = vmatpush1.msra.mxu0 0.0
    %351 = vmatprep.subr.mxu0 0.0
    %352 = vmatpush1.msra.mxu0 0.0
    %353 = vmatprep.mubr.f32.mxu0 0.0
    %354 = vmatmul.mubr.f32.gmra.mrb[0].mxu0 %v98
    %v355 = vpop.f32.mrb[0].mxu0
    %v356 = vadd.f32 %v94, %v355
    %v357 = vpop.f32.mrb[0].mxu0
    %358 = vmatprep.mubr.f32.mxu0 0.0
    %359 = vmatmul.mubr.f32.gmra.mrb[0].mxu0 %v101
    %v360 = vpop.f32.mrb[0].mxu0
    %v361 = vadd.f32 %v94, %v360
    %v362 = vpop.f32.mrb[0].mxu0
    %363 = vmatprep.mubr.f32.mxu0 0.0
    %364 = vmatmul.mubr.f32.gmra.mrb[0].mxu0 %v104
    %v365 = vpop.f32.mrb[0].mxu0
    %v366 = vadd.f32 %v94, %v365
    %v367 = vpop.f32.mrb[0].mxu0
    %368 = vmatprep.mubr.f32.mxu0 0.0
    %369 = vmatmul.mubr.f32.gmra.mrb[0].mxu0 %v107
    %v370 = vpop.f32.mrb[0].mxu0
    %v371 = vadd.f32 %v94, %v370
    %v372 = vpop.f32.mrb[0].mxu0
    %373 = vmatprep.mubr.f32.mxu0 0.0
    %374 = vmatmul.mubr.f32.gmra.mrb[0].mxu0 %v110
    %v375 = vpop.f32.mrb[0].mxu0
    %v376 = vadd.f32 %v94, %v375
    %v377 = vpop.f32.mrb[0].mxu0
    %378 = vmatprep.mubr.f32.mxu0 0.0
    %379 = vmatmul.mubr.f32.gmra.mrb[0].mxu0 %v113
    %v380 = vpop.f32.mrb[0].mxu0
    %v381 = vadd.f32 %v94, %v380
    %v382 = vpop.f32.mrb[0].mxu0
    %383 = vmatprep.mubr.f32.mxu0 0.0
    %384 = vmatmul.mubr.f32.gmra.mrb[0].mxu0 %v116
    %v385 = vpop.f32.mrb[0].mxu0
    %v386 = vadd.f32 %v94, %v385
    %v387 = vpop.f32.mrb[0].mxu0
    %388 = vmatprep.mubr.f32.mxu0 0.0
    %389 = vmatmul.mubr.f32.gmra.mrb[0].mxu0 %v119
    %v390 = vpop.f32.mrb[0].mxu0
    %v391 = vadd.f32 %v94, %v390
    %v392 = vpop.f32.mrb[0].mxu0
    %393 = vmatprep.mubr.f32.mxu0 0.0
    %394 = vmatmul.mubr.f32.gmra.mrb[0].mxu0 %v122
    %v395 = vpop.f32.mrb[0].mxu0
    %v396 = vadd.f32 %v94, %v395
    %v397 = vpop.f32.mrb[0].mxu0
    %398 = vmatprep.mubr.f32.mxu0 0.0
    %399 = vmatmul.mubr.f32.gmra.mrb[0].mxu0 %v125
    %v400 = vpop.f32.mrb[0].mxu0
    %v401 = vadd.f32 %v94, %v400
    %v402 = vpop.f32.mrb[0].mxu0
    %403 = vmatprep.mubr.f32.mxu0 0.0
    %404 = vmatmul.mubr.f32.gmra.mrb[0].mxu0 %v128
    %v405 = vpop.f32.mrb[0].mxu0
    %v406 = vadd.f32 %v94, %v405
    %v407 = vpop.f32.mrb[0].mxu0
    %408 = vmatprep.mubr.f32.mxu0 0.0
    %409 = vmatmul.mubr.f32.gmra.mrb[0].mxu0 %v131
    %v410 = vpop.f32.mrb[0].mxu0
    %v411 = vadd.f32 %v94, %v410
    %v412 = vpop.f32.mrb[0].mxu0
    %413 = vmatprep.mubr.f32.mxu0 0.0
    %414 = vmatmul.mubr.f32.gmra.mrb[0].mxu0 %v134
    %v415 = vpop.f32.mrb[0].mxu0
    %v416 = vadd.f32 %v94, %v415
    %v417 = vpop.f32.mrb[0].mxu0
    %418 = vmatprep.mubr.f32.mxu0 0.0
    %419 = vmatmul.mubr.f32.gmra.mrb[0].mxu0 %v137
    %v420 = vpop.f32.mrb[0].mxu0
    %v421 = vadd.f32 %v94, %v420
    %v422 = vpop.f32.mrb[0].mxu0
    %423 = vmatprep.mubr.f32.mxu0 0.0
    %424 = vmatmul.mubr.f32.gmra.mrb[0].mxu0 %v140
    %v425 = vpop.f32.mrb[0].mxu0
    %v426 = vadd.f32 %v94, %v425
    %v427 = vpop.f32.mrb[0].mxu0
    %428 = vmatprep.mubr.f32.mxu0 0.0
    %429 = vmatmul.mubr.f32.gmra.mrb[0].mxu0 %v143
    %v430 = vpop.f32.mrb[0].mxu0
    %v431 = vadd.f32 %v94, %v430
    %v432 = vpop.f32.mrb[0].mxu0
    %433 = vmatprep.mubr.f32.mxu0 0.0
    %434 = vmatmul.mubr.f32.gmra.mrb[0].mxu0 %v146
    %v435 = vpop.f32.mrb[0].mxu0
    %v436 = vadd.f32 %v94, %v435
    %v437 = vpop.f32.mrb[0].mxu0
    %438 = vmatprep.mubr.f32.mxu0 0.0
    %439 = vmatmul.mubr.f32.gmra.mrb[0].mxu0 %v149
    %v440 = vpop.f32.mrb[0].mxu0
    %v441 = vadd.f32 %v94, %v440
    %v442 = vpop.f32.mrb[0].mxu0
    %443 = vmatprep.mubr.f32.mxu0 0.0
    %444 = vmatmul.mubr.f32.gmra.mrb[0].mxu0 %v152
    %v445 = vpop.f32.mrb[0].mxu0
    %v446 = vadd.f32 %v94, %v445
    %v447 = vpop.f32.mrb[0].mxu0
    %448 = vmatprep.mubr.f32.mxu0 0.0
    %449 = vmatmul.mubr.f32.gmra.mrb[0].mxu0 %v155
    %v450 = vpop.f32.mrb[0].mxu0
    %v451 = vadd.f32 %v94, %v450
    %v452 = vpop.f32.mrb[0].mxu0
    %453 = vmatprep.mubr.f32.mxu0 0.0
    %454 = vmatmul.mubr.f32.gmra.mrb[0].mxu0 %v158
    %v455 = vpop.f32.mrb[0].mxu0
    %v456 = vadd.f32 %v94, %v455
    %v457 = vpop.f32.mrb[0].mxu0
    %458 = vmatprep.mubr.f32.mxu0 0.0
    %459 = vmatmul.mubr.f32.gmra.mrb[0].mxu0 %v161
    %v460 = vpop.f32.mrb[0].mxu0
    %v461 = vadd.f32 %v94, %v460
    %v462 = vpop.f32.mrb[0].mxu0
    %463 = vmatprep.mubr.f32.mxu0 0.0
    %464 = vmatmul.mubr.f32.gmra.mrb[0].mxu0 %v164
    %v465 = vpop.f32.mrb[0].mxu0
    %v466 = vadd.f32 %v94, %v465
    %v467 = vpop.f32.mrb[0].mxu0
    %468 = vmatprep.mubr.f32.mxu0 0.0
    %469 = vmatmul.mubr.f32.gmra.mrb[0].mxu0 %v167
    %v470 = vpop.f32.mrb[0].mxu0
    %v471 = vadd.f32 %v94, %v470
    %v472 = vpop.f32.mrb[0].mxu0
    %473 = vmatprep.mubr.f32.mxu0 0.0
    %474 = vmatmul.mubr.f32.gmra.mrb[0].mxu0 %v170
    %v475 = vpop.f32.mrb[0].mxu0
    %v476 = vadd.f32 %v94, %v475
    %v477 = vpop.f32.mrb[0].mxu0
    %478 = vmatprep.mubr.f32.mxu0 0.0
    %479 = vmatmul.mubr.f32.gmra.mrb[0].mxu0 %v173
    %v480 = vpop.f32.mrb[0].mxu0
    %v481 = vadd.f32 %v94, %v480
    %v482 = vpop.f32.mrb[0].mxu0
    %483 = vmatprep.mubr.f32.mxu0 0.0
    %484 = vmatmul.mubr.f32.gmra.mrb[0].mxu0 %v176
    %v485 = vpop.f32.mrb[0].mxu0
    %v486 = vadd.f32 %v94, %v485
    %v487 = vpop.f32.mrb[0].mxu0
    %488 = vmatprep.mubr.f32.mxu0 0.0
    %489 = vmatmul.mubr.f32.gmra.mrb[0].mxu0 %v179
    %v490 = vpop.f32.mrb[0].mxu0
    %v491 = vadd.f32 %v94, %v490
    %v492 = vpop.f32.mrb[0].mxu0
    %493 = vmatprep.mubr.f32.mxu0 0.0
    %494 = vmatmul.mubr.f32.gmra.mrb[0].mxu0 %v182
    %v495 = vpop.f32.mrb[0].mxu0
    %v496 = vadd.f32 %v94, %v495
    %v497 = vpop.f32.mrb[0].mxu0
    %498 = vmatprep.mubr.f32.mxu0 0.0
    %499 = vmatmul.mubr.f32.gmra.mrb[0].mxu0 %v185
    %v500 = vpop.f32.mrb[0].mxu0
    %v501 = vadd.f32 %v94, %v500
    %v502 = vpop.f32.mrb[0].mxu0
    %503 = vmatprep.mubr.f32.mxu0 0.0
    %504 = vmatmul.mubr.f32.gmra.mrb[0].mxu0 %v188
    %v505 = vpop.f32.mrb[0].mxu0
    %v506 = vadd.f32 %v94, %v505
    %v507 = vpop.f32.mrb[0].mxu0
    %508 = vmatprep.mubr.f32.mxu0 0.0
    %509 = vmatmul.mubr.f32.gmra.mrb[0].mxu0 %v191
    %v510 = vpop.f32.mrb[0].mxu0
    %v511 = vadd.f32 %v94, %v510
    %v512 = vpop.f32.mrb[0].mxu0
    %513 = vmatprep.mubr.f32.mxu0 0.0
    %514 = vmatmul.mubr.f32.gmra.mrb[0].mxu0 %v194
    %v515 = vpop.f32.mrb[0].mxu0
    %v516 = vadd.f32 %v94, %v515
    %v517 = vpop.f32.mrb[0].mxu0
    %518 = vmatprep.mubr.f32.mxu0 0.0
    %519 = vmatmul.mubr.f32.gmra.mrb[0].mxu0 %v197
    %v520 = vpop.f32.mrb[0].mxu0
    %v521 = vadd.f32 %v94, %v520
    %v522 = vpop.f32.mrb[0].mxu0
    %523 = vmatprep.mubr.f32.mxu0 0.0
    %524 = vmatmul.mubr.f32.gmra.mrb[0].mxu0 %v200
    %v525 = vpop.f32.mrb[0].mxu0
    %v526 = vadd.f32 %v94, %v525
    %v527 = vpop.f32.mrb[0].mxu0
    %528 = vmatprep.mubr.f32.mxu0 0.0
    %529 = vmatmul.mubr.f32.gmra.mrb[0].mxu0 %v203
    %v530 = vpop.f32.mrb[0].mxu0
    %v531 = vadd.f32 %v94, %v530
    %v532 = vpop.f32.mrb[0].mxu0
    %533 = vmatprep.mubr.f32.mxu0 0.0
    %534 = vmatmul.mubr.f32.gmra.mrb[0].mxu0 %v206
    %v535 = vpop.f32.mrb[0].mxu0
    %v536 = vadd.f32 %v94, %v535
    %v537 = vpop.f32.mrb[0].mxu0
    %538 = vmatprep.mubr.f32.mxu0 0.0
    %539 = vmatmul.mubr.f32.gmra.mrb[0].mxu0 %v209
    %v540 = vpop.f32.mrb[0].mxu0
    %v541 = vadd.f32 %v94, %v540
    %v542 = vpop.f32.mrb[0].mxu0
    %543 = vmatprep.mubr.f32.mxu0 0.0
    %544 = vmatmul.mubr.f32.gmra.mrb[0].mxu0 %v212
    %v545 = vpop.f32.mrb[0].mxu0
    %v546 = vadd.f32 %v94, %v545
    %v547 = vpop.f32.mrb[0].mxu0
    %548 = vmatprep.mubr.f32.mxu0 0.0
    %549 = vmatmul.mubr.f32.gmra.mrb[0].mxu0 %v215
    %v550 = vpop.f32.mrb[0].mxu0
    %v551 = vadd.f32 %v94, %v550
    %v552 = vpop.f32.mrb[0].mxu0
    %553 = vmatprep.mubr.f32.mxu0 0.0
    %554 = vmatmul.mubr.f32.gmra.mrb[0].mxu0 %v218
    %v555 = vpop.f32.mrb[0].mxu0
    %v556 = vadd.f32 %v94, %v555
    %v557 = vpop.f32.mrb[0].mxu0
    %558 = vmatprep.mubr.f32.mxu0 0.0
    %559 = vmatmul.mubr.f32.gmra.mrb[0].mxu0 %v221
    %v560 = vpop.f32.mrb[0].mxu0
    %v561 = vadd.f32 %v94, %v560
    %v562 = vpop.f32.mrb[0].mxu0
    %563 = vmatprep.mubr.f32.mxu0 0.0
    %564 = vmatmul.mubr.f32.gmra.mrb[0].mxu0 %v224
    %v565 = vpop.f32.mrb[0].mxu0
    %v566 = vadd.f32 %v94, %v565
    %v567 = vpop.f32.mrb[0].mxu0
    %568 = vmatprep.mubr.f32.mxu0 0.0
    %569 = vmatmul.mubr.f32.gmra.mrb[0].mxu0 %v227
    %v570 = vpop.f32.mrb[0].mxu0
    %v571 = vadd.f32 %v94, %v570
    %v572 = vpop.f32.mrb[0].mxu0
    %573 = vmatprep.mubr.f32.mxu0 0.0
    %574 = vmatmul.mubr.f32.gmra.mrb[0].mxu0 %v230
    %v575 = vpop.f32.mrb[0].mxu0
    %v576 = vadd.f32 %v94, %v575
    %v577 = vpop.f32.mrb[0].mxu0
    %578 = vmatprep.mubr.f32.mxu0 0.0
    %579 = vmatmul.mubr.f32.gmra.mrb[0].mxu0 %v233
    %v580 = vpop.f32.mrb[0].mxu0
    %v581 = vadd.f32 %v94, %v580
    %v582 = vpop.f32.mrb[0].mxu0
    %583 = vmatprep.mubr.f32.mxu0 0.0
    %584 = vmatmul.mubr.f32.gmra.mrb[0].mxu0 %v236
    %v585 = vpop.f32.mrb[0].mxu0
    %v586 = vadd.f32 %v94, %v585
    %v587 = vpop.f32.mrb[0].mxu0
    %588 = vmatprep.mubr.f32.mxu0 0.0
    %589 = vmatmul.mubr.f32.gmra.mrb[0].mxu0 %v239
    %v590 = vpop.f32.mrb[0].mxu0
    %v591 = vadd.f32 %v94, %v590
    %v592 = vpop.f32.mrb[0].mxu0
    %593 = vmatprep.mubr.f32.mxu0 0.0
    %594 = vmatmul.mubr.f32.gmra.mrb[0].mxu0 %v242
    %v595 = vpop.f32.mrb[0].mxu0
    %v596 = vadd.f32 %v94, %v595
    %v597 = vpop.f32.mrb[0].mxu0
    %598 = vmatprep.mubr.f32.mxu0 0.0
    %599 = vmatmul.mubr.f32.gmra.mrb[0].mxu0 %v245
    %v600 = vpop.f32.mrb[0].mxu0
    %v601 = vadd.f32 %v94, %v600
    %v602 = vpop.f32.mrb[0].mxu0
    %603 = vmatprep.mubr.f32.mxu0 0.0
    %604 = vmatmul.mubr.f32.gmra.mrb[0].mxu0 %v248
    %v605 = vpop.f32.mrb[0].mxu0
    %v606 = vadd.f32 %v94, %v605
    %v607 = vpop.f32.mrb[0].mxu0
    %608 = vmatprep.mubr.f32.mxu0 0.0
    %609 = vmatmul.mubr.f32.gmra.mrb[0].mxu0 %v251
    %v610 = vpop.f32.mrb[0].mxu0
    %v611 = vadd.f32 %v94, %v610
    %v612 = vpop.f32.mrb[0].mxu0
    %613 = vmatprep.mubr.f32.mxu0 0.0
    %614 = vmatmul.mubr.f32.gmra.mrb[0].mxu0 %v254
    %v615 = vpop.f32.mrb[0].mxu0
    %v616 = vadd.f32 %v94, %v615
    %v617 = vpop.f32.mrb[0].mxu0
    %618 = vmatprep.mubr.f32.mxu0 0.0
    %619 = vmatmul.mubr.f32.gmra.mrb[0].mxu0 %v257
    %v620 = vpop.f32.mrb[0].mxu0
    %v621 = vadd.f32 %v94, %v620
    %v622 = vpop.f32.mrb[0].mxu0
    %623 = vmatprep.mubr.f32.mxu0 0.0
    %624 = vmatmul.mubr.f32.gmra.mrb[0].mxu0 %v260
    %v625 = vpop.f32.mrb[0].mxu0
    %v626 = vadd.f32 %v94, %v625
    %v627 = vpop.f32.mrb[0].mxu0
    %628 = vmatprep.mubr.f32.mxu0 0.0
    %629 = vmatmul.mubr.f32.gmra.mrb[0].mxu0 %v263
    %v630 = vpop.f32.mrb[0].mxu0
    %v631 = vadd.f32 %v94, %v630
    %v632 = vpop.f32.mrb[0].mxu0
    %633 = vmatprep.mubr.f32.mxu0 0.0
    %634 = vmatmul.mubr.f32.gmra.mrb[0].mxu0 %v266
    %v635 = vpop.f32.mrb[0].mxu0
    %v636 = vadd.f32 %v94, %v635
    %v637 = vpop.f32.mrb[0].mxu0
    %638 = vmatprep.mubr.f32.mxu0 0.0
    %639 = vmatmul.mubr.f32.gmra.mrb[0].mxu0 %v269
    %v640 = vpop.f32.mrb[0].mxu0
    %v641 = vadd.f32 %v94, %v640
    %v642 = vpop.f32.mrb[0].mxu0
    %643 = vmatprep.mubr.f32.mxu0 0.0
    %644 = vmatmul.mubr.f32.gmra.mrb[0].mxu0 %v272
    %v645 = vpop.f32.mrb[0].mxu0
    %v646 = vadd.f32 %v94, %v645
    %v647 = vpop.f32.mrb[0].mxu0
    %648 = vmatprep.mubr.f32.mxu0 0.0
    %649 = vmatmul.mubr.f32.gmra.mrb[0].mxu0 %v275
    %v650 = vpop.f32.mrb[0].mxu0
    %v651 = vadd.f32 %v94, %v650
    %v652 = vpop.f32.mrb[0].mxu0
    %653 = vmatprep.mubr.f32.mxu0 0.0
    %654 = vmatmul.mubr.f32.gmra.mrb[0].mxu0 %v278
    %v655 = vpop.f32.mrb[0].mxu0
    %v656 = vadd.f32 %v94, %v655
    %v657 = vpop.f32.mrb[0].mxu0
    %658 = vmatprep.mubr.f32.mxu0 0.0
    %659 = vmatmul.mubr.f32.gmra.mrb[0].mxu0 %v281
    %v660 = vpop.f32.mrb[0].mxu0
    %v661 = vadd.f32 %v94, %v660
    %v662 = vpop.f32.mrb[0].mxu0
    %663 = vmatprep.mubr.f32.mxu0 0.0
    %664 = vmatmul.mubr.f32.gmra.mrb[0].mxu0 %v284
    %v665 = vpop.f32.mrb[0].mxu0
    %v666 = vadd.f32 %v94, %v665
    %v667 = vpop.f32.mrb[0].mxu0
    %668 = vmatprep.mubr.f32.mxu0 0.0
    %669 = vmatmul.mubr.f32.gmra.mrb[0].mxu0 %v287
    %v670 = vpop.f32.mrb[0].mxu0
    %v671 = vadd.f32 %v94, %v670
    %v672 = vpop.f32.mrb[0].mxu0
    %673 = vdwg.mxu0
    %v674 = vmax.f32 %v356, 0.0
    %v675 = vmax.f32 %v361, 0.0
    %v676 = vmax.f32 %v366, 0.0
    %v677 = vmax.f32 %v371, 0.0
    %v678 = vmax.f32 %v376, 0.0
    %v679 = vmax.f32 %v381, 0.0
    %v680 = vmax.f32 %v386, 0.0
    %v681 = vmax.f32 %v391, 0.0
    %v682 = vmax.f32 %v396, 0.0
    %v683 = vmax.f32 %v401, 0.0
    %v684 = vmax.f32 %v406, 0.0
    %v685 = vmax.f32 %v411, 0.0
    %v686 = vmax.f32 %v416, 0.0
    %v687 = vmax.f32 %v421, 0.0
    %v688 = vmax.f32 %v426, 0.0
    %v689 = vmax.f32 %v431, 0.0
    %v690 = vmax.f32 %v436, 0.0
    %v691 = vmax.f32 %v441, 0.0
    %v692 = vmax.f32 %v446, 0.0
    %v693 = vmax.f32 %v451, 0.0
    %v694 = vmax.f32 %v456, 0.0
    %v695 = vmax.f32 %v461, 0.0
    %v696 = vmax.f32 %v466, 0.0
    %v697 = vmax.f32 %v471, 0.0
    %v698 = vmax.f32 %v476, 0.0
    %v699 = vmax.f32 %v481, 0.0
    %v700 = vmax.f32 %v486, 0.0
    %v701 = vmax.f32 %v491, 0.0
    %v702 = vmax.f32 %v496, 0.0
    %v703 = vmax.f32 %v501, 0.0
    %v704 = vmax.f32 %v506, 0.0
    %v705 = vmax.f32 %v511, 0.0
    %v706 = vmax.f32 %v516, 0.0
    %v707 = vmax.f32 %v521, 0.0
    %v708 = vmax.f32 %v526, 0.0
    %v709 = vmax.f32 %v531, 0.0
    %v710 = vmax.f32 %v536, 0.0
    %v711 = vmax.f32 %v541, 0.0
    %v712 = vmax.f32 %v546, 0.0
    %v713 = vmax.f32 %v551, 0.0
    %v714 = vmax.f32 %v556, 0.0
    %v715 = vmax.f32 %v561, 0.0
    %v716 = vmax.f32 %v566, 0.0
    %v717 = vmax.f32 %v571, 0.0
    %v718 = vmax.f32 %v576, 0.0
    %v719 = vmax.f32 %v581, 0.0
    %v720 = vmax.f32 %v586, 0.0
    %v721 = vmax.f32 %v591, 0.0
    %v722 = vmax.f32 %v596, 0.0
    %v723 = vmax.f32 %v601, 0.0
    %v724 = vmax.f32 %v606, 0.0
    %v725 = vmax.f32 %v611, 0.0
    %v726 = vmax.f32 %v616, 0.0
    %v727 = vmax.f32 %v621, 0.0
    %v728 = vmax.f32 %v626, 0.0
    %v729 = vmax.f32 %v631, 0.0
    %v730 = vmax.f32 %v636, 0.0
    %v731 = vmax.f32 %v641, 0.0
    %v732 = vmax.f32 %v646, 0.0
    %v733 = vmax.f32 %v651, 0.0
    %v734 = vmax.f32 %v656, 0.0
    %v735 = vmax.f32 %v661, 0.0
    %v736 = vmax.f32 %v666, 0.0
    %v737 = vmax.f32 %v671, 0.0
    %s738 = scalar_lea.vmem [#allocation2], 128
    %739 = vst.msk [vmem:[%s738] sm:$0xff] %vm96, 0.0
    %vm740 = vcmask 253952
    %741 = vst.msk [vmem:[%s738 + $0x8] sm:$0x1] %vm740, 0.0
    %742 = vst.msk [vmem:[%s738 + $0x90] sm:$0xff] %vm96, 0.0
    %743 = vst.msk [vmem:[%s738 + $0x98] sm:$0x1] %vm740, 0.0
    %744 = vst.msk [vmem:[%s738 + $0x120] sm:$0xff] %vm96, 0.0
    %745 = vst.msk [vmem:[%s738 + $0x128] sm:$0x1] %vm740, 0.0
    %746 = vst.msk [vmem:[%s738 + $0x1b0] sm:$0xff] %vm96, 0.0
    %747 = vst.msk [vmem:[%s738 + $0x1b8] sm:$0x1] %vm740, 0.0
    %748 = vst.msk [vmem:[%s738 + $0x240] sm:$0xff] %vm96, 0.0
    %749 = vst.msk [vmem:[%s738 + $0x248] sm:$0x1] %vm740, 0.0
    %750 = vst.msk [vmem:[%s738 + $0x2d0] sm:$0xff] %vm96, 0.0
    %751 = vst.msk [vmem:[%s738 + $0x2d8] sm:$0x1] %vm740, 0.0
    %752 = vst.msk [vmem:[%s738 + $0x360] sm:$0xff] %vm96, 0.0
    %753 = vst.msk [vmem:[%s738 + $0x368] sm:$0x1] %vm740, 0.0
    %754 = vst.msk [vmem:[%s738 + $0x3f0] sm:$0xff] %vm96, 0.0
    %755 = vst.msk [vmem:[%s738 + $0x3f8] sm:$0x1] %vm740, 0.0
    %756 = vst.msk [vmem:[#allocation2 + $0x8] sm:$0x1] %vm740, 0.0
    %757 = vst.msk [vmem:[#allocation2 + $0x18] sm:$0x1] %vm740, 0.0
    %758 = vst.msk [vmem:[#allocation2 + $0x28] sm:$0x1] %vm740, 0.0
    %759 = vst.msk [vmem:[#allocation2 + $0x38] sm:$0x1] %vm740, 0.0
    %760 = vst.msk [vmem:[#allocation2 + $0x48] sm:$0x1] %vm740, 0.0
    %761 = vst.msk [vmem:[#allocation2 + $0x58] sm:$0x1] %vm740, 0.0
    %762 = vst.msk [vmem:[#allocation2 + $0x68] sm:$0x1] %vm740, 0.0
    %763 = vst.msk [vmem:[#allocation2 + $0x78] sm:$0x1] %vm740, 0.0
    %764 = vst.msk [vmem:[#allocation2 + $0x98] sm:$0x1] %vm740, 0.0
    %765 = vst.msk [vmem:[#allocation2 + $0xa8] sm:$0x1] %vm740, 0.0
    %766 = vst.msk [vmem:[#allocation2 + $0xb8] sm:$0x1] %vm740, 0.0
    %767 = vst.msk [vmem:[#allocation2 + $0xc8] sm:$0x1] %vm740, 0.0
    %768 = vst.msk [vmem:[#allocation2 + $0xd8] sm:$0x1] %vm740, 0.0
    %769 = vst.msk [vmem:[#allocation2 + $0xe8] sm:$0x1] %vm740, 0.0
    %770 = vst.msk [vmem:[#allocation2 + $0xf8] sm:$0x1] %vm740, 0.0
    %771 = vst.msk [vmem:[#allocation2 + $0x108] sm:$0x1] %vm740, 0.0
    %772 = vst.msk [vmem:[#allocation2 + $0x128] sm:$0x1] %vm740, 0.0
    %773 = vst.msk [vmem:[#allocation2 + $0x138] sm:$0x1] %vm740, 0.0
    %774 = vst.msk [vmem:[#allocation2 + $0x148] sm:$0x1] %vm740, 0.0
    %775 = vst.msk [vmem:[#allocation2 + $0x158] sm:$0x1] %vm740, 0.0
    %776 = vst.msk [vmem:[#allocation2 + $0x168] sm:$0x1] %vm740, 0.0
    %777 = vst.msk [vmem:[#allocation2 + $0x178] sm:$0x1] %vm740, 0.0
    %778 = vst.msk [vmem:[#allocation2 + $0x188] sm:$0x1] %vm740, 0.0
    %779 = vst.msk [vmem:[#allocation2 + $0x198] sm:$0x1] %vm740, 0.0
    %780 = vst.msk [vmem:[#allocation2 + $0x1b8] sm:$0x1] %vm740, 0.0
    %781 = vst.msk [vmem:[#allocation2 + $0x1c8] sm:$0x1] %vm740, 0.0
    %782 = vst.msk [vmem:[#allocation2 + $0x1d8] sm:$0x1] %vm740, 0.0
    %783 = vst.msk [vmem:[#allocation2 + $0x1e8] sm:$0x1] %vm740, 0.0
    %784 = vst.msk [vmem:[#allocation2 + $0x1f8] sm:$0x1] %vm740, 0.0
    %785 = vst.msk [vmem:[#allocation2 + $0x208] sm:$0x1] %vm740, 0.0
    %786 = vst.msk [vmem:[#allocation2 + $0x218] sm:$0x1] %vm740, 0.0
    %787 = vst.msk [vmem:[#allocation2 + $0x228] sm:$0x1] %vm740, 0.0
    %788 = vst.msk [vmem:[#allocation2 + $0x248] sm:$0x1] %vm740, 0.0
    %789 = vst.msk [vmem:[#allocation2 + $0x258] sm:$0x1] %vm740, 0.0
    %790 = vst.msk [vmem:[#allocation2 + $0x268] sm:$0x1] %vm740, 0.0
    %791 = vst.msk [vmem:[#allocation2 + $0x278] sm:$0x1] %vm740, 0.0
    %792 = vst.msk [vmem:[#allocation2 + $0x288] sm:$0x1] %vm740, 0.0
    %793 = vst.msk [vmem:[#allocation2 + $0x298] sm:$0x1] %vm740, 0.0
    %794 = vst.msk [vmem:[#allocation2 + $0x2a8] sm:$0x1] %vm740, 0.0
    %795 = vst.msk [vmem:[#allocation2 + $0x2b8] sm:$0x1] %vm740, 0.0
    %796 = vst.msk [vmem:[#allocation2 + $0x2d8] sm:$0x1] %vm740, 0.0
    %797 = vst.msk [vmem:[#allocation2 + $0x2e8] sm:$0x1] %vm740, 0.0
    %798 = vst.msk [vmem:[#allocation2 + $0x2f8] sm:$0x1] %vm740, 0.0
    %799 = vst.msk [vmem:[#allocation2 + $0x308] sm:$0x1] %vm740, 0.0
    %800 = vst.msk [vmem:[#allocation2 + $0x318] sm:$0x1] %vm740, 0.0
    %801 = vst.msk [vmem:[#allocation2 + $0x328] sm:$0x1] %vm740, 0.0
    %802 = vst.msk [vmem:[#allocation2 + $0x338] sm:$0x1] %vm740, 0.0
    %803 = vst.msk [vmem:[#allocation2 + $0x348] sm:$0x1] %vm740, 0.0
    %804 = vst.msk [vmem:[#allocation2 + $0x368] sm:$0x1] %vm740, 0.0
    %805 = vst.msk [vmem:[#allocation2 + $0x378] sm:$0x1] %vm740, 0.0
    %806 = vst.msk [vmem:[#allocation2 + $0x388] sm:$0x1] %vm740, 0.0
    %807 = vst.msk [vmem:[#allocation2 + $0x398] sm:$0x1] %vm740, 0.0
    %808 = vst.msk [vmem:[#allocation2 + $0x3a8] sm:$0x1] %vm740, 0.0
    %809 = vst.msk [vmem:[#allocation2 + $0x3b8] sm:$0x1] %vm740, 0.0
    %810 = vst.msk [vmem:[#allocation2 + $0x3c8] sm:$0x1] %vm740, 0.0
    %811 = vst.msk [vmem:[#allocation2 + $0x3d8] sm:$0x1] %vm740, 0.0
    %812 = vst.msk [vmem:[#allocation2 + $0x3f8] sm:$0x1] %vm740, 0.0
    %813 = vst.msk [vmem:[#allocation2 + $0x408] sm:$0x1] %vm740, 0.0
    %814 = vst.msk [vmem:[#allocation2 + $0x418] sm:$0x1] %vm740, 0.0
    %815 = vst.msk [vmem:[#allocation2 + $0x428] sm:$0x1] %vm740, 0.0
    %816 = vst.msk [vmem:[#allocation2 + $0x438] sm:$0x1] %vm740, 0.0
    %817 = vst.msk [vmem:[#allocation2 + $0x448] sm:$0x1] %vm740, 0.0
    %818 = vst.msk [vmem:[#allocation2 + $0x458] sm:$0x1] %vm740, 0.0
    %819 = vst.msk [vmem:[#allocation2 + $0x468] sm:$0x1] %vm740, 0.0
    %820 = vst.msk [vmem:[#allocation2] sm:$0xff] %vm96, %v674
    %821 = vst.msk [vmem:[#allocation2 + $0x10] sm:$0xff] %vm96, %v675
    %822 = vst.msk [vmem:[#allocation2 + $0x20] sm:$0xff] %vm96, %v676
    %823 = vst.msk [vmem:[#allocation2 + $0x30] sm:$0xff] %vm96, %v677
    %824 = vst.msk [vmem:[#allocation2 + $0x40] sm:$0xff] %vm96, %v678
    %825 = vst.msk [vmem:[#allocation2 + $0x50] sm:$0xff] %vm96, %v679
    %826 = vst.msk [vmem:[#allocation2 + $0x60] sm:$0xff] %vm96, %v680
    %827 = vst.msk [vmem:[#allocation2 + $0x70] sm:$0xff] %vm96, %v681
    %828 = vst.msk [vmem:[#allocation2 + $0x90] sm:$0xff] %vm96, %v682
    %829 = vst.msk [vmem:[#allocation2 + $0xa0] sm:$0xff] %vm96, %v683
    %830 = vst.msk [vmem:[#allocation2 + $0xb0] sm:$0xff] %vm96, %v684
    %831 = vst.msk [vmem:[#allocation2 + $0xc0] sm:$0xff] %vm96, %v685
    %832 = vst.msk [vmem:[#allocation2 + $0xd0] sm:$0xff] %vm96, %v686
    %833 = vst.msk [vmem:[#allocation2 + $0xe0] sm:$0xff] %vm96, %v687
    %834 = vst.msk [vmem:[#allocation2 + $0xf0] sm:$0xff] %vm96, %v688
    %835 = vst.msk [vmem:[#allocation2 + $0x100] sm:$0xff] %vm96, %v689
    %s836 = scalar_lea.vmem [#allocation2], 288
    %837 = vst.msk [vmem:[%s836] sm:$0xff] %vm96, %v690
    %838 = vst.msk [vmem:[%s836 + $0x10] sm:$0xff] %vm96, %v691
    %839 = vst.msk [vmem:[%s836 + $0x20] sm:$0xff] %vm96, %v692
    %840 = vst.msk [vmem:[%s836 + $0x30] sm:$0xff] %vm96, %v693
    %841 = vst.msk [vmem:[%s836 + $0x40] sm:$0xff] %vm96, %v694
    %842 = vst.msk [vmem:[%s836 + $0x50] sm:$0xff] %vm96, %v695
    %843 = vst.msk [vmem:[%s836 + $0x60] sm:$0xff] %vm96, %v696
    %844 = vst.msk [vmem:[%s836 + $0x70] sm:$0xff] %vm96, %v697
    %845 = vst.msk [vmem:[%s836 + $0x90] sm:$0xff] %vm96, %v698
    %846 = vst.msk [vmem:[%s836 + $0xa0] sm:$0xff] %vm96, %v699
    %847 = vst.msk [vmem:[%s836 + $0xb0] sm:$0xff] %vm96, %v700
    %848 = vst.msk [vmem:[%s836 + $0xc0] sm:$0xff] %vm96, %v701
    %849 = vst.msk [vmem:[%s836 + $0xd0] sm:$0xff] %vm96, %v702
    %850 = vst.msk [vmem:[%s836 + $0xe0] sm:$0xff] %vm96, %v703
    %851 = vst.msk [vmem:[%s836 + $0xf0] sm:$0xff] %vm96, %v704
    %852 = vst.msk [vmem:[%s836 + $0x100] sm:$0xff] %vm96, %v705
    %s853 = scalar_lea.vmem [#allocation2], 576
    %854 = vst.msk [vmem:[%s853] sm:$0xff] %vm96, %v706
    %855 = vst.msk [vmem:[%s853 + $0x10] sm:$0xff] %vm96, %v707
    %856 = vst.msk [vmem:[%s853 + $0x20] sm:$0xff] %vm96, %v708
    %857 = vst.msk [vmem:[%s853 + $0x30] sm:$0xff] %vm96, %v709
    %858 = vst.msk [vmem:[%s853 + $0x40] sm:$0xff] %vm96, %v710
    %859 = vst.msk [vmem:[%s853 + $0x50] sm:$0xff] %vm96, %v711
    %860 = vst.msk [vmem:[%s853 + $0x60] sm:$0xff] %vm96, %v712
    %861 = vst.msk [vmem:[%s853 + $0x70] sm:$0xff] %vm96, %v713
    %862 = vst.msk [vmem:[%s853 + $0x90] sm:$0xff] %vm96, %v714
    %863 = vst.msk [vmem:[%s853 + $0xa0] sm:$0xff] %vm96, %v715
    %864 = vst.msk [vmem:[%s853 + $0xb0] sm:$0xff] %vm96, %v716
    %865 = vst.msk [vmem:[%s853 + $0xc0] sm:$0xff] %vm96, %v717
    %866 = vst.msk [vmem:[%s853 + $0xd0] sm:$0xff] %vm96, %v718
    %867 = vst.msk [vmem:[%s853 + $0xe0] sm:$0xff] %vm96, %v719
    %868 = vst.msk [vmem:[%s853 + $0xf0] sm:$0xff] %vm96, %v720
    %869 = vst.msk [vmem:[%s853 + $0x100] sm:$0xff] %vm96, %v721
    %s870 = scalar_lea.vmem [#allocation2], 864
    %871 = vst.msk [vmem:[%s870] sm:$0xff] %vm96, %v722
    %872 = vst.msk [vmem:[%s870 + $0x10] sm:$0xff] %vm96, %v723
    %873 = vst.msk [vmem:[%s870 + $0x20] sm:$0xff] %vm96, %v724
    %874 = vst.msk [vmem:[%s870 + $0x30] sm:$0xff] %vm96, %v725
    %875 = vst.msk [vmem:[%s870 + $0x40] sm:$0xff] %vm96, %v726
    %876 = vst.msk [vmem:[%s870 + $0x50] sm:$0xff] %vm96, %v727
    %877 = vst.msk [vmem:[%s870 + $0x60] sm:$0xff] %vm96, %v728
    %878 = vst.msk [vmem:[%s870 + $0x70] sm:$0xff] %vm96, %v729
    %879 = vst.msk [vmem:[%s870 + $0x90] sm:$0xff] %vm96, %v730
    %880 = vst.msk [vmem:[%s870 + $0xa0] sm:$0xff] %vm96, %v731
    %881 = vst.msk [vmem:[%s870 + $0xb0] sm:$0xff] %vm96, %v732
    %882 = vst.msk [vmem:[%s870 + $0xc0] sm:$0xff] %vm96, %v733
    %883 = vst.msk [vmem:[%s870 + $0xd0] sm:$0xff] %vm96, %v734
    %884 = vst.msk [vmem:[%s870 + $0xe0] sm:$0xff] %vm96, %v735
    %885 = vst.msk [vmem:[%s870 + $0xf0] sm:$0xff] %vm96, %v736
    %886 = vst.msk [vmem:[%s870 + $0x100] sm:$0xff] %vm96, %v737
    %v887 = vld [vmem:[#allocation2] sm:$0xff]
    %v888 = vld [vmem:[#allocation2 + $0x10] sm:$0xff]
    %v889 = vld [vmem:[#allocation2 + $0x20] sm:$0xff]
    %v890 = vld [vmem:[#allocation2 + $0x30] sm:$0xff]
    %v891 = vld [vmem:[#allocation2 + $0x40] sm:$0xff]
    %v892 = vld [vmem:[#allocation2 + $0x50] sm:$0xff]
    %v893 = vld [vmem:[#allocation2 + $0x60] sm:$0xff]
    %v894 = vld [vmem:[#allocation2 + $0x70] sm:$0xff]
    %v895 = vld [vmem:[#allocation2 + $0x90] sm:$0xff]
    %v896 = vld [vmem:[#allocation2 + $0xa0] sm:$0xff]
    %v897 = vld [vmem:[#allocation2 + $0xb0] sm:$0xff]
    %v898 = vld [vmem:[#allocation2 + $0xc0] sm:$0xff]
    %v899 = vld [vmem:[#allocation2 + $0xd0] sm:$0xff]
    %v900 = vld [vmem:[#allocation2 + $0xe0] sm:$0xff]
    %v901 = vld [vmem:[#allocation2 + $0xf0] sm:$0xff]
    %v902 = vld [vmem:[#allocation2 + $0x100] sm:$0xff]
    %903 = vst.msk [vmem:[#allocation3] sm:$0xff] %vm96, %v887
    %904 = vst.msk [vmem:[#allocation3 + $0x8] sm:$0xff] %vm96, %v888
    %905 = vst.msk [vmem:[#allocation3 + $0x10] sm:$0xff] %vm96, %v889
    %906 = vst.msk [vmem:[#allocation3 + $0x18] sm:$0xff] %vm96, %v890
    %907 = vst.msk [vmem:[#allocation3 + $0x20] sm:$0xff] %vm96, %v891
    %908 = vst.msk [vmem:[#allocation3 + $0x28] sm:$0xff] %vm96, %v892
    %909 = vst.msk [vmem:[#allocation3 + $0x30] sm:$0xff] %vm96, %v893
    %910 = vst.msk [vmem:[#allocation3 + $0x38] sm:$0xff] %vm96, %v894
    %911 = vst.msk [vmem:[#allocation3 + $0x40] sm:$0xff] %vm96, %v895
    %912 = vst.msk [vmem:[#allocation3 + $0x48] sm:$0xff] %vm96, %v896
    %913 = vst.msk [vmem:[#allocation3 + $0x50] sm:$0xff] %vm96, %v897
    %914 = vst.msk [vmem:[#allocation3 + $0x58] sm:$0xff] %vm96, %v898
    %915 = vst.msk [vmem:[#allocation3 + $0x60] sm:$0xff] %vm96, %v899
    %916 = vst.msk [vmem:[#allocation3 + $0x68] sm:$0xff] %vm96, %v900
    %917 = vst.msk [vmem:[#allocation3 + $0x70] sm:$0xff] %vm96, %v901
    %918 = vst.msk [vmem:[#allocation3 + $0x78] sm:$0xff] %vm96, %v902
    %v919 = vld [vmem:[%s836] sm:$0xff]
    %v920 = vld [vmem:[%s836 + $0x10] sm:$0xff]
    %v921 = vld [vmem:[%s836 + $0x20] sm:$0xff]
    %v922 = vld [vmem:[%s836 + $0x30] sm:$0xff]
    %v923 = vld [vmem:[%s836 + $0x40] sm:$0xff]
    %v924 = vld [vmem:[%s836 + $0x50] sm:$0xff]
    %v925 = vld [vmem:[%s836 + $0x60] sm:$0xff]
    %v926 = vld [vmem:[%s836 + $0x70] sm:$0xff]
    %v927 = vld [vmem:[%s836 + $0x90] sm:$0xff]
    %v928 = vld [vmem:[%s836 + $0xa0] sm:$0xff]
    %v929 = vld [vmem:[%s836 + $0xb0] sm:$0xff]
    %v930 = vld [vmem:[%s836 + $0xc0] sm:$0xff]
    %v931 = vld [vmem:[%s836 + $0xd0] sm:$0xff]
    %v932 = vld [vmem:[%s836 + $0xe0] sm:$0xff]
    %v933 = vld [vmem:[%s836 + $0xf0] sm:$0xff]
    %v934 = vld [vmem:[%s836 + $0x100] sm:$0xff]
    %951 = vrot.lane.b32.xlu0 %v919, 32
    %v952 = vpop.permute.xlu0 %951
    %953 = vrot.lane.b32.xlu0 %v920, 32
    %v954 = vpop.permute.xlu0 %953
    %955 = vrot.lane.b32.xlu0 %v921, 32
    %v956 = vpop.permute.xlu0 %955
    %957 = vrot.lane.b32.xlu0 %v922, 32
    %v958 = vpop.permute.xlu0 %957
    %959 = vrot.lane.b32.xlu0 %v923, 32
    %v960 = vpop.permute.xlu0 %959
    %961 = vrot.lane.b32.xlu0 %v924, 32
    %v962 = vpop.permute.xlu0 %961
    %963 = vrot.lane.b32.xlu0 %v925, 32
    %v964 = vpop.permute.xlu0 %963
    %965 = vrot.lane.b32.xlu0 %v926, 32
    %v966 = vpop.permute.xlu0 %965
    %967 = vrot.lane.b32.xlu0 %v927, 32
    %v968 = vpop.permute.xlu0 %967
    %969 = vrot.lane.b32.xlu0 %v928, 32
    %v970 = vpop.permute.xlu0 %969
    %971 = vrot.lane.b32.xlu0 %v929, 32
    %v972 = vpop.permute.xlu0 %971
    %973 = vrot.lane.b32.xlu0 %v930, 32
    %v974 = vpop.permute.xlu0 %973
    %975 = vrot.lane.b32.xlu0 %v931, 32
    %v976 = vpop.permute.xlu0 %975
    %977 = vrot.lane.b32.xlu0 %v932, 32
    %v978 = vpop.permute.xlu0 %977
    %979 = vrot.lane.b32.xlu0 %v933, 32
    %v980 = vpop.permute.xlu0 %979
    %981 = vrot.lane.b32.xlu0 %v934, 32
    %v982 = vpop.permute.xlu0 %981
    %vm999 = vcmask 523520
    %1000 = vst.msk [vmem:[#allocation3] sm:$0xff] %vm999, %v952
    %1001 = vst.msk [vmem:[#allocation3 + $0x8] sm:$0xff] %vm999, %v954
    %1002 = vst.msk [vmem:[#allocation3 + $0x10] sm:$0xff] %vm999, %v956
    %1003 = vst.msk [vmem:[#allocation3 + $0x18] sm:$0xff] %vm999, %v958
    %1004 = vst.msk [vmem:[#allocation3 + $0x20] sm:$0xff] %vm999, %v960
    %1005 = vst.msk [vmem:[#allocation3 + $0x28] sm:$0xff] %vm999, %v962
    %1006 = vst.msk [vmem:[#allocation3 + $0x30] sm:$0xff] %vm999, %v964
    %1007 = vst.msk [vmem:[#allocation3 + $0x38] sm:$0xff] %vm999, %v966
    %1008 = vst.msk [vmem:[#allocation3 + $0x40] sm:$0xff] %vm999, %v968
    %1009 = vst.msk [vmem:[#allocation3 + $0x48] sm:$0xff] %vm999, %v970
    %1010 = vst.msk [vmem:[#allocation3 + $0x50] sm:$0xff] %vm999, %v972
    %1011 = vst.msk [vmem:[#allocation3 + $0x58] sm:$0xff] %vm999, %v974
    %1012 = vst.msk [vmem:[#allocation3 + $0x60] sm:$0xff] %vm999, %v976
    %1013 = vst.msk [vmem:[#allocation3 + $0x68] sm:$0xff] %vm999, %v978
    %1014 = vst.msk [vmem:[#allocation3 + $0x70] sm:$0xff] %vm999, %v980
    %1015 = vst.msk [vmem:[#allocation3 + $0x78] sm:$0xff] %vm999, %v982
    %v1016 = vld [vmem:[%s853] sm:$0xff]
    %v1017 = vld [vmem:[%s853 + $0x10] sm:$0xff]
    %v1018 = vld [vmem:[%s853 + $0x20] sm:$0xff]
    %v1019 = vld [vmem:[%s853 + $0x30] sm:$0xff]
    %v1020 = vld [vmem:[%s853 + $0x40] sm:$0xff]
    %v1021 = vld [vmem:[%s853 + $0x50] sm:$0xff]
    %v1022 = vld [vmem:[%s853 + $0x60] sm:$0xff]
    %v1023 = vld [vmem:[%s853 + $0x70] sm:$0xff]
    %v1024 = vld [vmem:[%s853 + $0x90] sm:$0xff]
    %v1025 = vld [vmem:[%s853 + $0xa0] sm:$0xff]
    %v1026 = vld [vmem:[%s853 + $0xb0] sm:$0xff]
    %v1027 = vld [vmem:[%s853 + $0xc0] sm:$0xff]
    %v1028 = vld [vmem:[%s853 + $0xd0] sm:$0xff]
    %v1029 = vld [vmem:[%s853 + $0xe0] sm:$0xff]
    %v1030 = vld [vmem:[%s853 + $0xf0] sm:$0xff]
    %v1031 = vld [vmem:[%s853 + $0x100] sm:$0xff]
    %1048 = vrot.lane.b32.xlu0 %v1016, 64
    %v1049 = vpop.permute.xlu0 %1048
    %1050 = vrot.lane.b32.xlu0 %v1017, 64
    %v1051 = vpop.permute.xlu0 %1050
    %1052 = vrot.lane.b32.xlu0 %v1018, 64
    %v1053 = vpop.permute.xlu0 %1052
    %1054 = vrot.lane.b32.xlu0 %v1019, 64
    %v1055 = vpop.permute.xlu0 %1054
    %1056 = vrot.lane.b32.xlu0 %v1020, 64
    %v1057 = vpop.permute.xlu0 %1056
    %1058 = vrot.lane.b32.xlu0 %v1021, 64
    %v1059 = vpop.permute.xlu0 %1058
    %1060 = vrot.lane.b32.xlu0 %v1022, 64
    %v1061 = vpop.permute.xlu0 %1060
    %1062 = vrot.lane.b32.xlu0 %v1023, 64
    %v1063 = vpop.permute.xlu0 %1062
    %1064 = vrot.lane.b32.xlu0 %v1024, 64
    %v1065 = vpop.permute.xlu0 %1064
    %1066 = vrot.lane.b32.xlu0 %v1025, 64
    %v1067 = vpop.permute.xlu0 %1066
    %1068 = vrot.lane.b32.xlu0 %v1026, 64
    %v1069 = vpop.permute.xlu0 %1068
    %1070 = vrot.lane.b32.xlu0 %v1027, 64
    %v1071 = vpop.permute.xlu0 %1070
    %1072 = vrot.lane.b32.xlu0 %v1028, 64
    %v1073 = vpop.permute.xlu0 %1072
    %1074 = vrot.lane.b32.xlu0 %v1029, 64
    %v1075 = vpop.permute.xlu0 %1074
    %1076 = vrot.lane.b32.xlu0 %v1030, 64
    %v1077 = vpop.permute.xlu0 %1076
    %1078 = vrot.lane.b32.xlu0 %v1031, 64
    %v1079 = vpop.permute.xlu0 %1078
    %vm1096 = vcmask 785920
    %1097 = vst.msk [vmem:[#allocation3] sm:$0xff] %vm1096, %v1049
    %1098 = vst.msk [vmem:[#allocation3 + $0x8] sm:$0xff] %vm1096, %v1051
    %1099 = vst.msk [vmem:[#allocation3 + $0x10] sm:$0xff] %vm1096, %v1053
    %1100 = vst.msk [vmem:[#allocation3 + $0x18] sm:$0xff] %vm1096, %v1055
    %1101 = vst.msk [vmem:[#allocation3 + $0x20] sm:$0xff] %vm1096, %v1057
    %1102 = vst.msk [vmem:[#allocation3 + $0x28] sm:$0xff] %vm1096, %v1059
    %1103 = vst.msk [vmem:[#allocation3 + $0x30] sm:$0xff] %vm1096, %v1061
    %1104 = vst.msk [vmem:[#allocation3 + $0x38] sm:$0xff] %vm1096, %v1063
    %1105 = vst.msk [vmem:[#allocation3 + $0x40] sm:$0xff] %vm1096, %v1065
    %1106 = vst.msk [vmem:[#allocation3 + $0x48] sm:$0xff] %vm1096, %v1067
    %1107 = vst.msk [vmem:[#allocation3 + $0x50] sm:$0xff] %vm1096, %v1069
    %1108 = vst.msk [vmem:[#allocation3 + $0x58] sm:$0xff] %vm1096, %v1071
    %1109 = vst.msk [vmem:[#allocation3 + $0x60] sm:$0xff] %vm1096, %v1073
    %1110 = vst.msk [vmem:[#allocation3 + $0x68] sm:$0xff] %vm1096, %v1075
    %1111 = vst.msk [vmem:[#allocation3 + $0x70] sm:$0xff] %vm1096, %v1077
    %1112 = vst.msk [vmem:[#allocation3 + $0x78] sm:$0xff] %vm1096, %v1079
    %v1113 = vld [vmem:[%s870] sm:$0xff]
    %v1114 = vld [vmem:[%s870 + $0x10] sm:$0xff]
    %v1115 = vld [vmem:[%s870 + $0x20] sm:$0xff]
    %v1116 = vld [vmem:[%s870 + $0x30] sm:$0xff]
    %v1117 = vld [vmem:[%s870 + $0x40] sm:$0xff]
    %v1118 = vld [vmem:[%s870 + $0x50] sm:$0xff]
    %v1119 = vld [vmem:[%s870 + $0x60] sm:$0xff]
    %v1120 = vld [vmem:[%s870 + $0x70] sm:$0xff]
    %v1121 = vld [vmem:[%s870 + $0x90] sm:$0xff]
    %v1122 = vld [vmem:[%s870 + $0xa0] sm:$0xff]
    %v1123 = vld [vmem:[%s870 + $0xb0] sm:$0xff]
    %v1124 = vld [vmem:[%s870 + $0xc0] sm:$0xff]
    %v1125 = vld [vmem:[%s870 + $0xd0] sm:$0xff]
    %v1126 = vld [vmem:[%s870 + $0xe0] sm:$0xff]
    %v1127 = vld [vmem:[%s870 + $0xf0] sm:$0xff]
    %v1128 = vld [vmem:[%s870 + $0x100] sm:$0xff]
    %1145 = vrot.lane.b32.xlu0 %v1113, 96
    %v1146 = vpop.permute.xlu0 %1145
    %1147 = vrot.lane.b32.xlu0 %v1114, 96
    %v1148 = vpop.permute.xlu0 %1147
    %1149 = vrot.lane.b32.xlu0 %v1115, 96
    %v1150 = vpop.permute.xlu0 %1149
    %1151 = vrot.lane.b32.xlu0 %v1116, 96
    %v1152 = vpop.permute.xlu0 %1151
    %1153 = vrot.lane.b32.xlu0 %v1117, 96
    %v1154 = vpop.permute.xlu0 %1153
    %1155 = vrot.lane.b32.xlu0 %v1118, 96
    %v1156 = vpop.permute.xlu0 %1155
    %1157 = vrot.lane.b32.xlu0 %v1119, 96
    %v1158 = vpop.permute.xlu0 %1157
    %1159 = vrot.lane.b32.xlu0 %v1120, 96
    %v1160 = vpop.permute.xlu0 %1159
    %1161 = vrot.lane.b32.xlu0 %v1121, 96
    %v1162 = vpop.permute.xlu0 %1161
    %1163 = vrot.lane.b32.xlu0 %v1122, 96
    %v1164 = vpop.permute.xlu0 %1163
    %1165 = vrot.lane.b32.xlu0 %v1123, 96
    %v1166 = vpop.permute.xlu0 %1165
    %1167 = vrot.lane.b32.xlu0 %v1124, 96
    %v1168 = vpop.permute.xlu0 %1167
    %1169 = vrot.lane.b32.xlu0 %v1125, 96
    %v1170 = vpop.permute.xlu0 %1169
    %1171 = vrot.lane.b32.xlu0 %v1126, 96
    %v1172 = vpop.permute.xlu0 %1171
    %1173 = vrot.lane.b32.xlu0 %v1127, 96
    %v1174 = vpop.permute.xlu0 %1173
    %1175 = vrot.lane.b32.xlu0 %v1128, 96
    %v1176 = vpop.permute.xlu0 %1175
    %vm1193 = vcmask 1048320
    %1194 = vst.msk [vmem:[#allocation3] sm:$0xff] %vm1193, %v1146
    %1195 = vst.msk [vmem:[#allocation3 + $0x8] sm:$0xff] %vm1193, %v1148
    %1196 = vst.msk [vmem:[#allocation3 + $0x10] sm:$0xff] %vm1193, %v1150
    %1197 = vst.msk [vmem:[#allocation3 + $0x18] sm:$0xff] %vm1193, %v1152
    %1198 = vst.msk [vmem:[#allocation3 + $0x20] sm:$0xff] %vm1193, %v1154
    %1199 = vst.msk [vmem:[#allocation3 + $0x28] sm:$0xff] %vm1193, %v1156
    %1200 = vst.msk [vmem:[#allocation3 + $0x30] sm:$0xff] %vm1193, %v1158
    %1201 = vst.msk [vmem:[#allocation3 + $0x38] sm:$0xff] %vm1193, %v1160
    %1202 = vst.msk [vmem:[#allocation3 + $0x40] sm:$0xff] %vm1193, %v1162
    %1203 = vst.msk [vmem:[#allocation3 + $0x48] sm:$0xff] %vm1193, %v1164
    %1204 = vst.msk [vmem:[#allocation3 + $0x50] sm:$0xff] %vm1193, %v1166
    %1205 = vst.msk [vmem:[#allocation3 + $0x58] sm:$0xff] %vm1193, %v1168
    %1206 = vst.msk [vmem:[#allocation3 + $0x60] sm:$0xff] %vm1193, %v1170
    %1207 = vst.msk [vmem:[#allocation3 + $0x68] sm:$0xff] %vm1193, %v1172
    %1208 = vst.msk [vmem:[#allocation3 + $0x70] sm:$0xff] %vm1193, %v1174
    %1209 = vst.msk [vmem:[#allocation3 + $0x78] sm:$0xff] %vm1193, %v1176
    %v1210 = vld [vmem:[%s836] sm:$0xff]
    %v1211 = vld [vmem:[%s836 + $0x10] sm:$0xff]
    %v1212 = vld [vmem:[%s836 + $0x20] sm:$0xff]
    %v1213 = vld [vmem:[%s836 + $0x30] sm:$0xff]
    %v1214 = vld [vmem:[%s836 + $0x40] sm:$0xff]
    %v1215 = vld [vmem:[%s836 + $0x50] sm:$0xff]
    %v1216 = vld [vmem:[%s836 + $0x60] sm:$0xff]
    %v1217 = vld [vmem:[%s836 + $0x70] sm:$0xff]
    %v1218 = vld [vmem:[%s836 + $0x90] sm:$0xff]
    %v1219 = vld [vmem:[%s836 + $0xa0] sm:$0xff]
    %v1220 = vld [vmem:[%s836 + $0xb0] sm:$0xff]
    %v1221 = vld [vmem:[%s836 + $0xc0] sm:$0xff]
    %v1222 = vld [vmem:[%s836 + $0xd0] sm:$0xff]
    %v1223 = vld [vmem:[%s836 + $0xe0] sm:$0xff]
    %v1224 = vld [vmem:[%s836 + $0xf0] sm:$0xff]
    %v1225 = vld [vmem:[%s836 + $0x100] sm:$0xff]
    %1226 = vst.msk [vmem:[#allocation3 + $0x80] sm:$0xff] %vm96, %v1210
    %1227 = vst.msk [vmem:[#allocation3 + $0x88] sm:$0xff] %vm96, %v1211
    %1228 = vst.msk [vmem:[#allocation3 + $0x90] sm:$0xff] %vm96, %v1212
    %1229 = vst.msk [vmem:[#allocation3 + $0x98] sm:$0xff] %vm96, %v1213
    %1230 = vst.msk [vmem:[#allocation3 + $0xa0] sm:$0xff] %vm96, %v1214
    %1231 = vst.msk [vmem:[#allocation3 + $0xa8] sm:$0xff] %vm96, %v1215
    %1232 = vst.msk [vmem:[#allocation3 + $0xb0] sm:$0xff] %vm96, %v1216
    %1233 = vst.msk [vmem:[#allocation3 + $0xb8] sm:$0xff] %vm96, %v1217
    %1234 = vst.msk [vmem:[#allocation3 + $0xc0] sm:$0xff] %vm96, %v1218
    %1235 = vst.msk [vmem:[#allocation3 + $0xc8] sm:$0xff] %vm96, %v1219
    %1236 = vst.msk [vmem:[#allocation3 + $0xd0] sm:$0xff] %vm96, %v1220
    %1237 = vst.msk [vmem:[#allocation3 + $0xd8] sm:$0xff] %vm96, %v1221
    %1238 = vst.msk [vmem:[#allocation3 + $0xe0] sm:$0xff] %vm96, %v1222
    %1239 = vst.msk [vmem:[#allocation3 + $0xe8] sm:$0xff] %vm96, %v1223
    %1240 = vst.msk [vmem:[#allocation3 + $0xf0] sm:$0xff] %vm96, %v1224
    %1241 = vst.msk [vmem:[#allocation3 + $0xf8] sm:$0xff] %vm96, %v1225
    %v1242 = vld [vmem:[#allocation2 + $0x1] sm:$0xff]
    %v1243 = vld [vmem:[#allocation2 + $0x11] sm:$0xff]
    %v1244 = vld [vmem:[#allocation2 + $0x21] sm:$0xff]
    %v1245 = vld [vmem:[#allocation2 + $0x31] sm:$0xff]
    %v1246 = vld [vmem:[#allocation2 + $0x41] sm:$0xff]
    %v1247 = vld [vmem:[#allocation2 + $0x51] sm:$0xff]
    %v1248 = vld [vmem:[#allocation2 + $0x61] sm:$0xff]
    %v1249 = vld [vmem:[#allocation2 + $0x71] sm:$0xff]
    %v1250 = vld [vmem:[#allocation2 + $0x91] sm:$0xff]
    %v1251 = vld [vmem:[#allocation2 + $0xa1] sm:$0xff]
    %v1252 = vld [vmem:[#allocation2 + $0xb1] sm:$0xff]
    %v1253 = vld [vmem:[#allocation2 + $0xc1] sm:$0xff]
    %v1254 = vld [vmem:[#allocation2 + $0xd1] sm:$0xff]
    %v1255 = vld [vmem:[#allocation2 + $0xe1] sm:$0xff]
    %v1256 = vld [vmem:[#allocation2 + $0xf1] sm:$0xff]
    %v1257 = vld [vmem:[#allocation2 + $0x101] sm:$0xff]
    %1274 = vrot.lane.b32.xlu0 %v1242, 32
    %v1275 = vpop.permute.xlu0 %1274
    %1276 = vrot.lane.b32.xlu0 %v1243, 32
    %v1277 = vpop.permute.xlu0 %1276
    %1278 = vrot.lane.b32.xlu0 %v1244, 32
    %v1279 = vpop.permute.xlu0 %1278
    %1280 = vrot.lane.b32.xlu0 %v1245, 32
    %v1281 = vpop.permute.xlu0 %1280
    %1282 = vrot.lane.b32.xlu0 %v1246, 32
    %v1283 = vpop.permute.xlu0 %1282
    %1284 = vrot.lane.b32.xlu0 %v1247, 32
    %v1285 = vpop.permute.xlu0 %1284
    %1286 = vrot.lane.b32.xlu0 %v1248, 32
    %v1287 = vpop.permute.xlu0 %1286
    %1288 = vrot.lane.b32.xlu0 %v1249, 32
    %v1289 = vpop.permute.xlu0 %1288
    %1290 = vrot.lane.b32.xlu0 %v1250, 32
    %v1291 = vpop.permute.xlu0 %1290
    %1292 = vrot.lane.b32.xlu0 %v1251, 32
    %v1293 = vpop.permute.xlu0 %1292
    %1294 = vrot.lane.b32.xlu0 %v1252, 32
    %v1295 = vpop.permute.xlu0 %1294
    %1296 = vrot.lane.b32.xlu0 %v1253, 32
    %v1297 = vpop.permute.xlu0 %1296
    %1298 = vrot.lane.b32.xlu0 %v1254, 32
    %v1299 = vpop.permute.xlu0 %1298
    %1300 = vrot.lane.b32.xlu0 %v1255, 32
    %v1301 = vpop.permute.xlu0 %1300
    %1302 = vrot.lane.b32.xlu0 %v1256, 32
    %v1303 = vpop.permute.xlu0 %1302
    %1304 = vrot.lane.b32.xlu0 %v1257, 32
    %v1305 = vpop.permute.xlu0 %1304
    %1322 = vst.msk [vmem:[#allocation3 + $0x80] sm:$0xff] %vm999, %v1275
    %1323 = vst.msk [vmem:[#allocation3 + $0x88] sm:$0xff] %vm999, %v1277
    %1324 = vst.msk [vmem:[#allocation3 + $0x90] sm:$0xff] %vm999, %v1279
    %1325 = vst.msk [vmem:[#allocation3 + $0x98] sm:$0xff] %vm999, %v1281
    %1326 = vst.msk [vmem:[#allocation3 + $0xa0] sm:$0xff] %vm999, %v1283
    %1327 = vst.msk [vmem:[#allocation3 + $0xa8] sm:$0xff] %vm999, %v1285
    %1328 = vst.msk [vmem:[#allocation3 + $0xb0] sm:$0xff] %vm999, %v1287
    %1329 = vst.msk [vmem:[#allocation3 + $0xb8] sm:$0xff] %vm999, %v1289
    %1330 = vst.msk [vmem:[#allocation3 + $0xc0] sm:$0xff] %vm999, %v1291
    %1331 = vst.msk [vmem:[#allocation3 + $0xc8] sm:$0xff] %vm999, %v1293
    %1332 = vst.msk [vmem:[#allocation3 + $0xd0] sm:$0xff] %vm999, %v1295
    %1333 = vst.msk [vmem:[#allocation3 + $0xd8] sm:$0xff] %vm999, %v1297
    %1334 = vst.msk [vmem:[#allocation3 + $0xe0] sm:$0xff] %vm999, %v1299
    %1335 = vst.msk [vmem:[#allocation3 + $0xe8] sm:$0xff] %vm999, %v1301
    %1336 = vst.msk [vmem:[#allocation3 + $0xf0] sm:$0xff] %vm999, %v1303
    %1337 = vst.msk [vmem:[#allocation3 + $0xf8] sm:$0xff] %vm999, %v1305
    %v1338 = vld [vmem:[%s870] sm:$0xff]
    %v1339 = vld [vmem:[%s870 + $0x10] sm:$0xff]
    %v1340 = vld [vmem:[%s870 + $0x20] sm:$0xff]
    %v1341 = vld [vmem:[%s870 + $0x30] sm:$0xff]
    %v1342 = vld [vmem:[%s870 + $0x40] sm:$0xff]
    %v1343 = vld [vmem:[%s870 + $0x50] sm:$0xff]
    %v1344 = vld [vmem:[%s870 + $0x60] sm:$0xff]
    %v1345 = vld [vmem:[%s870 + $0x70] sm:$0xff]
    %v1346 = vld [vmem:[%s870 + $0x90] sm:$0xff]
    %v1347 = vld [vmem:[%s870 + $0xa0] sm:$0xff]
    %v1348 = vld [vmem:[%s870 + $0xb0] sm:$0xff]
    %v1349 = vld [vmem:[%s870 + $0xc0] sm:$0xff]
    %v1350 = vld [vmem:[%s870 + $0xd0] sm:$0xff]
    %v1351 = vld [vmem:[%s870 + $0xe0] sm:$0xff]
    %v1352 = vld [vmem:[%s870 + $0xf0] sm:$0xff]
    %v1353 = vld [vmem:[%s870 + $0x100] sm:$0xff]
    %1370 = vrot.lane.b32.xlu0 %v1338, 64
    %v1371 = vpop.permute.xlu0 %1370
    %1372 = vrot.lane.b32.xlu0 %v1339, 64
    %v1373 = vpop.permute.xlu0 %1372
    %1374 = vrot.lane.b32.xlu0 %v1340, 64
    %v1375 = vpop.permute.xlu0 %1374
    %1376 = vrot.lane.b32.xlu0 %v1341, 64
    %v1377 = vpop.permute.xlu0 %1376
    %1378 = vrot.lane.b32.xlu0 %v1342, 64
    %v1379 = vpop.permute.xlu0 %1378
    %1380 = vrot.lane.b32.xlu0 %v1343, 64
    %v1381 = vpop.permute.xlu0 %1380
    %1382 = vrot.lane.b32.xlu0 %v1344, 64
    %v1383 = vpop.permute.xlu0 %1382
    %1384 = vrot.lane.b32.xlu0 %v1345, 64
    %v1385 = vpop.permute.xlu0 %1384
    %1386 = vrot.lane.b32.xlu0 %v1346, 64
    %v1387 = vpop.permute.xlu0 %1386
    %1388 = vrot.lane.b32.xlu0 %v1347, 64
    %v1389 = vpop.permute.xlu0 %1388
    %1390 = vrot.lane.b32.xlu0 %v1348, 64
    %v1391 = vpop.permute.xlu0 %1390
    %1392 = vrot.lane.b32.xlu0 %v1349, 64
    %v1393 = vpop.permute.xlu0 %1392
    %1394 = vrot.lane.b32.xlu0 %v1350, 64
    %v1395 = vpop.permute.xlu0 %1394
    %1396 = vrot.lane.b32.xlu0 %v1351, 64
    %v1397 = vpop.permute.xlu0 %1396
    %1398 = vrot.lane.b32.xlu0 %v1352, 64
    %v1399 = vpop.permute.xlu0 %1398
    %1400 = vrot.lane.b32.xlu0 %v1353, 64
    %v1401 = vpop.permute.xlu0 %1400
    %1418 = vst.msk [vmem:[#allocation3 + $0x80] sm:$0xff] %vm1096, %v1371
    %1419 = vst.msk [vmem:[#allocation3 + $0x88] sm:$0xff] %vm1096, %v1373
    %1420 = vst.msk [vmem:[#allocation3 + $0x90] sm:$0xff] %vm1096, %v1375
    %1421 = vst.msk [vmem:[#allocation3 + $0x98] sm:$0xff] %vm1096, %v1377
    %1422 = vst.msk [vmem:[#allocation3 + $0xa0] sm:$0xff] %vm1096, %v1379
    %1423 = vst.msk [vmem:[#allocation3 + $0xa8] sm:$0xff] %vm1096, %v1381
    %1424 = vst.msk [vmem:[#allocation3 + $0xb0] sm:$0xff] %vm1096, %v1383
    %1425 = vst.msk [vmem:[#allocation3 + $0xb8] sm:$0xff] %vm1096, %v1385
    %1426 = vst.msk [vmem:[#allocation3 + $0xc0] sm:$0xff] %vm1096, %v1387
    %1427 = vst.msk [vmem:[#allocation3 + $0xc8] sm:$0xff] %vm1096, %v1389
    %1428 = vst.msk [vmem:[#allocation3 + $0xd0] sm:$0xff] %vm1096, %v1391
    %1429 = vst.msk [vmem:[#allocation3 + $0xd8] sm:$0xff] %vm1096, %v1393
    %1430 = vst.msk [vmem:[#allocation3 + $0xe0] sm:$0xff] %vm1096, %v1395
    %1431 = vst.msk [vmem:[#allocation3 + $0xe8] sm:$0xff] %vm1096, %v1397
    %1432 = vst.msk [vmem:[#allocation3 + $0xf0] sm:$0xff] %vm1096, %v1399
    %1433 = vst.msk [vmem:[#allocation3 + $0xf8] sm:$0xff] %vm1096, %v1401
    %v1434 = vld [vmem:[%s853 + $0x1] sm:$0xff]
    %v1435 = vld [vmem:[%s853 + $0x11] sm:$0xff]
    %v1436 = vld [vmem:[%s853 + $0x21] sm:$0xff]
    %v1437 = vld [vmem:[%s853 + $0x31] sm:$0xff]
    %v1438 = vld [vmem:[%s853 + $0x41] sm:$0xff]
    %v1439 = vld [vmem:[%s853 + $0x51] sm:$0xff]
    %v1440 = vld [vmem:[%s853 + $0x61] sm:$0xff]
    %v1441 = vld [vmem:[%s853 + $0x71] sm:$0xff]
    %v1442 = vld [vmem:[%s853 + $0x91] sm:$0xff]
    %v1443 = vld [vmem:[%s853 + $0xa1] sm:$0xff]
    %v1444 = vld [vmem:[%s853 + $0xb1] sm:$0xff]
    %v1445 = vld [vmem:[%s853 + $0xc1] sm:$0xff]
    %v1446 = vld [vmem:[%s853 + $0xd1] sm:$0xff]
    %v1447 = vld [vmem:[%s853 + $0xe1] sm:$0xff]
    %v1448 = vld [vmem:[%s853 + $0xf1] sm:$0xff]
    %v1449 = vld [vmem:[%s853 + $0x101] sm:$0xff]
    %1466 = vrot.lane.b32.xlu0 %v1434, 96
    %v1467 = vpop.permute.xlu0 %1466
    %1468 = vrot.lane.b32.xlu0 %v1435, 96
    %v1469 = vpop.permute.xlu0 %1468
    %1470 = vrot.lane.b32.xlu0 %v1436, 96
    %v1471 = vpop.permute.xlu0 %1470
    %1472 = vrot.lane.b32.xlu0 %v1437, 96
    %v1473 = vpop.permute.xlu0 %1472
    %1474 = vrot.lane.b32.xlu0 %v1438, 96
    %v1475 = vpop.permute.xlu0 %1474
    %1476 = vrot.lane.b32.xlu0 %v1439, 96
    %v1477 = vpop.permute.xlu0 %1476
    %1478 = vrot.lane.b32.xlu0 %v1440, 96
    %v1479 = vpop.permute.xlu0 %1478
    %1480 = vrot.lane.b32.xlu0 %v1441, 96
    %v1481 = vpop.permute.xlu0 %1480
    %1482 = vrot.lane.b32.xlu0 %v1442, 96
    %v1483 = vpop.permute.xlu0 %1482
    %1484 = vrot.lane.b32.xlu0 %v1443, 96
    %v1485 = vpop.permute.xlu0 %1484
    %1486 = vrot.lane.b32.xlu0 %v1444, 96
    %v1487 = vpop.permute.xlu0 %1486
    %1488 = vrot.lane.b32.xlu0 %v1445, 96
    %v1489 = vpop.permute.xlu0 %1488
    %1490 = vrot.lane.b32.xlu0 %v1446, 96
    %v1491 = vpop.permute.xlu0 %1490
    %1492 = vrot.lane.b32.xlu0 %v1447, 96
    %v1493 = vpop.permute.xlu0 %1492
    %1494 = vrot.lane.b32.xlu0 %v1448, 96
    %v1495 = vpop.permute.xlu0 %1494
    %1496 = vrot.lane.b32.xlu0 %v1449, 96
    %v1497 = vpop.permute.xlu0 %1496
    %1514 = vst.msk [vmem:[#allocation3 + $0x80] sm:$0xff] %vm1193, %v1467
    %1515 = vst.msk [vmem:[#allocation3 + $0x88] sm:$0xff] %vm1193, %v1469
    %1516 = vst.msk [vmem:[#allocation3 + $0x90] sm:$0xff] %vm1193, %v1471
    %1517 = vst.msk [vmem:[#allocation3 + $0x98] sm:$0xff] %vm1193, %v1473
    %1518 = vst.msk [vmem:[#allocation3 + $0xa0] sm:$0xff] %vm1193, %v1475
    %1519 = vst.msk [vmem:[#allocation3 + $0xa8] sm:$0xff] %vm1193, %v1477
    %1520 = vst.msk [vmem:[#allocation3 + $0xb0] sm:$0xff] %vm1193, %v1479
    %1521 = vst.msk [vmem:[#allocation3 + $0xb8] sm:$0xff] %vm1193, %v1481
    %1522 = vst.msk [vmem:[#allocation3 + $0xc0] sm:$0xff] %vm1193, %v1483
    %1523 = vst.msk [vmem:[#allocation3 + $0xc8] sm:$0xff] %vm1193, %v1485
    %1524 = vst.msk [vmem:[#allocation3 + $0xd0] sm:$0xff] %vm1193, %v1487
    %1525 = vst.msk [vmem:[#allocation3 + $0xd8] sm:$0xff] %vm1193, %v1489
    %1526 = vst.msk [vmem:[#allocation3 + $0xe0] sm:$0xff] %vm1193, %v1491
    %1527 = vst.msk [vmem:[#allocation3 + $0xe8] sm:$0xff] %vm1193, %v1493
    %1528 = vst.msk [vmem:[#allocation3 + $0xf0] sm:$0xff] %vm1193, %v1495
    %1529 = vst.msk [vmem:[#allocation3 + $0xf8] sm:$0xff] %vm1193, %v1497
    %v1530 = vld [vmem:[%s853] sm:$0xff]
    %v1531 = vld [vmem:[%s853 + $0x10] sm:$0xff]
    %v1532 = vld [vmem:[%s853 + $0x20] sm:$0xff]
    %v1533 = vld [vmem:[%s853 + $0x30] sm:$0xff]
    %v1534 = vld [vmem:[%s853 + $0x40] sm:$0xff]
    %v1535 = vld [vmem:[%s853 + $0x50] sm:$0xff]
    %v1536 = vld [vmem:[%s853 + $0x60] sm:$0xff]
    %v1537 = vld [vmem:[%s853 + $0x70] sm:$0xff]
    %v1538 = vld [vmem:[%s853 + $0x90] sm:$0xff]
    %v1539 = vld [vmem:[%s853 + $0xa0] sm:$0xff]
    %v1540 = vld [vmem:[%s853 + $0xb0] sm:$0xff]
    %v1541 = vld [vmem:[%s853 + $0xc0] sm:$0xff]
    %v1542 = vld [vmem:[%s853 + $0xd0] sm:$0xff]
    %v1543 = vld [vmem:[%s853 + $0xe0] sm:$0xff]
    %v1544 = vld [vmem:[%s853 + $0xf0] sm:$0xff]
    %v1545 = vld [vmem:[%s853 + $0x100] sm:$0xff]
    %1546 = vst.msk [vmem:[#allocation3 + $0x100] sm:$0xff] %vm96, %v1530
    %1547 = vst.msk [vmem:[#allocation3 + $0x108] sm:$0xff] %vm96, %v1531
    %1548 = vst.msk [vmem:[#allocation3 + $0x110] sm:$0xff] %vm96, %v1532
    %1549 = vst.msk [vmem:[#allocation3 + $0x118] sm:$0xff] %vm96, %v1533
    %1550 = vst.msk [vmem:[#allocation3 + $0x120] sm:$0xff] %vm96, %v1534
    %1551 = vst.msk [vmem:[#allocation3 + $0x128] sm:$0xff] %vm96, %v1535
    %1552 = vst.msk [vmem:[#allocation3 + $0x130] sm:$0xff] %vm96, %v1536
    %1553 = vst.msk [vmem:[#allocation3 + $0x138] sm:$0xff] %vm96, %v1537
    %1554 = vst.msk [vmem:[#allocation3 + $0x140] sm:$0xff] %vm96, %v1538
    %1555 = vst.msk [vmem:[#allocation3 + $0x148] sm:$0xff] %vm96, %v1539
    %1556 = vst.msk [vmem:[#allocation3 + $0x150] sm:$0xff] %vm96, %v1540
    %1557 = vst.msk [vmem:[#allocation3 + $0x158] sm:$0xff] %vm96, %v1541
    %1558 = vst.msk [vmem:[#allocation3 + $0x160] sm:$0xff] %vm96, %v1542
    %1559 = vst.msk [vmem:[#allocation3 + $0x168] sm:$0xff] %vm96, %v1543
    %1560 = vst.msk [vmem:[#allocation3 + $0x170] sm:$0xff] %vm96, %v1544
    %1561 = vst.msk [vmem:[#allocation3 + $0x178] sm:$0xff] %vm96, %v1545
    %v1562 = vld [vmem:[%s870] sm:$0xff]
    %v1563 = vld [vmem:[%s870 + $0x10] sm:$0xff]
    %v1564 = vld [vmem:[%s870 + $0x20] sm:$0xff]
    %v1565 = vld [vmem:[%s870 + $0x30] sm:$0xff]
    %v1566 = vld [vmem:[%s870 + $0x40] sm:$0xff]
    %v1567 = vld [vmem:[%s870 + $0x50] sm:$0xff]
    %v1568 = vld [vmem:[%s870 + $0x60] sm:$0xff]
    %v1569 = vld [vmem:[%s870 + $0x70] sm:$0xff]
    %v1570 = vld [vmem:[%s870 + $0x90] sm:$0xff]
    %v1571 = vld [vmem:[%s870 + $0xa0] sm:$0xff]
    %v1572 = vld [vmem:[%s870 + $0xb0] sm:$0xff]
    %v1573 = vld [vmem:[%s870 + $0xc0] sm:$0xff]
    %v1574 = vld [vmem:[%s870 + $0xd0] sm:$0xff]
    %v1575 = vld [vmem:[%s870 + $0xe0] sm:$0xff]
    %v1576 = vld [vmem:[%s870 + $0xf0] sm:$0xff]
    %v1577 = vld [vmem:[%s870 + $0x100] sm:$0xff]
    %1594 = vrot.lane.b32.xlu0 %v1562, 32
    %v1595 = vpop.permute.xlu0 %1594
    %1596 = vrot.lane.b32.xlu0 %v1563, 32
    %v1597 = vpop.permute.xlu0 %1596
    %1598 = vrot.lane.b32.xlu0 %v1564, 32
    %v1599 = vpop.permute.xlu0 %1598
    %1600 = vrot.lane.b32.xlu0 %v1565, 32
    %v1601 = vpop.permute.xlu0 %1600
    %1602 = vrot.lane.b32.xlu0 %v1566, 32
    %v1603 = vpop.permute.xlu0 %1602
    %1604 = vrot.lane.b32.xlu0 %v1567, 32
    %v1605 = vpop.permute.xlu0 %1604
    %1606 = vrot.lane.b32.xlu0 %v1568, 32
    %v1607 = vpop.permute.xlu0 %1606
    %1608 = vrot.lane.b32.xlu0 %v1569, 32
    %v1609 = vpop.permute.xlu0 %1608
    %1610 = vrot.lane.b32.xlu0 %v1570, 32
    %v1611 = vpop.permute.xlu0 %1610
    %1612 = vrot.lane.b32.xlu0 %v1571, 32
    %v1613 = vpop.permute.xlu0 %1612
    %1614 = vrot.lane.b32.xlu0 %v1572, 32
    %v1615 = vpop.permute.xlu0 %1614
    %1616 = vrot.lane.b32.xlu0 %v1573, 32
    %v1617 = vpop.permute.xlu0 %1616
    %1618 = vrot.lane.b32.xlu0 %v1574, 32
    %v1619 = vpop.permute.xlu0 %1618
    %1620 = vrot.lane.b32.xlu0 %v1575, 32
    %v1621 = vpop.permute.xlu0 %1620
    %1622 = vrot.lane.b32.xlu0 %v1576, 32
    %v1623 = vpop.permute.xlu0 %1622
    %1624 = vrot.lane.b32.xlu0 %v1577, 32
    %v1625 = vpop.permute.xlu0 %1624
    %1642 = vst.msk [vmem:[#allocation3 + $0x100] sm:$0xff] %vm999, %v1595
    %1643 = vst.msk [vmem:[#allocation3 + $0x108] sm:$0xff] %vm999, %v1597
    %1644 = vst.msk [vmem:[#allocation3 + $0x110] sm:$0xff] %vm999, %v1599
    %1645 = vst.msk [vmem:[#allocation3 + $0x118] sm:$0xff] %vm999, %v1601
    %1646 = vst.msk [vmem:[#allocation3 + $0x120] sm:$0xff] %vm999, %v1603
    %1647 = vst.msk [vmem:[#allocation3 + $0x128] sm:$0xff] %vm999, %v1605
    %1648 = vst.msk [vmem:[#allocation3 + $0x130] sm:$0xff] %vm999, %v1607
    %1649 = vst.msk [vmem:[#allocation3 + $0x138] sm:$0xff] %vm999, %v1609
    %1650 = vst.msk [vmem:[#allocation3 + $0x140] sm:$0xff] %vm999, %v1611
    %1651 = vst.msk [vmem:[#allocation3 + $0x148] sm:$0xff] %vm999, %v1613
    %1652 = vst.msk [vmem:[#allocation3 + $0x150] sm:$0xff] %vm999, %v1615
    %1653 = vst.msk [vmem:[#allocation3 + $0x158] sm:$0xff] %vm999, %v1617
    %1654 = vst.msk [vmem:[#allocation3 + $0x160] sm:$0xff] %vm999, %v1619
    %1655 = vst.msk [vmem:[#allocation3 + $0x168] sm:$0xff] %vm999, %v1621
    %1656 = vst.msk [vmem:[#allocation3 + $0x170] sm:$0xff] %vm999, %v1623
    %1657 = vst.msk [vmem:[#allocation3 + $0x178] sm:$0xff] %vm999, %v1625
    %s1658 = scalar_lea.vmem [#allocation2], 16
    %v1659 = vld [vmem:[%s1658] sm:$0xff]
    %v1660 = vld [vmem:[%s1658 + $0x10] sm:$0xff]
    %v1661 = vld [vmem:[%s1658 + $0x20] sm:$0xff]
    %v1662 = vld [vmem:[%s1658 + $0x30] sm:$0xff]
    %v1663 = vld [vmem:[%s1658 + $0x40] sm:$0xff]
    %v1664 = vld [vmem:[%s1658 + $0x50] sm:$0xff]
    %v1665 = vld [vmem:[%s1658 + $0x60] sm:$0xff]
    %v1666 = vld [vmem:[%s1658 + $0x70] sm:$0xff]
    %v1667 = vld [vmem:[%s1658 + $0x90] sm:$0xff]
    %v1668 = vld [vmem:[%s1658 + $0xa0] sm:$0xff]
    %v1669 = vld [vmem:[%s1658 + $0xb0] sm:$0xff]
    %v1670 = vld [vmem:[%s1658 + $0xc0] sm:$0xff]
    %v1671 = vld [vmem:[%s1658 + $0xd0] sm:$0xff]
    %v1672 = vld [vmem:[%s1658 + $0xe0] sm:$0xff]
    %v1673 = vld [vmem:[%s1658 + $0xf0] sm:$0xff]
    %v1674 = vld [vmem:[%s1658 + $0x100] sm:$0xff]
    %1691 = vrot.lane.b32.xlu0 %v1659, 64
    %v1692 = vpop.permute.xlu0 %1691
    %1693 = vrot.lane.b32.xlu0 %v1660, 64
    %v1694 = vpop.permute.xlu0 %1693
    %1695 = vrot.lane.b32.xlu0 %v1661, 64
    %v1696 = vpop.permute.xlu0 %1695
    %1697 = vrot.lane.b32.xlu0 %v1662, 64
    %v1698 = vpop.permute.xlu0 %1697
    %1699 = vrot.lane.b32.xlu0 %v1663, 64
    %v1700 = vpop.permute.xlu0 %1699
    %1701 = vrot.lane.b32.xlu0 %v1664, 64
    %v1702 = vpop.permute.xlu0 %1701
    %1703 = vrot.lane.b32.xlu0 %v1665, 64
    %v1704 = vpop.permute.xlu0 %1703
    %1705 = vrot.lane.b32.xlu0 %v1666, 64
    %v1706 = vpop.permute.xlu0 %1705
    %1707 = vrot.lane.b32.xlu0 %v1667, 64
    %v1708 = vpop.permute.xlu0 %1707
    %1709 = vrot.lane.b32.xlu0 %v1668, 64
    %v1710 = vpop.permute.xlu0 %1709
    %1711 = vrot.lane.b32.xlu0 %v1669, 64
    %v1712 = vpop.permute.xlu0 %1711
    %1713 = vrot.lane.b32.xlu0 %v1670, 64
    %v1714 = vpop.permute.xlu0 %1713
    %1715 = vrot.lane.b32.xlu0 %v1671, 64
    %v1716 = vpop.permute.xlu0 %1715
    %1717 = vrot.lane.b32.xlu0 %v1672, 64
    %v1718 = vpop.permute.xlu0 %1717
    %1719 = vrot.lane.b32.xlu0 %v1673, 64
    %v1720 = vpop.permute.xlu0 %1719
    %1721 = vrot.lane.b32.xlu0 %v1674, 64
    %v1722 = vpop.permute.xlu0 %1721
    %1739 = vst.msk [vmem:[#allocation3 + $0x100] sm:$0xff] %vm1096, %v1692
    %1740 = vst.msk [vmem:[#allocation3 + $0x108] sm:$0xff] %vm1096, %v1694
    %1741 = vst.msk [vmem:[#allocation3 + $0x110] sm:$0xff] %vm1096, %v1696
    %1742 = vst.msk [vmem:[#allocation3 + $0x118] sm:$0xff] %vm1096, %v1698
    %1743 = vst.msk [vmem:[#allocation3 + $0x120] sm:$0xff] %vm1096, %v1700
    %1744 = vst.msk [vmem:[#allocation3 + $0x128] sm:$0xff] %vm1096, %v1702
    %1745 = vst.msk [vmem:[#allocation3 + $0x130] sm:$0xff] %vm1096, %v1704
    %1746 = vst.msk [vmem:[#allocation3 + $0x138] sm:$0xff] %vm1096, %v1706
    %1747 = vst.msk [vmem:[#allocation3 + $0x140] sm:$0xff] %vm1096, %v1708
    %1748 = vst.msk [vmem:[#allocation3 + $0x148] sm:$0xff] %vm1096, %v1710
    %1749 = vst.msk [vmem:[#allocation3 + $0x150] sm:$0xff] %vm1096, %v1712
    %1750 = vst.msk [vmem:[#allocation3 + $0x158] sm:$0xff] %vm1096, %v1714
    %1751 = vst.msk [vmem:[#allocation3 + $0x160] sm:$0xff] %vm1096, %v1716
    %1752 = vst.msk [vmem:[#allocation3 + $0x168] sm:$0xff] %vm1096, %v1718
    %1753 = vst.msk [vmem:[#allocation3 + $0x170] sm:$0xff] %vm1096, %v1720
    %1754 = vst.msk [vmem:[#allocation3 + $0x178] sm:$0xff] %vm1096, %v1722
    %s1755 = scalar_lea.vmem [#allocation2], 304
    %v1756 = vld [vmem:[%s1755] sm:$0xff]
    %v1757 = vld [vmem:[%s1755 + $0x10] sm:$0xff]
    %v1758 = vld [vmem:[%s1755 + $0x20] sm:$0xff]
    %v1759 = vld [vmem:[%s1755 + $0x30] sm:$0xff]
    %v1760 = vld [vmem:[%s1755 + $0x40] sm:$0xff]
    %v1761 = vld [vmem:[%s1755 + $0x50] sm:$0xff]
    %v1762 = vld [vmem:[%s1755 + $0x60] sm:$0xff]
    %v1763 = vld [vmem:[%s1755 + $0x70] sm:$0xff]
    %v1764 = vld [vmem:[%s1755 + $0x90] sm:$0xff]
    %v1765 = vld [vmem:[%s1755 + $0xa0] sm:$0xff]
    %v1766 = vld [vmem:[%s1755 + $0xb0] sm:$0xff]
    %v1767 = vld [vmem:[%s1755 + $0xc0] sm:$0xff]
    %v1768 = vld [vmem:[%s1755 + $0xd0] sm:$0xff]
    %v1769 = vld [vmem:[%s1755 + $0xe0] sm:$0xff]
    %v1770 = vld [vmem:[%s1755 + $0xf0] sm:$0xff]
    %v1771 = vld [vmem:[%s1755 + $0x100] sm:$0xff]
    %1788 = vrot.lane.b32.xlu0 %v1756, 96
    %v1789 = vpop.permute.xlu0 %1788
    %1790 = vrot.lane.b32.xlu0 %v1757, 96
    %v1791 = vpop.permute.xlu0 %1790
    %1792 = vrot.lane.b32.xlu0 %v1758, 96
    %v1793 = vpop.permute.xlu0 %1792
    %1794 = vrot.lane.b32.xlu0 %v1759, 96
    %v1795 = vpop.permute.xlu0 %1794
    %1796 = vrot.lane.b32.xlu0 %v1760, 96
    %v1797 = vpop.permute.xlu0 %1796
    %1798 = vrot.lane.b32.xlu0 %v1761, 96
    %v1799 = vpop.permute.xlu0 %1798
    %1800 = vrot.lane.b32.xlu0 %v1762, 96
    %v1801 = vpop.permute.xlu0 %1800
    %1802 = vrot.lane.b32.xlu0 %v1763, 96
    %v1803 = vpop.permute.xlu0 %1802
    %1804 = vrot.lane.b32.xlu0 %v1764, 96
    %v1805 = vpop.permute.xlu0 %1804
    %1806 = vrot.lane.b32.xlu0 %v1765, 96
    %v1807 = vpop.permute.xlu0 %1806
    %1808 = vrot.lane.b32.xlu0 %v1766, 96
    %v1809 = vpop.permute.xlu0 %1808
    %1810 = vrot.lane.b32.xlu0 %v1767, 96
    %v1811 = vpop.permute.xlu0 %1810
    %1812 = vrot.lane.b32.xlu0 %v1768, 96
    %v1813 = vpop.permute.xlu0 %1812
    %1814 = vrot.lane.b32.xlu0 %v1769, 96
    %v1815 = vpop.permute.xlu0 %1814
    %1816 = vrot.lane.b32.xlu0 %v1770, 96
    %v1817 = vpop.permute.xlu0 %1816
    %1818 = vrot.lane.b32.xlu0 %v1771, 96
    %v1819 = vpop.permute.xlu0 %1818
    %1836 = vst.msk [vmem:[#allocation3 + $0x100] sm:$0xff] %vm1193, %v1789
    %1837 = vst.msk [vmem:[#allocation3 + $0x108] sm:$0xff] %vm1193, %v1791
    %1838 = vst.msk [vmem:[#allocation3 + $0x110] sm:$0xff] %vm1193, %v1793
    %1839 = vst.msk [vmem:[#allocation3 + $0x118] sm:$0xff] %vm1193, %v1795
    %1840 = vst.msk [vmem:[#allocation3 + $0x120] sm:$0xff] %vm1193, %v1797
    %1841 = vst.msk [vmem:[#allocation3 + $0x128] sm:$0xff] %vm1193, %v1799
    %1842 = vst.msk [vmem:[#allocation3 + $0x130] sm:$0xff] %vm1193, %v1801
    %1843 = vst.msk [vmem:[#allocation3 + $0x138] sm:$0xff] %vm1193, %v1803
    %1844 = vst.msk [vmem:[#allocation3 + $0x140] sm:$0xff] %vm1193, %v1805
    %1845 = vst.msk [vmem:[#allocation3 + $0x148] sm:$0xff] %vm1193, %v1807
    %1846 = vst.msk [vmem:[#allocation3 + $0x150] sm:$0xff] %vm1193, %v1809
    %1847 = vst.msk [vmem:[#allocation3 + $0x158] sm:$0xff] %vm1193, %v1811
    %1848 = vst.msk [vmem:[#allocation3 + $0x160] sm:$0xff] %vm1193, %v1813
    %1849 = vst.msk [vmem:[#allocation3 + $0x168] sm:$0xff] %vm1193, %v1815
    %1850 = vst.msk [vmem:[#allocation3 + $0x170] sm:$0xff] %vm1193, %v1817
    %1851 = vst.msk [vmem:[#allocation3 + $0x178] sm:$0xff] %vm1193, %v1819
    %v1852 = vld [vmem:[%s870] sm:$0xff]
    %v1853 = vld [vmem:[%s870 + $0x10] sm:$0xff]
    %v1854 = vld [vmem:[%s870 + $0x20] sm:$0xff]
    %v1855 = vld [vmem:[%s870 + $0x30] sm:$0xff]
    %v1856 = vld [vmem:[%s870 + $0x40] sm:$0xff]
    %v1857 = vld [vmem:[%s870 + $0x50] sm:$0xff]
    %v1858 = vld [vmem:[%s870 + $0x60] sm:$0xff]
    %v1859 = vld [vmem:[%s870 + $0x70] sm:$0xff]
    %v1860 = vld [vmem:[%s870 + $0x90] sm:$0xff]
    %v1861 = vld [vmem:[%s870 + $0xa0] sm:$0xff]
    %v1862 = vld [vmem:[%s870 + $0xb0] sm:$0xff]
    %v1863 = vld [vmem:[%s870 + $0xc0] sm:$0xff]
    %v1864 = vld [vmem:[%s870 + $0xd0] sm:$0xff]
    %v1865 = vld [vmem:[%s870 + $0xe0] sm:$0xff]
    %v1866 = vld [vmem:[%s870 + $0xf0] sm:$0xff]
    %v1867 = vld [vmem:[%s870 + $0x100] sm:$0xff]
    %1868 = vst.msk [vmem:[#allocation3 + $0x180] sm:$0xff] %vm96, %v1852
    %1869 = vst.msk [vmem:[#allocation3 + $0x188] sm:$0xff] %vm96, %v1853
    %1870 = vst.msk [vmem:[#allocation3 + $0x190] sm:$0xff] %vm96, %v1854
    %1871 = vst.msk [vmem:[#allocation3 + $0x198] sm:$0xff] %vm96, %v1855
    %1872 = vst.msk [vmem:[#allocation3 + $0x1a0] sm:$0xff] %vm96, %v1856
    %1873 = vst.msk [vmem:[#allocation3 + $0x1a8] sm:$0xff] %vm96, %v1857
    %1874 = vst.msk [vmem:[#allocation3 + $0x1b0] sm:$0xff] %vm96, %v1858
    %1875 = vst.msk [vmem:[#allocation3 + $0x1b8] sm:$0xff] %vm96, %v1859
    %1876 = vst.msk [vmem:[#allocation3 + $0x1c0] sm:$0xff] %vm96, %v1860
    %1877 = vst.msk [vmem:[#allocation3 + $0x1c8] sm:$0xff] %vm96, %v1861
    %1878 = vst.msk [vmem:[#allocation3 + $0x1d0] sm:$0xff] %vm96, %v1862
    %1879 = vst.msk [vmem:[#allocation3 + $0x1d8] sm:$0xff] %vm96, %v1863
    %1880 = vst.msk [vmem:[#allocation3 + $0x1e0] sm:$0xff] %vm96, %v1864
    %1881 = vst.msk [vmem:[#allocation3 + $0x1e8] sm:$0xff] %vm96, %v1865
    %1882 = vst.msk [vmem:[#allocation3 + $0x1f0] sm:$0xff] %vm96, %v1866
    %1883 = vst.msk [vmem:[#allocation3 + $0x1f8] sm:$0xff] %vm96, %v1867
    %v1884 = vld [vmem:[%s853 + $0x1] sm:$0xff]
    %v1885 = vld [vmem:[%s853 + $0x11] sm:$0xff]
    %v1886 = vld [vmem:[%s853 + $0x21] sm:$0xff]
    %v1887 = vld [vmem:[%s853 + $0x31] sm:$0xff]
    %v1888 = vld [vmem:[%s853 + $0x41] sm:$0xff]
    %v1889 = vld [vmem:[%s853 + $0x51] sm:$0xff]
    %v1890 = vld [vmem:[%s853 + $0x61] sm:$0xff]
    %v1891 = vld [vmem:[%s853 + $0x71] sm:$0xff]
    %v1892 = vld [vmem:[%s853 + $0x91] sm:$0xff]
    %v1893 = vld [vmem:[%s853 + $0xa1] sm:$0xff]
    %v1894 = vld [vmem:[%s853 + $0xb1] sm:$0xff]
    %v1895 = vld [vmem:[%s853 + $0xc1] sm:$0xff]
    %v1896 = vld [vmem:[%s853 + $0xd1] sm:$0xff]
    %v1897 = vld [vmem:[%s853 + $0xe1] sm:$0xff]
    %v1898 = vld [vmem:[%s853 + $0xf1] sm:$0xff]
    %v1899 = vld [vmem:[%s853 + $0x101] sm:$0xff]
    %1916 = vrot.lane.b32.xlu0 %v1884, 32
    %v1917 = vpop.permute.xlu0 %1916
    %1918 = vrot.lane.b32.xlu0 %v1885, 32
    %v1919 = vpop.permute.xlu0 %1918
    %1920 = vrot.lane.b32.xlu0 %v1886, 32
    %v1921 = vpop.permute.xlu0 %1920
    %1922 = vrot.lane.b32.xlu0 %v1887, 32
    %v1923 = vpop.permute.xlu0 %1922
    %1924 = vrot.lane.b32.xlu0 %v1888, 32
    %v1925 = vpop.permute.xlu0 %1924
    %1926 = vrot.lane.b32.xlu0 %v1889, 32
    %v1927 = vpop.permute.xlu0 %1926
    %1928 = vrot.lane.b32.xlu0 %v1890, 32
    %v1929 = vpop.permute.xlu0 %1928
    %1930 = vrot.lane.b32.xlu0 %v1891, 32
    %v1931 = vpop.permute.xlu0 %1930
    %1932 = vrot.lane.b32.xlu0 %v1892, 32
    %v1933 = vpop.permute.xlu0 %1932
    %1934 = vrot.lane.b32.xlu0 %v1893, 32
    %v1935 = vpop.permute.xlu0 %1934
    %1936 = vrot.lane.b32.xlu0 %v1894, 32
    %v1937 = vpop.permute.xlu0 %1936
    %1938 = vrot.lane.b32.xlu0 %v1895, 32
    %v1939 = vpop.permute.xlu0 %1938
    %1940 = vrot.lane.b32.xlu0 %v1896, 32
    %v1941 = vpop.permute.xlu0 %1940
    %1942 = vrot.lane.b32.xlu0 %v1897, 32
    %v1943 = vpop.permute.xlu0 %1942
    %1944 = vrot.lane.b32.xlu0 %v1898, 32
    %v1945 = vpop.permute.xlu0 %1944
    %1946 = vrot.lane.b32.xlu0 %v1899, 32
    %v1947 = vpop.permute.xlu0 %1946
    %1964 = vst.msk [vmem:[#allocation3 + $0x180] sm:$0xff] %vm999, %v1917
    %1965 = vst.msk [vmem:[#allocation3 + $0x188] sm:$0xff] %vm999, %v1919
    %1966 = vst.msk [vmem:[#allocation3 + $0x190] sm:$0xff] %vm999, %v1921
    %1967 = vst.msk [vmem:[#allocation3 + $0x198] sm:$0xff] %vm999, %v1923
    %1968 = vst.msk [vmem:[#allocation3 + $0x1a0] sm:$0xff] %vm999, %v1925
    %1969 = vst.msk [vmem:[#allocation3 + $0x1a8] sm:$0xff] %vm999, %v1927
    %1970 = vst.msk [vmem:[#allocation3 + $0x1b0] sm:$0xff] %vm999, %v1929
    %1971 = vst.msk [vmem:[#allocation3 + $0x1b8] sm:$0xff] %vm999, %v1931
    %1972 = vst.msk [vmem:[#allocation3 + $0x1c0] sm:$0xff] %vm999, %v1933
    %1973 = vst.msk [vmem:[#allocation3 + $0x1c8] sm:$0xff] %vm999, %v1935
    %1974 = vst.msk [vmem:[#allocation3 + $0x1d0] sm:$0xff] %vm999, %v1937
    %1975 = vst.msk [vmem:[#allocation3 + $0x1d8] sm:$0xff] %vm999, %v1939
    %1976 = vst.msk [vmem:[#allocation3 + $0x1e0] sm:$0xff] %vm999, %v1941
    %1977 = vst.msk [vmem:[#allocation3 + $0x1e8] sm:$0xff] %vm999, %v1943
    %1978 = vst.msk [vmem:[#allocation3 + $0x1f0] sm:$0xff] %vm999, %v1945
    %1979 = vst.msk [vmem:[#allocation3 + $0x1f8] sm:$0xff] %vm999, %v1947
    %v1980 = vld [vmem:[%s1755] sm:$0xff]
    %v1981 = vld [vmem:[%s1755 + $0x10] sm:$0xff]
    %v1982 = vld [vmem:[%s1755 + $0x20] sm:$0xff]
    %v1983 = vld [vmem:[%s1755 + $0x30] sm:$0xff]
    %v1984 = vld [vmem:[%s1755 + $0x40] sm:$0xff]
    %v1985 = vld [vmem:[%s1755 + $0x50] sm:$0xff]
    %v1986 = vld [vmem:[%s1755 + $0x60] sm:$0xff]
    %v1987 = vld [vmem:[%s1755 + $0x70] sm:$0xff]
    %v1988 = vld [vmem:[%s1755 + $0x90] sm:$0xff]
    %v1989 = vld [vmem:[%s1755 + $0xa0] sm:$0xff]
    %v1990 = vld [vmem:[%s1755 + $0xb0] sm:$0xff]
    %v1991 = vld [vmem:[%s1755 + $0xc0] sm:$0xff]
    %v1992 = vld [vmem:[%s1755 + $0xd0] sm:$0xff]
    %v1993 = vld [vmem:[%s1755 + $0xe0] sm:$0xff]
    %v1994 = vld [vmem:[%s1755 + $0xf0] sm:$0xff]
    %v1995 = vld [vmem:[%s1755 + $0x100] sm:$0xff]
    %2012 = vrot.lane.b32.xlu0 %v1980, 64
    %v2013 = vpop.permute.xlu0 %2012
    %2014 = vrot.lane.b32.xlu0 %v1981, 64
    %v2015 = vpop.permute.xlu0 %2014
    %2016 = vrot.lane.b32.xlu0 %v1982, 64
    %v2017 = vpop.permute.xlu0 %2016
    %2018 = vrot.lane.b32.xlu0 %v1983, 64
    %v2019 = vpop.permute.xlu0 %2018
    %2020 = vrot.lane.b32.xlu0 %v1984, 64
    %v2021 = vpop.permute.xlu0 %2020
    %2022 = vrot.lane.b32.xlu0 %v1985, 64
    %v2023 = vpop.permute.xlu0 %2022
    %2024 = vrot.lane.b32.xlu0 %v1986, 64
    %v2025 = vpop.permute.xlu0 %2024
    %2026 = vrot.lane.b32.xlu0 %v1987, 64
    %v2027 = vpop.permute.xlu0 %2026
    %2028 = vrot.lane.b32.xlu0 %v1988, 64
    %v2029 = vpop.permute.xlu0 %2028
    %2030 = vrot.lane.b32.xlu0 %v1989, 64
    %v2031 = vpop.permute.xlu0 %2030
    %2032 = vrot.lane.b32.xlu0 %v1990, 64
    %v2033 = vpop.permute.xlu0 %2032
    %2034 = vrot.lane.b32.xlu0 %v1991, 64
    %v2035 = vpop.permute.xlu0 %2034
    %2036 = vrot.lane.b32.xlu0 %v1992, 64
    %v2037 = vpop.permute.xlu0 %2036
    %2038 = vrot.lane.b32.xlu0 %v1993, 64
    %v2039 = vpop.permute.xlu0 %2038
    %2040 = vrot.lane.b32.xlu0 %v1994, 64
    %v2041 = vpop.permute.xlu0 %2040
    %2042 = vrot.lane.b32.xlu0 %v1995, 64
    %v2043 = vpop.permute.xlu0 %2042
    %2060 = vst.msk [vmem:[#allocation3 + $0x180] sm:$0xff] %vm1096, %v2013
    %2061 = vst.msk [vmem:[#allocation3 + $0x188] sm:$0xff] %vm1096, %v2015
    %2062 = vst.msk [vmem:[#allocation3 + $0x190] sm:$0xff] %vm1096, %v2017
    %2063 = vst.msk [vmem:[#allocation3 + $0x198] sm:$0xff] %vm1096, %v2019
    %2064 = vst.msk [vmem:[#allocation3 + $0x1a0] sm:$0xff] %vm1096, %v2021
    %2065 = vst.msk [vmem:[#allocation3 + $0x1a8] sm:$0xff] %vm1096, %v2023
    %2066 = vst.msk [vmem:[#allocation3 + $0x1b0] sm:$0xff] %vm1096, %v2025
    %2067 = vst.msk [vmem:[#allocation3 + $0x1b8] sm:$0xff] %vm1096, %v2027
    %2068 = vst.msk [vmem:[#allocation3 + $0x1c0] sm:$0xff] %vm1096, %v2029
    %2069 = vst.msk [vmem:[#allocation3 + $0x1c8] sm:$0xff] %vm1096, %v2031
    %2070 = vst.msk [vmem:[#allocation3 + $0x1d0] sm:$0xff] %vm1096, %v2033
    %2071 = vst.msk [vmem:[#allocation3 + $0x1d8] sm:$0xff] %vm1096, %v2035
    %2072 = vst.msk [vmem:[#allocation3 + $0x1e0] sm:$0xff] %vm1096, %v2037
    %2073 = vst.msk [vmem:[#allocation3 + $0x1e8] sm:$0xff] %vm1096, %v2039
    %2074 = vst.msk [vmem:[#allocation3 + $0x1f0] sm:$0xff] %vm1096, %v2041
    %2075 = vst.msk [vmem:[#allocation3 + $0x1f8] sm:$0xff] %vm1096, %v2043
    %v2076 = vld [vmem:[%s1658 + $0x1] sm:$0xff]
    %v2077 = vld [vmem:[%s1658 + $0x11] sm:$0xff]
    %v2078 = vld [vmem:[%s1658 + $0x21] sm:$0xff]
    %v2079 = vld [vmem:[%s1658 + $0x31] sm:$0xff]
    %v2080 = vld [vmem:[%s1658 + $0x41] sm:$0xff]
    %v2081 = vld [vmem:[%s1658 + $0x51] sm:$0xff]
    %v2082 = vld [vmem:[%s1658 + $0x61] sm:$0xff]
    %v2083 = vld [vmem:[%s1658 + $0x71] sm:$0xff]
    %v2084 = vld [vmem:[%s1658 + $0x91] sm:$0xff]
    %v2085 = vld [vmem:[%s1658 + $0xa1] sm:$0xff]
    %v2086 = vld [vmem:[%s1658 + $0xb1] sm:$0xff]
    %v2087 = vld [vmem:[%s1658 + $0xc1] sm:$0xff]
    %v2088 = vld [vmem:[%s1658 + $0xd1] sm:$0xff]
    %v2089 = vld [vmem:[%s1658 + $0xe1] sm:$0xff]
    %v2090 = vld [vmem:[%s1658 + $0xf1] sm:$0xff]
    %v2091 = vld [vmem:[%s1658 + $0x101] sm:$0xff]
    %2108 = vrot.lane.b32.xlu0 %v2076, 96
    %v2109 = vpop.permute.xlu0 %2108
    %2110 = vrot.lane.b32.xlu0 %v2077, 96
    %v2111 = vpop.permute.xlu0 %2110
    %2112 = vrot.lane.b32.xlu0 %v2078, 96
    %v2113 = vpop.permute.xlu0 %2112
    %2114 = vrot.lane.b32.xlu0 %v2079, 96
    %v2115 = vpop.permute.xlu0 %2114
    %2116 = vrot.lane.b32.xlu0 %v2080, 96
    %v2117 = vpop.permute.xlu0 %2116
    %2118 = vrot.lane.b32.xlu0 %v2081, 96
    %v2119 = vpop.permute.xlu0 %2118
    %2120 = vrot.lane.b32.xlu0 %v2082, 96
    %v2121 = vpop.permute.xlu0 %2120
    %2122 = vrot.lane.b32.xlu0 %v2083, 96
    %v2123 = vpop.permute.xlu0 %2122
    %2124 = vrot.lane.b32.xlu0 %v2084, 96
    %v2125 = vpop.permute.xlu0 %2124
    %2126 = vrot.lane.b32.xlu0 %v2085, 96
    %v2127 = vpop.permute.xlu0 %2126
    %2128 = vrot.lane.b32.xlu0 %v2086, 96
    %v2129 = vpop.permute.xlu0 %2128
    %2130 = vrot.lane.b32.xlu0 %v2087, 96
    %v2131 = vpop.permute.xlu0 %2130
    %2132 = vrot.lane.b32.xlu0 %v2088, 96
    %v2133 = vpop.permute.xlu0 %2132
    %2134 = vrot.lane.b32.xlu0 %v2089, 96
    %v2135 = vpop.permute.xlu0 %2134
    %2136 = vrot.lane.b32.xlu0 %v2090, 96
    %v2137 = vpop.permute.xlu0 %2136
    %2138 = vrot.lane.b32.xlu0 %v2091, 96
    %v2139 = vpop.permute.xlu0 %2138
    %2156 = vst.msk [vmem:[#allocation3 + $0x180] sm:$0xff] %vm1193, %v2109
    %2157 = vst.msk [vmem:[#allocation3 + $0x188] sm:$0xff] %vm1193, %v2111
    %2158 = vst.msk [vmem:[#allocation3 + $0x190] sm:$0xff] %vm1193, %v2113
    %2159 = vst.msk [vmem:[#allocation3 + $0x198] sm:$0xff] %vm1193, %v2115
    %2160 = vst.msk [vmem:[#allocation3 + $0x1a0] sm:$0xff] %vm1193, %v2117
    %2161 = vst.msk [vmem:[#allocation3 + $0x1a8] sm:$0xff] %vm1193, %v2119
    %2162 = vst.msk [vmem:[#allocation3 + $0x1b0] sm:$0xff] %vm1193, %v2121
    %2163 = vst.msk [vmem:[#allocation3 + $0x1b8] sm:$0xff] %vm1193, %v2123
    %2164 = vst.msk [vmem:[#allocation3 + $0x1c0] sm:$0xff] %vm1193, %v2125
    %2165 = vst.msk [vmem:[#allocation3 + $0x1c8] sm:$0xff] %vm1193, %v2127
    %2166 = vst.msk [vmem:[#allocation3 + $0x1d0] sm:$0xff] %vm1193, %v2129
    %2167 = vst.msk [vmem:[#allocation3 + $0x1d8] sm:$0xff] %vm1193, %v2131
    %2168 = vst.msk [vmem:[#allocation3 + $0x1e0] sm:$0xff] %vm1193, %v2133
    %2169 = vst.msk [vmem:[#allocation3 + $0x1e8] sm:$0xff] %vm1193, %v2135
    %2170 = vst.msk [vmem:[#allocation3 + $0x1f0] sm:$0xff] %vm1193, %v2137
    %2171 = vst.msk [vmem:[#allocation3 + $0x1f8] sm:$0xff] %vm1193, %v2139
    %v2172 = vld [vmem:[#allocation3] sm:$0xff]
    %v2173 = vld [vmem:[#allocation3 + $0x8] sm:$0xff]
    %v2174 = vld [vmem:[#allocation3 + $0x10] sm:$0xff]
    %v2175 = vld [vmem:[#allocation3 + $0x18] sm:$0xff]
    %v2176 = vld [vmem:[#allocation3 + $0x20] sm:$0xff]
    %v2177 = vld [vmem:[#allocation3 + $0x28] sm:$0xff]
    %v2178 = vld [vmem:[#allocation3 + $0x30] sm:$0xff]
    %v2179 = vld [vmem:[#allocation3 + $0x38] sm:$0xff]
    %v2180 = vld [vmem:[#allocation3 + $0x40] sm:$0xff]
    %v2181 = vld [vmem:[#allocation3 + $0x48] sm:$0xff]
    %v2182 = vld [vmem:[#allocation3 + $0x50] sm:$0xff]
    %v2183 = vld [vmem:[#allocation3 + $0x58] sm:$0xff]
    %v2184 = vld [vmem:[#allocation3 + $0x60] sm:$0xff]
    %v2185 = vld [vmem:[#allocation3 + $0x68] sm:$0xff]
    %v2186 = vld [vmem:[#allocation3 + $0x70] sm:$0xff]
    %v2187 = vld [vmem:[#allocation3 + $0x78] sm:$0xff]
    %v2188 = vld [vmem:[#allocation3 + $0x80] sm:$0xff]
    %v2189 = vld [vmem:[#allocation3 + $0x88] sm:$0xff]
    %v2190 = vld [vmem:[#allocation3 + $0x90] sm:$0xff]
    %v2191 = vld [vmem:[#allocation3 + $0x98] sm:$0xff]
    %v2192 = vld [vmem:[#allocation3 + $0xa0] sm:$0xff]
    %v2193 = vld [vmem:[#allocation3 + $0xa8] sm:$0xff]
    %v2194 = vld [vmem:[#allocation3 + $0xb0] sm:$0xff]
    %v2195 = vld [vmem:[#allocation3 + $0xb8] sm:$0xff]
    %v2196 = vld [vmem:[#allocation3 + $0xc0] sm:$0xff]
    %v2197 = vld [vmem:[#allocation3 + $0xc8] sm:$0xff]
    %v2198 = vld [vmem:[#allocation3 + $0xd0] sm:$0xff]
    %v2199 = vld [vmem:[#allocation3 + $0xd8] sm:$0xff]
    %v2200 = vld [vmem:[#allocation3 + $0xe0] sm:$0xff]
    %v2201 = vld [vmem:[#allocation3 + $0xe8] sm:$0xff]
    %v2202 = vld [vmem:[#allocation3 + $0xf0] sm:$0xff]
    %v2203 = vld [vmem:[#allocation3 + $0xf8] sm:$0xff]
    %v2204 = vld [vmem:[#allocation3 + $0x100] sm:$0xff]
    %v2205 = vld [vmem:[#allocation3 + $0x108] sm:$0xff]
    %v2206 = vld [vmem:[#allocation3 + $0x110] sm:$0xff]
    %v2207 = vld [vmem:[#allocation3 + $0x118] sm:$0xff]
    %v2208 = vld [vmem:[#allocation3 + $0x120] sm:$0xff]
    %v2209 = vld [vmem:[#allocation3 + $0x128] sm:$0xff]
    %v2210 = vld [vmem:[#allocation3 + $0x130] sm:$0xff]
    %v2211 = vld [vmem:[#allocation3 + $0x138] sm:$0xff]
    %v2212 = vld [vmem:[#allocation3 + $0x140] sm:$0xff]
    %v2213 = vld [vmem:[#allocation3 + $0x148] sm:$0xff]
    %v2214 = vld [vmem:[#allocation3 + $0x150] sm:$0xff]
    %v2215 = vld [vmem:[#allocation3 + $0x158] sm:$0xff]
    %v2216 = vld [vmem:[#allocation3 + $0x160] sm:$0xff]
    %v2217 = vld [vmem:[#allocation3 + $0x168] sm:$0xff]
    %v2218 = vld [vmem:[#allocation3 + $0x170] sm:$0xff]
    %v2219 = vld [vmem:[#allocation3 + $0x178] sm:$0xff]
    %v2220 = vld [vmem:[#allocation3 + $0x180] sm:$0xff]
    %v2221 = vld [vmem:[#allocation3 + $0x188] sm:$0xff]
    %v2222 = vld [vmem:[#allocation3 + $0x190] sm:$0xff]
    %v2223 = vld [vmem:[#allocation3 + $0x198] sm:$0xff]
    %v2224 = vld [vmem:[#allocation3 + $0x1a0] sm:$0xff]
    %v2225 = vld [vmem:[#allocation3 + $0x1a8] sm:$0xff]
    %v2226 = vld [vmem:[#allocation3 + $0x1b0] sm:$0xff]
    %v2227 = vld [vmem:[#allocation3 + $0x1b8] sm:$0xff]
    %v2228 = vld [vmem:[#allocation3 + $0x1c0] sm:$0xff]
    %v2229 = vld [vmem:[#allocation3 + $0x1c8] sm:$0xff]
    %v2230 = vld [vmem:[#allocation3 + $0x1d0] sm:$0xff]
    %v2231 = vld [vmem:[#allocation3 + $0x1d8] sm:$0xff]
    %v2232 = vld [vmem:[#allocation3 + $0x1e0] sm:$0xff]
    %v2233 = vld [vmem:[#allocation3 + $0x1e8] sm:$0xff]
    %v2234 = vld [vmem:[#allocation3 + $0x1f0] sm:$0xff]
    %v2235 = vld [vmem:[#allocation3 + $0x1f8] sm:$0xff]
    %v2236 = vld [vmem:[%s3] sm:$0xff]
    %v2237 = vld [vmem:[%s3 + $0x8] sm:$0xff]
    %v2238 = vld [vmem:[%s3 + $0x10] sm:$0xff]
    %v2239 = vld [vmem:[%s3 + $0x18] sm:$0xff]
    %v2240 = vld [vmem:[%s3 + $0x20] sm:$0xff]
    %v2241 = vld [vmem:[%s3 + $0x28] sm:$0xff]
    %v2242 = vld [vmem:[%s3 + $0x30] sm:$0xff]
    %v2243 = vld [vmem:[%s3 + $0x38] sm:$0xff]
    %v2244 = vld [vmem:[%s3 + $0x40] sm:$0xff]
    %v2245 = vld [vmem:[%s3 + $0x48] sm:$0xff]
    %v2246 = vld [vmem:[%s3 + $0x50] sm:$0xff]
    %v2247 = vld [vmem:[%s3 + $0x58] sm:$0xff]
    %v2248 = vld [vmem:[%s3 + $0x60] sm:$0xff]
    %v2249 = vld [vmem:[%s3 + $0x68] sm:$0xff]
    %v2250 = vld [vmem:[%s3 + $0x70] sm:$0xff]
    %v2251 = vld [vmem:[%s3 + $0x78] sm:$0xff]
    %v2252 = vld [vmem:[%s4] sm:$0x1]
    %v2254 = vlaneseq
    %v2255 = vshrl.u32 %v2254, 7
    %v2256 = vsub.s32 0, %v2255
    %v2257 = vrot.slane %v2252, %v2256
    %2259 = vmatprep.subr.mxu0 0.0
    %2260 = vmatpush1.msra.mxu0 %v2236
    %2261 = vmatprep.subr.mxu0 0.0
    %2262 = vmatpush1.msra.mxu0 %v2237
    %2263 = vmatprep.subr.mxu0 0.0
    %2264 = vmatpush1.msra.mxu0 %v2238
    %2265 = vmatprep.subr.mxu0 0.0
    %2266 = vmatpush1.msra.mxu0 %v2239
    %2267 = vmatprep.subr.mxu0 0.0
    %2268 = vmatpush1.msra.mxu0 %v2240
    %2269 = vmatprep.subr.mxu0 0.0
    %2270 = vmatpush1.msra.mxu0 %v2241
    %2271 = vmatprep.subr.mxu0 0.0
    %2272 = vmatpush1.msra.mxu0 %v2242
    %2273 = vmatprep.subr.mxu0 0.0
    %2274 = vmatpush1.msra.mxu0 %v2243
    %2275 = vmatprep.subr.mxu0 0.0
    %2276 = vmatpush1.msra.mxu0 %v2244
    %2277 = vmatprep.subr.mxu0 0.0
    %2278 = vmatpush1.msra.mxu0 %v2245
    %2279 = vmatprep.subr.mxu0 0.0
    %2280 = vmatpush1.msra.mxu0 %v2246
    %2281 = vmatprep.subr.mxu0 0.0
    %2282 = vmatpush1.msra.mxu0 %v2247
    %2283 = vmatprep.subr.mxu0 0.0
    %2284 = vmatpush1.msra.mxu0 %v2248
    %2285 = vmatprep.subr.mxu0 0.0
    %2286 = vmatpush1.msra.mxu0 %v2249
    %2287 = vmatprep.subr.mxu0 0.0
    %2288 = vmatpush1.msra.mxu0 %v2250
    %2289 = vmatprep.subr.mxu0 0.0
    %2290 = vmatpush1.msra.mxu0 %v2251
    %2291 = vmatprep.subr.mxu0 0.0
    %2292 = vmatpush1.msra.mxu0 0.0
    %2293 = vmatprep.subr.mxu0 0.0
    %2294 = vmatpush1.msra.mxu0 0.0
    %2295 = vmatprep.subr.mxu0 0.0
    %2296 = vmatpush1.msra.mxu0 0.0
    %2297 = vmatprep.subr.mxu0 0.0
    %2298 = vmatpush1.msra.mxu0 0.0
    %2299 = vmatprep.subr.mxu0 0.0
    %2300 = vmatpush1.msra.mxu0 0.0
    %2301 = vmatprep.subr.mxu0 0.0
    %2302 = vmatpush1.msra.mxu0 0.0
    %2303 = vmatprep.subr.mxu0 0.0
    %2304 = vmatpush1.msra.mxu0 0.0
    %2305 = vmatprep.subr.mxu0 0.0
    %2306 = vmatpush1.msra.mxu0 0.0
    %2307 = vmatprep.subr.mxu0 0.0
    %2308 = vmatpush1.msra.mxu0 0.0
    %2309 = vmatprep.subr.mxu0 0.0
    %2310 = vmatpush1.msra.mxu0 0.0
    %2311 = vmatprep.subr.mxu0 0.0
    %2312 = vmatpush1.msra.mxu0 0.0
    %2313 = vmatprep.subr.mxu0 0.0
    %2314 = vmatpush1.msra.mxu0 0.0
    %2315 = vmatprep.subr.mxu0 0.0
    %2316 = vmatpush1.msra.mxu0 0.0
    %2317 = vmatprep.subr.mxu0 0.0
    %2318 = vmatpush1.msra.mxu0 0.0
    %2319 = vmatprep.subr.mxu0 0.0
    %2320 = vmatpush1.msra.mxu0 0.0
    %2321 = vmatprep.subr.mxu0 0.0
    %2322 = vmatpush1.msra.mxu0 0.0
    %2323 = vmatprep.mubr.f32.mxu0 0.0
    %2324 = vmatmul.mubr.f32.gmra.mrb[0].mxu0 %v2172
    %v2325 = vpop.f32.mrb[0].mxu0
    %v2326 = vadd.f32 %v2257, %v2325
    %v2327 = vpop.f32.mrb[0].mxu0
    %2328 = vmatprep.mubr.f32.mxu0 0.0
    %2329 = vmatmul.mubr.f32.gmra.mrb[0].mxu0 %v2173
    %v2330 = vpop.f32.mrb[0].mxu0
    %v2331 = vadd.f32 %v2257, %v2330
    %v2332 = vpop.f32.mrb[0].mxu0
    %2333 = vmatprep.mubr.f32.mxu0 0.0
    %2334 = vmatmul.mubr.f32.gmra.mrb[0].mxu0 %v2174
    %v2335 = vpop.f32.mrb[0].mxu0
    %v2336 = vadd.f32 %v2257, %v2335
    %v2337 = vpop.f32.mrb[0].mxu0
    %2338 = vmatprep.mubr.f32.mxu0 0.0
    %2339 = vmatmul.mubr.f32.gmra.mrb[0].mxu0 %v2175
    %v2340 = vpop.f32.mrb[0].mxu0
    %v2341 = vadd.f32 %v2257, %v2340
    %v2342 = vpop.f32.mrb[0].mxu0
    %2343 = vmatprep.mubr.f32.mxu0 0.0
    %2344 = vmatmul.mubr.f32.gmra.mrb[0].mxu0 %v2176
    %v2345 = vpop.f32.mrb[0].mxu0
    %v2346 = vadd.f32 %v2257, %v2345
    %v2347 = vpop.f32.mrb[0].mxu0
    %2348 = vmatprep.mubr.f32.mxu0 0.0
    %2349 = vmatmul.mubr.f32.gmra.mrb[0].mxu0 %v2177
    %v2350 = vpop.f32.mrb[0].mxu0
    %v2351 = vadd.f32 %v2257, %v2350
    %v2352 = vpop.f32.mrb[0].mxu0
    %2353 = vmatprep.mubr.f32.mxu0 0.0
    %2354 = vmatmul.mubr.f32.gmra.mrb[0].mxu0 %v2178
    %v2355 = vpop.f32.mrb[0].mxu0
    %v2356 = vadd.f32 %v2257, %v2355
    %v2357 = vpop.f32.mrb[0].mxu0
    %2358 = vmatprep.mubr.f32.mxu0 0.0
    %2359 = vmatmul.mubr.f32.gmra.mrb[0].mxu0 %v2179
    %v2360 = vpop.f32.mrb[0].mxu0
    %v2361 = vadd.f32 %v2257, %v2360
    %v2362 = vpop.f32.mrb[0].mxu0
    %2363 = vmatprep.mubr.f32.mxu0 0.0
    %2364 = vmatmul.mubr.f32.gmra.mrb[0].mxu0 %v2180
    %v2365 = vpop.f32.mrb[0].mxu0
    %v2366 = vadd.f32 %v2257, %v2365
    %v2367 = vpop.f32.mrb[0].mxu0
    %2368 = vmatprep.mubr.f32.mxu0 0.0
    %2369 = vmatmul.mubr.f32.gmra.mrb[0].mxu0 %v2181
    %v2370 = vpop.f32.mrb[0].mxu0
    %v2371 = vadd.f32 %v2257, %v2370
    %v2372 = vpop.f32.mrb[0].mxu0
    %2373 = vmatprep.mubr.f32.mxu0 0.0
    %2374 = vmatmul.mubr.f32.gmra.mrb[0].mxu0 %v2182
    %v2375 = vpop.f32.mrb[0].mxu0
    %v2376 = vadd.f32 %v2257, %v2375
    %v2377 = vpop.f32.mrb[0].mxu0
    %2378 = vmatprep.mubr.f32.mxu0 0.0
    %2379 = vmatmul.mubr.f32.gmra.mrb[0].mxu0 %v2183
    %v2380 = vpop.f32.mrb[0].mxu0
    %v2381 = vadd.f32 %v2257, %v2380
    %v2382 = vpop.f32.mrb[0].mxu0
    %2383 = vmatprep.mubr.f32.mxu0 0.0
    %2384 = vmatmul.mubr.f32.gmra.mrb[0].mxu0 %v2184
    %v2385 = vpop.f32.mrb[0].mxu0
    %v2386 = vadd.f32 %v2257, %v2385
    %v2387 = vpop.f32.mrb[0].mxu0
    %2388 = vmatprep.mubr.f32.mxu0 0.0
    %2389 = vmatmul.mubr.f32.gmra.mrb[0].mxu0 %v2185
    %v2390 = vpop.f32.mrb[0].mxu0
    %v2391 = vadd.f32 %v2257, %v2390
    %v2392 = vpop.f32.mrb[0].mxu0
    %2393 = vmatprep.mubr.f32.mxu0 0.0
    %2394 = vmatmul.mubr.f32.gmra.mrb[0].mxu0 %v2186
    %v2395 = vpop.f32.mrb[0].mxu0
    %v2396 = vadd.f32 %v2257, %v2395
    %v2397 = vpop.f32.mrb[0].mxu0
    %2398 = vmatprep.mubr.f32.mxu0 0.0
    %2399 = vmatmul.mubr.f32.gmra.mrb[0].mxu0 %v2187
    %v2400 = vpop.f32.mrb[0].mxu0
    %v2401 = vadd.f32 %v2257, %v2400
    %v2402 = vpop.f32.mrb[0].mxu0
    %2403 = vmatprep.mubr.f32.mxu0 0.0
    %2404 = vmatmul.mubr.f32.gmra.mrb[0].mxu0 %v2188
    %v2405 = vpop.f32.mrb[0].mxu0
    %v2406 = vadd.f32 %v2257, %v2405
    %v2407 = vpop.f32.mrb[0].mxu0
    %2408 = vmatprep.mubr.f32.mxu0 0.0
    %2409 = vmatmul.mubr.f32.gmra.mrb[0].mxu0 %v2189
    %v2410 = vpop.f32.mrb[0].mxu0
    %v2411 = vadd.f32 %v2257, %v2410
    %v2412 = vpop.f32.mrb[0].mxu0
    %2413 = vmatprep.mubr.f32.mxu0 0.0
    %2414 = vmatmul.mubr.f32.gmra.mrb[0].mxu0 %v2190
    %v2415 = vpop.f32.mrb[0].mxu0
    %v2416 = vadd.f32 %v2257, %v2415
    %v2417 = vpop.f32.mrb[0].mxu0
    %2418 = vmatprep.mubr.f32.mxu0 0.0
    %2419 = vmatmul.mubr.f32.gmra.mrb[0].mxu0 %v2191
    %v2420 = vpop.f32.mrb[0].mxu0
    %v2421 = vadd.f32 %v2257, %v2420
    %v2422 = vpop.f32.mrb[0].mxu0
    %2423 = vmatprep.mubr.f32.mxu0 0.0
    %2424 = vmatmul.mubr.f32.gmra.mrb[0].mxu0 %v2192
    %v2425 = vpop.f32.mrb[0].mxu0
    %v2426 = vadd.f32 %v2257, %v2425
    %v2427 = vpop.f32.mrb[0].mxu0
    %2428 = vmatprep.mubr.f32.mxu0 0.0
    %2429 = vmatmul.mubr.f32.gmra.mrb[0].mxu0 %v2193
    %v2430 = vpop.f32.mrb[0].mxu0
    %v2431 = vadd.f32 %v2257, %v2430
    %v2432 = vpop.f32.mrb[0].mxu0
    %2433 = vmatprep.mubr.f32.mxu0 0.0
    %2434 = vmatmul.mubr.f32.gmra.mrb[0].mxu0 %v2194
    %v2435 = vpop.f32.mrb[0].mxu0
    %v2436 = vadd.f32 %v2257, %v2435
    %v2437 = vpop.f32.mrb[0].mxu0
    %2438 = vmatprep.mubr.f32.mxu0 0.0
    %2439 = vmatmul.mubr.f32.gmra.mrb[0].mxu0 %v2195
    %v2440 = vpop.f32.mrb[0].mxu0
    %v2441 = vadd.f32 %v2257, %v2440
    %v2442 = vpop.f32.mrb[0].mxu0
    %2443 = vmatprep.mubr.f32.mxu0 0.0
    %2444 = vmatmul.mubr.f32.gmra.mrb[0].mxu0 %v2196
    %v2445 = vpop.f32.mrb[0].mxu0
    %v2446 = vadd.f32 %v2257, %v2445
    %v2447 = vpop.f32.mrb[0].mxu0
    %2448 = vmatprep.mubr.f32.mxu0 0.0
    %2449 = vmatmul.mubr.f32.gmra.mrb[0].mxu0 %v2197
    %v2450 = vpop.f32.mrb[0].mxu0
    %v2451 = vadd.f32 %v2257, %v2450
    %v2452 = vpop.f32.mrb[0].mxu0
    %2453 = vmatprep.mubr.f32.mxu0 0.0
    %2454 = vmatmul.mubr.f32.gmra.mrb[0].mxu0 %v2198
    %v2455 = vpop.f32.mrb[0].mxu0
    %v2456 = vadd.f32 %v2257, %v2455
    %v2457 = vpop.f32.mrb[0].mxu0
    %2458 = vmatprep.mubr.f32.mxu0 0.0
    %2459 = vmatmul.mubr.f32.gmra.mrb[0].mxu0 %v2199
    %v2460 = vpop.f32.mrb[0].mxu0
    %v2461 = vadd.f32 %v2257, %v2460
    %v2462 = vpop.f32.mrb[0].mxu0
    %2463 = vmatprep.mubr.f32.mxu0 0.0
    %2464 = vmatmul.mubr.f32.gmra.mrb[0].mxu0 %v2200
    %v2465 = vpop.f32.mrb[0].mxu0
    %v2466 = vadd.f32 %v2257, %v2465
    %v2467 = vpop.f32.mrb[0].mxu0
    %2468 = vmatprep.mubr.f32.mxu0 0.0
    %2469 = vmatmul.mubr.f32.gmra.mrb[0].mxu0 %v2201
    %v2470 = vpop.f32.mrb[0].mxu0
    %v2471 = vadd.f32 %v2257, %v2470
    %v2472 = vpop.f32.mrb[0].mxu0
    %2473 = vmatprep.mubr.f32.mxu0 0.0
    %2474 = vmatmul.mubr.f32.gmra.mrb[0].mxu0 %v2202
    %v2475 = vpop.f32.mrb[0].mxu0
    %v2476 = vadd.f32 %v2257, %v2475
    %v2477 = vpop.f32.mrb[0].mxu0
    %2478 = vmatprep.mubr.f32.mxu0 0.0
    %2479 = vmatmul.mubr.f32.gmra.mrb[0].mxu0 %v2203
    %v2480 = vpop.f32.mrb[0].mxu0
    %v2481 = vadd.f32 %v2257, %v2480
    %v2482 = vpop.f32.mrb[0].mxu0
    %2483 = vmatprep.mubr.f32.mxu0 0.0
    %2484 = vmatmul.mubr.f32.gmra.mrb[0].mxu0 %v2204
    %v2485 = vpop.f32.mrb[0].mxu0
    %v2486 = vadd.f32 %v2257, %v2485
    %v2487 = vpop.f32.mrb[0].mxu0
    %2488 = vmatprep.mubr.f32.mxu0 0.0
    %2489 = vmatmul.mubr.f32.gmra.mrb[0].mxu0 %v2205
    %v2490 = vpop.f32.mrb[0].mxu0
    %v2491 = vadd.f32 %v2257, %v2490
    %v2492 = vpop.f32.mrb[0].mxu0
    %2493 = vmatprep.mubr.f32.mxu0 0.0
    %2494 = vmatmul.mubr.f32.gmra.mrb[0].mxu0 %v2206
    %v2495 = vpop.f32.mrb[0].mxu0
    %v2496 = vadd.f32 %v2257, %v2495
    %v2497 = vpop.f32.mrb[0].mxu0
    %2498 = vmatprep.mubr.f32.mxu0 0.0
    %2499 = vmatmul.mubr.f32.gmra.mrb[0].mxu0 %v2207
    %v2500 = vpop.f32.mrb[0].mxu0
    %v2501 = vadd.f32 %v2257, %v2500
    %v2502 = vpop.f32.mrb[0].mxu0
    %2503 = vmatprep.mubr.f32.mxu0 0.0
    %2504 = vmatmul.mubr.f32.gmra.mrb[0].mxu0 %v2208
    %v2505 = vpop.f32.mrb[0].mxu0
    %v2506 = vadd.f32 %v2257, %v2505
    %v2507 = vpop.f32.mrb[0].mxu0
    %2508 = vmatprep.mubr.f32.mxu0 0.0
    %2509 = vmatmul.mubr.f32.gmra.mrb[0].mxu0 %v2209
    %v2510 = vpop.f32.mrb[0].mxu0
    %v2511 = vadd.f32 %v2257, %v2510
    %v2512 = vpop.f32.mrb[0].mxu0
    %2513 = vmatprep.mubr.f32.mxu0 0.0
    %2514 = vmatmul.mubr.f32.gmra.mrb[0].mxu0 %v2210
    %v2515 = vpop.f32.mrb[0].mxu0
    %v2516 = vadd.f32 %v2257, %v2515
    %v2517 = vpop.f32.mrb[0].mxu0
    %2518 = vmatprep.mubr.f32.mxu0 0.0
    %2519 = vmatmul.mubr.f32.gmra.mrb[0].mxu0 %v2211
    %v2520 = vpop.f32.mrb[0].mxu0
    %v2521 = vadd.f32 %v2257, %v2520
    %v2522 = vpop.f32.mrb[0].mxu0
    %2523 = vmatprep.mubr.f32.mxu0 0.0
    %2524 = vmatmul.mubr.f32.gmra.mrb[0].mxu0 %v2212
    %v2525 = vpop.f32.mrb[0].mxu0
    %v2526 = vadd.f32 %v2257, %v2525
    %v2527 = vpop.f32.mrb[0].mxu0
    %2528 = vmatprep.mubr.f32.mxu0 0.0
    %2529 = vmatmul.mubr.f32.gmra.mrb[0].mxu0 %v2213
    %v2530 = vpop.f32.mrb[0].mxu0
    %v2531 = vadd.f32 %v2257, %v2530
    %v2532 = vpop.f32.mrb[0].mxu0
    %2533 = vmatprep.mubr.f32.mxu0 0.0
    %2534 = vmatmul.mubr.f32.gmra.mrb[0].mxu0 %v2214
    %v2535 = vpop.f32.mrb[0].mxu0
    %v2536 = vadd.f32 %v2257, %v2535
    %v2537 = vpop.f32.mrb[0].mxu0
    %2538 = vmatprep.mubr.f32.mxu0 0.0
    %2539 = vmatmul.mubr.f32.gmra.mrb[0].mxu0 %v2215
    %v2540 = vpop.f32.mrb[0].mxu0
    %v2541 = vadd.f32 %v2257, %v2540
    %v2542 = vpop.f32.mrb[0].mxu0
    %2543 = vmatprep.mubr.f32.mxu0 0.0
    %2544 = vmatmul.mubr.f32.gmra.mrb[0].mxu0 %v2216
    %v2545 = vpop.f32.mrb[0].mxu0
    %v2546 = vadd.f32 %v2257, %v2545
    %v2547 = vpop.f32.mrb[0].mxu0
    %2548 = vmatprep.mubr.f32.mxu0 0.0
    %2549 = vmatmul.mubr.f32.gmra.mrb[0].mxu0 %v2217
    %v2550 = vpop.f32.mrb[0].mxu0
    %v2551 = vadd.f32 %v2257, %v2550
    %v2552 = vpop.f32.mrb[0].mxu0
    %2553 = vmatprep.mubr.f32.mxu0 0.0
    %2554 = vmatmul.mubr.f32.gmra.mrb[0].mxu0 %v2218
    %v2555 = vpop.f32.mrb[0].mxu0
    %v2556 = vadd.f32 %v2257, %v2555
    %v2557 = vpop.f32.mrb[0].mxu0
    %2558 = vmatprep.mubr.f32.mxu0 0.0
    %2559 = vmatmul.mubr.f32.gmra.mrb[0].mxu0 %v2219
    %v2560 = vpop.f32.mrb[0].mxu0
    %v2561 = vadd.f32 %v2257, %v2560
    %v2562 = vpop.f32.mrb[0].mxu0
    %2563 = vmatprep.mubr.f32.mxu0 0.0
    %2564 = vmatmul.mubr.f32.gmra.mrb[0].mxu0 %v2220
    %v2565 = vpop.f32.mrb[0].mxu0
    %v2566 = vadd.f32 %v2257, %v2565
    %v2567 = vpop.f32.mrb[0].mxu0
    %2568 = vmatprep.mubr.f32.mxu0 0.0
    %2569 = vmatmul.mubr.f32.gmra.mrb[0].mxu0 %v2221
    %v2570 = vpop.f32.mrb[0].mxu0
    %v2571 = vadd.f32 %v2257, %v2570
    %v2572 = vpop.f32.mrb[0].mxu0
    %2573 = vmatprep.mubr.f32.mxu0 0.0
    %2574 = vmatmul.mubr.f32.gmra.mrb[0].mxu0 %v2222
    %v2575 = vpop.f32.mrb[0].mxu0
    %v2576 = vadd.f32 %v2257, %v2575
    %v2577 = vpop.f32.mrb[0].mxu0
    %2578 = vmatprep.mubr.f32.mxu0 0.0
    %2579 = vmatmul.mubr.f32.gmra.mrb[0].mxu0 %v2223
    %v2580 = vpop.f32.mrb[0].mxu0
    %v2581 = vadd.f32 %v2257, %v2580
    %v2582 = vpop.f32.mrb[0].mxu0
    %2583 = vmatprep.mubr.f32.mxu0 0.0
    %2584 = vmatmul.mubr.f32.gmra.mrb[0].mxu0 %v2224
    %v2585 = vpop.f32.mrb[0].mxu0
    %v2586 = vadd.f32 %v2257, %v2585
    %v2587 = vpop.f32.mrb[0].mxu0
    %2588 = vmatprep.mubr.f32.mxu0 0.0
    %2589 = vmatmul.mubr.f32.gmra.mrb[0].mxu0 %v2225
    %v2590 = vpop.f32.mrb[0].mxu0
    %v2591 = vadd.f32 %v2257, %v2590
    %v2592 = vpop.f32.mrb[0].mxu0
    %2593 = vmatprep.mubr.f32.mxu0 0.0
    %2594 = vmatmul.mubr.f32.gmra.mrb[0].mxu0 %v2226
    %v2595 = vpop.f32.mrb[0].mxu0
    %v2596 = vadd.f32 %v2257, %v2595
    %v2597 = vpop.f32.mrb[0].mxu0
    %2598 = vmatprep.mubr.f32.mxu0 0.0
    %2599 = vmatmul.mubr.f32.gmra.mrb[0].mxu0 %v2227
    %v2600 = vpop.f32.mrb[0].mxu0
    %v2601 = vadd.f32 %v2257, %v2600
    %v2602 = vpop.f32.mrb[0].mxu0
    %2603 = vmatprep.mubr.f32.mxu0 0.0
    %2604 = vmatmul.mubr.f32.gmra.mrb[0].mxu0 %v2228
    %v2605 = vpop.f32.mrb[0].mxu0
    %v2606 = vadd.f32 %v2257, %v2605
    %v2607 = vpop.f32.mrb[0].mxu0
    %2608 = vmatprep.mubr.f32.mxu0 0.0
    %2609 = vmatmul.mubr.f32.gmra.mrb[0].mxu0 %v2229
    %v2610 = vpop.f32.mrb[0].mxu0
    %v2611 = vadd.f32 %v2257, %v2610
    %v2612 = vpop.f32.mrb[0].mxu0
    %2613 = vmatprep.mubr.f32.mxu0 0.0
    %2614 = vmatmul.mubr.f32.gmra.mrb[0].mxu0 %v2230
    %v2615 = vpop.f32.mrb[0].mxu0
    %v2616 = vadd.f32 %v2257, %v2615
    %v2617 = vpop.f32.mrb[0].mxu0
    %2618 = vmatprep.mubr.f32.mxu0 0.0
    %2619 = vmatmul.mubr.f32.gmra.mrb[0].mxu0 %v2231
    %v2620 = vpop.f32.mrb[0].mxu0
    %v2621 = vadd.f32 %v2257, %v2620
    %v2622 = vpop.f32.mrb[0].mxu0
    %2623 = vmatprep.mubr.f32.mxu0 0.0
    %2624 = vmatmul.mubr.f32.gmra.mrb[0].mxu0 %v2232
    %v2625 = vpop.f32.mrb[0].mxu0
    %v2626 = vadd.f32 %v2257, %v2625
    %v2627 = vpop.f32.mrb[0].mxu0
    %2628 = vmatprep.mubr.f32.mxu0 0.0
    %2629 = vmatmul.mubr.f32.gmra.mrb[0].mxu0 %v2233
    %v2630 = vpop.f32.mrb[0].mxu0
    %v2631 = vadd.f32 %v2257, %v2630
    %v2632 = vpop.f32.mrb[0].mxu0
    %2633 = vmatprep.mubr.f32.mxu0 0.0
    %2634 = vmatmul.mubr.f32.gmra.mrb[0].mxu0 %v2234
    %v2635 = vpop.f32.mrb[0].mxu0
    %v2636 = vadd.f32 %v2257, %v2635
    %v2637 = vpop.f32.mrb[0].mxu0
    %2638 = vmatprep.mubr.f32.mxu0 0.0
    %2639 = vmatmul.mubr.f32.gmra.mrb[0].mxu0 %v2235
    %v2640 = vpop.f32.mrb[0].mxu0
    %v2641 = vadd.f32 %v2257, %v2640
    %v2642 = vpop.f32.mrb[0].mxu0
    %2643 = vdwg.mxu0
    %v2644 = vmax.f32 %v2326, 0.0
    %v2645 = vmax.f32 %v2331, 0.0
    %v2646 = vmax.f32 %v2336, 0.0
    %v2647 = vmax.f32 %v2341, 0.0
    %v2648 = vmax.f32 %v2346, 0.0
    %v2649 = vmax.f32 %v2351, 0.0
    %v2650 = vmax.f32 %v2356, 0.0
    %v2651 = vmax.f32 %v2361, 0.0
    %v2652 = vmax.f32 %v2366, 0.0
    %v2653 = vmax.f32 %v2371, 0.0
    %v2654 = vmax.f32 %v2376, 0.0
    %v2655 = vmax.f32 %v2381, 0.0
    %v2656 = vmax.f32 %v2386, 0.0
    %v2657 = vmax.f32 %v2391, 0.0
    %v2658 = vmax.f32 %v2396, 0.0
    %v2659 = vmax.f32 %v2401, 0.0
    %v2660 = vmax.f32 %v2406, 0.0
    %v2661 = vmax.f32 %v2411, 0.0
    %v2662 = vmax.f32 %v2416, 0.0
    %v2663 = vmax.f32 %v2421, 0.0
    %v2664 = vmax.f32 %v2426, 0.0
    %v2665 = vmax.f32 %v2431, 0.0
    %v2666 = vmax.f32 %v2436, 0.0
    %v2667 = vmax.f32 %v2441, 0.0
    %v2668 = vmax.f32 %v2446, 0.0
    %v2669 = vmax.f32 %v2451, 0.0
    %v2670 = vmax.f32 %v2456, 0.0
    %v2671 = vmax.f32 %v2461, 0.0
    %v2672 = vmax.f32 %v2466, 0.0
    %v2673 = vmax.f32 %v2471, 0.0
    %v2674 = vmax.f32 %v2476, 0.0
    %v2675 = vmax.f32 %v2481, 0.0
    %v2676 = vmax.f32 %v2486, 0.0
    %v2677 = vmax.f32 %v2491, 0.0
    %v2678 = vmax.f32 %v2496, 0.0
    %v2679 = vmax.f32 %v2501, 0.0
    %v2680 = vmax.f32 %v2506, 0.0
    %v2681 = vmax.f32 %v2511, 0.0
    %v2682 = vmax.f32 %v2516, 0.0
    %v2683 = vmax.f32 %v2521, 0.0
    %v2684 = vmax.f32 %v2526, 0.0
    %v2685 = vmax.f32 %v2531, 0.0
    %v2686 = vmax.f32 %v2536, 0.0
    %v2687 = vmax.f32 %v2541, 0.0
    %v2688 = vmax.f32 %v2546, 0.0
    %v2689 = vmax.f32 %v2551, 0.0
    %v2690 = vmax.f32 %v2556, 0.0
    %v2691 = vmax.f32 %v2561, 0.0
    %v2692 = vmax.f32 %v2566, 0.0
    %v2693 = vmax.f32 %v2571, 0.0
    %v2694 = vmax.f32 %v2576, 0.0
    %v2695 = vmax.f32 %v2581, 0.0
    %v2696 = vmax.f32 %v2586, 0.0
    %v2697 = vmax.f32 %v2591, 0.0
    %v2698 = vmax.f32 %v2596, 0.0
    %v2699 = vmax.f32 %v2601, 0.0
    %v2700 = vmax.f32 %v2606, 0.0
    %v2701 = vmax.f32 %v2611, 0.0
    %v2702 = vmax.f32 %v2616, 0.0
    %v2703 = vmax.f32 %v2621, 0.0
    %v2704 = vmax.f32 %v2626, 0.0
    %v2705 = vmax.f32 %v2631, 0.0
    %v2706 = vmax.f32 %v2636, 0.0
    %v2707 = vmax.f32 %v2641, 0.0
    %v2708 = vmax.f32 %v2644, %v2660
    %v2709 = vmax.f32 %v2645, %v2661
    %v2710 = vmax.f32 %v2646, %v2662
    %v2711 = vmax.f32 %v2647, %v2663
    %v2712 = vmax.f32 %v2648, %v2664
    %v2713 = vmax.f32 %v2649, %v2665
    %v2714 = vmax.f32 %v2650, %v2666
    %v2715 = vmax.f32 %v2651, %v2667
    %v2716 = vmax.f32 %v2652, %v2668
    %v2717 = vmax.f32 %v2653, %v2669
    %v2718 = vmax.f32 %v2654, %v2670
    %v2719 = vmax.f32 %v2655, %v2671
    %v2720 = vmax.f32 %v2656, %v2672
    %v2721 = vmax.f32 %v2657, %v2673
    %v2722 = vmax.f32 %v2658, %v2674
    %v2723 = vmax.f32 %v2659, %v2675
    %v2724 = vmax.f32 %v2676, %v2692
    %v2725 = vmax.f32 %v2677, %v2693
    %v2726 = vmax.f32 %v2678, %v2694
    %v2727 = vmax.f32 %v2679, %v2695
    %v2728 = vmax.f32 %v2680, %v2696
    %v2729 = vmax.f32 %v2681, %v2697
    %v2730 = vmax.f32 %v2682, %v2698
    %v2731 = vmax.f32 %v2683, %v2699
    %v2732 = vmax.f32 %v2684, %v2700
    %v2733 = vmax.f32 %v2685, %v2701
    %v2734 = vmax.f32 %v2686, %v2702
    %v2735 = vmax.f32 %v2687, %v2703
    %v2736 = vmax.f32 %v2688, %v2704
    %v2737 = vmax.f32 %v2689, %v2705
    %v2738 = vmax.f32 %v2690, %v2706
    %v2739 = vmax.f32 %v2691, %v2707
    %v2740 = vmax.f32 %v2708, %v2724
    %v2741 = vmax.f32 %v2709, %v2725
    %v2742 = vmax.f32 %v2710, %v2726
    %v2743 = vmax.f32 %v2711, %v2727
    %v2744 = vmax.f32 %v2712, %v2728
    %v2745 = vmax.f32 %v2713, %v2729
    %v2746 = vmax.f32 %v2714, %v2730
    %v2747 = vmax.f32 %v2715, %v2731
    %v2748 = vmax.f32 %v2716, %v2732
    %v2749 = vmax.f32 %v2717, %v2733
    %v2750 = vmax.f32 %v2718, %v2734
    %v2751 = vmax.f32 %v2719, %v2735
    %v2752 = vmax.f32 %v2720, %v2736
    %v2753 = vmax.f32 %v2721, %v2737
    %v2754 = vmax.f32 %v2722, %v2738
    %v2755 = vmax.f32 %v2723, %v2739
    %2756 = vst.msk [vmem:[#allocation4] sm:$0xff] %vm96, %v2740
    %2757 = vst.msk [vmem:[#allocation4 + $0x8] sm:$0xff] %vm96, %v2741
    %2758 = vst.msk [vmem:[#allocation4 + $0x10] sm:$0xff] %vm96, %v2742
    %2759 = vst.msk [vmem:[#allocation4 + $0x18] sm:$0xff] %vm96, %v2743
    %2760 = vst.msk [vmem:[#allocation4 + $0x20] sm:$0xff] %vm96, %v2744
    %2761 = vst.msk [vmem:[#allocation4 + $0x28] sm:$0xff] %vm96, %v2745
    %2762 = vst.msk [vmem:[#allocation4 + $0x30] sm:$0xff] %vm96, %v2746
    %2763 = vst.msk [vmem:[#allocation4 + $0x38] sm:$0xff] %vm96, %v2747
    %2764 = vst.msk [vmem:[#allocation4 + $0x40] sm:$0xff] %vm96, %v2748
    %2765 = vst.msk [vmem:[#allocation4 + $0x48] sm:$0xff] %vm96, %v2749
    %2766 = vst.msk [vmem:[#allocation4 + $0x50] sm:$0xff] %vm96, %v2750
    %2767 = vst.msk [vmem:[#allocation4 + $0x58] sm:$0xff] %vm96, %v2751
    %2768 = vst.msk [vmem:[#allocation4 + $0x60] sm:$0xff] %vm96, %v2752
    %2769 = vst.msk [vmem:[#allocation4 + $0x68] sm:$0xff] %vm96, %v2753
    %2770 = vst.msk [vmem:[#allocation4 + $0x70] sm:$0xff] %vm96, %v2754
    %2771 = vst.msk [vmem:[#allocation4 + $0x78] sm:$0xff] %vm96, %v2755
    // Predicated region
    $region22: #{multi_channel_cnn_har.1} parent=1 // pred_check
      _
    $region23: #{multi_channel_cnn_har.1} parent=1 // pred_check_branch
      %2773 = sbr.rel (0) target = $region25
    $region24: #{multi_channel_cnn_har.1} parent=1 // pred_region
      %s2775 = ssub.s32 2048, 2048
      %2776 = vsyncadd [#allocation5], %s2775
      %s2777 = sshll.u32 [#allocation4], 4
      %s2778 = int_to_ptr.vmem [resolvable:$true] %s2777
      %2783 = dma.vmem_to_hbm [thread:$0]  %s2778, 2048, %s5, [#allocation5], 128, 128, 8
    $region25: #{multi_channel_cnn_har.1} parent=1 // pred_fallthru
      _
    // Predicated region
    $region26: #{multi_channel_cnn_har.1} parent=1 // pred_check
      _
    $region27: #{multi_channel_cnn_har.1} parent=1 // pred_check_branch
      %2785 = sbr.rel (0) target = $region29
    $region28: #{multi_channel_cnn_har.1} parent=1 // pred_region
      %2786 = dma.done [#allocation5], 2048
    $region29: #{multi_channel_cnn_har.1} parent=1 // pred_fallthru
      _
    %2787 = vsyncpa [#allocation5], 1

</llo_original>
